<compile_context>
chip_gen: v7x
topology: tpu7x:2x2x1
jax: 0.10.0
libtpu: 0.0.40
codegen_flags: <defaults>
</compile_context>

<pallas_src>
import functools

import numpy as np

import jax
import jax.numpy as jnp
from jax.experimental import pallas as pl
from jax.experimental.pallas import tpu as pltpu


# Shapes pinned by the module (Linear(2048, .) => 72x72 single-scale input).
_H = _W = 72
_K1, _S1, _C1 = 5, 4, 16          # conv1: kernel, stride, out channels
_K2, _S2, _C2 = 3, 2, 32          # conv2
_OH1 = (_H - _K1) // _S1 + 1      # 17
_OH2 = (_OH1 - _K2) // _S2 + 1    # 8
_N1 = _OH1 * _C1                  # 272  (conv1 row width, (w, c) packed)
_N2 = _OH2 * _C2                  # 256  (conv2 row width)
_FC1 = 128
_NPAD = 128                       # lane-dense padded width of the final output


# ---------------------------------------------------------------------------
# The fused kernel: one image per grid step, weights VMEM-resident.
# ---------------------------------------------------------------------------
def _cnn_fused_kernel(x_ref, a1_ref, g1_ref, b1_ref, a2_ref, g2_ref, b2_ref,
                      w3_ref, b3_ref, w4_ref, b4_ref, o_ref, *, cin):
    f32, bf16 = jnp.float32, jnp.bfloat16
    x = x_ref[0].astype(bf16)                                    # (cin, 72, 72)

    # ---- Conv1 (k=5, s=4) + bias + ReLU: tap-sum of MXU matmuls ------------
    r1 = jnp.zeros((_OH1, _N1), f32)
    for c in range(cin):
        xc = x[c]                                                # (72, 72)
        for kh in range(_K1):
            rows = jnp.dot(a1_ref[kh], xc, preferred_element_type=f32)  # (17,72)
            r1 = r1 + jnp.dot(rows.astype(bf16), g1_ref[c * _K1 + kh],
                              preferred_element_type=f32)        # (17, 272)
    r1 = jnp.maximum(r1 + b1_ref[...], 0.0)
    # TODO(synk): Dropout(p=0.1) applied as identity (eval mode).

    # ---- Conv2 (k=3, s=2) + bias + ReLU ------------------------------------
    r1b = r1.astype(bf16)
    r2 = jnp.zeros((_OH2, _N2), f32)
    for kh in range(_K2):
        rows = jnp.dot(a2_ref[kh], r1b, preferred_element_type=f32)      # (8,272)
        r2 = r2 + jnp.dot(rows.astype(bf16), g2_ref[kh],
                          preferred_element_type=f32)            # (8, 256)
    r2 = jnp.maximum(r2 + b2_ref[...], 0.0)
    # TODO(synk): Dropout(p=0.075) applied as identity (eval mode).

    # ---- FC1 (2048 -> 128) + ReLU; flatten permutation baked into w3 -------
    r2b = r2.astype(bf16)
    h1 = jnp.zeros((1, _FC1), f32)
    for h in range(_OH2):
        h1 = h1 + jnp.dot(r2b[h:h + 1, :], w3_ref[h],
                          preferred_element_type=f32)            # (1, 128)
    h1 = jnp.maximum(h1 + b3_ref[...], 0.0)
    # TODO(synk): Dropout(p=0.05) applied as identity (eval mode).

    # ---- FC2 (128 -> out_features, zero-padded to 128 lanes) ---------------
    out = jnp.dot(h1.astype(bf16), w4_ref[...], preferred_element_type=f32)
    o_ref[0] = (out + b4_ref[...]).astype(o_ref.dtype)           # (1, 128) store


# ---------------------------------------------------------------------------
# Parameters: PyTorch layouts -> fused-kernel operand set (init-time only).
# ---------------------------------------------------------------------------
def init_params(key, history_length=0, out_features=4):
    """Deterministic synthetic parameters in the PyTorch layouts."""
    cin = history_length + 1
    ks = jax.random.split(key, 8)
    s = 0.05
    return {
        "w1": s * jax.random.normal(ks[0], (_C1, cin, _K1, _K1), jnp.float32),
        "b1": s * jax.random.normal(ks[1], (_C1,), jnp.float32),
        "w2": s * jax.random.normal(ks[2], (_C2, _C1, _K2, _K2), jnp.float32),
        "b2": s * jax.random.normal(ks[3], (_C2,), jnp.float32),
        "w3": s * jax.random.normal(ks[4], (_FC1, _C2 * _OH2 * _OH2), jnp.float32),
        "b3": s * jax.random.normal(ks[5], (_FC1,), jnp.float32),
        "w4": s * jax.random.normal(ks[6], (out_features, _FC1), jnp.float32),
        "b4": s * jax.random.normal(ks[7], (out_features,), jnp.float32),
    }


def prepare_params(params):
    """Fold PyTorch-layout weights into the fused-kernel operands (numpy, init-time)."""
    w1 = np.asarray(params["w1"], np.float32)   # (16, cin, 5, 5)  OIHW
    b1 = np.asarray(params["b1"], np.float32)
    w2 = np.asarray(params["w2"], np.float32)   # (32, 16, 3, 3)
    b2 = np.asarray(params["b2"], np.float32)
    w3 = np.asarray(params["w3"], np.float32)   # (128, 2048)
    b3 = np.asarray(params["b3"], np.float32)
    w4 = np.asarray(params["w4"], np.float32)   # (F, 128)
    b4 = np.asarray(params["b4"], np.float32)
    cin = w1.shape[1]
    n_out = w4.shape[0]
    assert n_out <= _NPAD

    # Row-selection matrices for the strided convs (0/1, exact in bf16).
    a1 = np.zeros((_K1, _OH1, _H), np.float32)
    for kh in range(_K1):
        for oh in range(_OH1):
            a1[kh, oh, _S1 * oh + kh] = 1.0
    a2 = np.zeros((_K2, _OH2, _OH1), np.float32)
    for kh in range(_K2):
        for oh in range(_OH2):
            a2[kh, oh, _S2 * oh + kh] = 1.0

    # Gather+weight matrices: g1[c*5+kh, w, ow*16+co] = w1[co, c, kh, w-4*ow].
    g1 = np.zeros((cin * _K1, _W, _N1), np.float32)
    for c in range(cin):
        for kh in range(_K1):
            for ow in range(_OH1):
                for kw in range(_K1):
                    g1[c * _K1 + kh, _S1 * ow + kw,
                       ow * _C1:(ow + 1) * _C1] = w1[:, c, kh, kw]
    # g2[kh, w*16+c, ow*32+co] = w2[co, c, kh, w-2*ow].
    g2 = np.zeros((_K2, _N1, _N2), np.float32)
    for kh in range(_K2):
        for ow in range(_OH2):
            for kw in range(_K2):
                w_idx = _S2 * ow + kw
                g2[kh, w_idx * _C1:(w_idx + 1) * _C1,
                   ow * _C2:(ow + 1) * _C2] = w2[:, :, kh, kw].T

    # Per-row biases matching the packed (w, c) column layout.
    b1t = np.tile(b1, _OH1)[None, :]            # (1, 272)
    b2t = np.tile(b2, _OH2)[None, :]            # (1, 256)

    # FC1: bake the NCHW flatten order (c, h, w) -> our (h, w, c) layout.
    w3t = w3.T.reshape(_C2, _OH2, _OH2, _FC1)                 # (c, h, w, n)
    w3r = np.transpose(w3t, (1, 2, 0, 3)).reshape(_OH2, _N2, _FC1)

    # FC2: zero-pad the output dim to 128 for a lane-dense final store.
    w4p = np.zeros((_FC1, _NPAD), np.float32)
    w4p[:, :n_out] = w4.T
    b4p = np.zeros((1, _NPAD), np.float32)
    b4p[0, :n_out] = b4

    bf = lambda a: jnp.asarray(a, jnp.bfloat16)
    fp = lambda a: jnp.asarray(a, jnp.float32)
    return {
        "a1": bf(a1), "g1": bf(g1), "b1t": fp(b1t),
        "a2": bf(a2), "g2": bf(g2), "b2t": fp(b2t),
        "w3r": bf(w3r), "b3": fp(b3[None, :]),
        "w4p": bf(w4p), "b4p": fp(b4p),
    }


# ---------------------------------------------------------------------------
# Forward pass wrapper.
# ---------------------------------------------------------------------------
def _resident(arr):
    """Full-array block with a constant index_map -> fetched once, VMEM-resident."""
    zeros = (0,) * arr.ndim
    return pl.BlockSpec(arr.shape, lambda b: zeros)


def cnn_forward(x_nchw, kparams, out_features):
    """x: (B, cin, 72, 72) float32 -> (B, out_features) float32."""
    B, cin, H, W = x_nchw.shape
    assert (H, W) == (_H, _W), (H, W)

    weights = (kparams["a1"], kparams["g1"], kparams["b1t"],
               kparams["a2"], kparams["g2"], kparams["b2t"],
               kparams["w3r"], kparams["b3"],
               kparams["w4p"], kparams["b4p"])

    out = pl.pallas_call(
        functools.partial(_cnn_fused_kernel, cin=cin),
        grid=(B,),
        in_specs=[pl.BlockSpec((1, cin, _H, _W), lambda b: (b, 0, 0, 0))]
                 + [_resident(w) for w in weights],
        out_specs=pl.BlockSpec((1, 1, _NPAD), lambda b: (b, 0, 0)),
        out_shape=jax.ShapeDtypeStruct((B, 1, _NPAD), jnp.float32),
        compiler_params=pltpu.CompilerParams(
            dimension_semantics=("parallel",)),
    )(x_nchw.astype(jnp.float32), *weights)
    return out.reshape(B, _NPAD)[:, :out_features]


def cnn_reference(x_nchw, params):
    """Pure-JAX reference of the PyTorch module (eval-mode dropout = identity)."""
    dn = ("NCHW", "OIHW", "NCHW")
    y = jax.lax.conv_general_dilated(x_nchw.astype(jnp.float32), params["w1"],
                                     (_S1, _S1), "VALID", dimension_numbers=dn)
    y = jax.nn.relu(y + params["b1"][None, :, None, None])
    y = jax.lax.conv_general_dilated(y, params["w2"],
                                     (_S2, _S2), "VALID", dimension_numbers=dn)
    y = jax.nn.relu(y + params["b2"][None, :, None, None])
    y = y.reshape(y.shape[0], -1)                 # nn.Flatten on NCHW: (c, h, w)
    y = jax.nn.relu(y @ params["w3"].T + params["b3"])
    return y @ params["w4"].T + params["b4"]


if __name__ == "__main__":
    key = jax.random.PRNGKey(0)
    kx, kp = jax.random.split(key)

    batch, history_length, out_features = 2, 0, 4
    x = jax.random.normal(kx, (batch, history_length + 1, _H, _W), jnp.float32)
    params = init_params(kp, history_length, out_features)
    kparams = prepare_params(params)

    fwd = jax.jit(cnn_forward, static_argnums=2)
    out = jax.block_until_ready(fwd(x, kparams, out_features))

    assert out.shape == (batch, out_features), out.shape
    assert out.dtype == jnp.float32, out.dtype

    # bf16-tolerant sanity check against the pure-JAX reference.
    ref = jax.block_until_ready(cnn_reference(x, params))
    rel = float(jnp.linalg.norm(out - ref) / (jnp.linalg.norm(ref) + 1e-6))
    assert rel < 0.1, rel

    print("KERNEL_OK")
</pallas_src>

<mosaic_0001>
module attributes {stable_mosaic.version = 11 : i64} {
  func.func @_cnn_fused_kernel(%arg0: i32, %arg1: memref<1x1x72x72xf32, #tpu.memory_space<vmem>>, %arg2: memref<5x17x72xbf16, #tpu.memory_space<vmem>>, %arg3: memref<5x72x272xbf16, #tpu.memory_space<vmem>>, %arg4: memref<1x272xf32, #tpu.memory_space<vmem>>, %arg5: memref<3x8x17xbf16, #tpu.memory_space<vmem>>, %arg6: memref<3x272x256xbf16, #tpu.memory_space<vmem>>, %arg7: memref<1x256xf32, #tpu.memory_space<vmem>>, %arg8: memref<8x256x128xbf16, #tpu.memory_space<vmem>>, %arg9: memref<1x128xf32, #tpu.memory_space<vmem>>, %arg10: memref<128x128xbf16, #tpu.memory_space<vmem>>, %arg11: memref<1x128xf32, #tpu.memory_space<vmem>>, %arg12: memref<1x1x128xf32, #tpu.memory_space<vmem>>) attributes {dimension_semantics = [#tpu.dimension_semantics<parallel>], iteration_bounds = array<i64: 2>, scalar_prefetch = 0 : i64, scratch_operands = 0 : i64, tpu.core_type = #tpu.core_type<tc>, window_params = [{transform_indices = @transform_0, window_bounds = array<i64: 1, 1, 72, 72>}, {pipeline_mode = #tpu.pipeline_mode<synchronous>, transform_indices = @transform_1, window_bounds = array<i64: 5, 17, 72>}, {pipeline_mode = #tpu.pipeline_mode<synchronous>, transform_indices = @transform_2, window_bounds = array<i64: 5, 72, 272>}, {pipeline_mode = #tpu.pipeline_mode<synchronous>, transform_indices = @transform_3, window_bounds = array<i64: 1, 272>}, {pipeline_mode = #tpu.pipeline_mode<synchronous>, transform_indices = @transform_4, window_bounds = array<i64: 3, 8, 17>}, {pipeline_mode = #tpu.pipeline_mode<synchronous>, transform_indices = @transform_5, window_bounds = array<i64: 3, 272, 256>}, {pipeline_mode = #tpu.pipeline_mode<synchronous>, transform_indices = @transform_6, window_bounds = array<i64: 1, 256>}, {pipeline_mode = #tpu.pipeline_mode<synchronous>, transform_indices = @transform_7, window_bounds = array<i64: 8, 256, 128>}, {pipeline_mode = #tpu.pipeline_mode<synchronous>, transform_indices = @transform_8, window_bounds = array<i64: 1, 128>}, {pipeline_mode = #tpu.pipeline_mode<synchronous>, transform_indices = @transform_9, window_bounds = array<i64: 128, 128>}, {pipeline_mode = #tpu.pipeline_mode<synchronous>, transform_indices = @transform_10, window_bounds = array<i64: 1, 128>}, {transform_indices = @transform_11, window_bounds = array<i64: 1, 1, 128>}]} {
    %c0 = arith.constant 0 : index
    %c0_0 = arith.constant 0 : index
    %c0_1 = arith.constant 0 : index
    %c0_2 = arith.constant 0 : index
    %0 = vector.load %arg1[%c0, %c0_0, %c0_1, %c0_2] : memref<1x1x72x72xf32, #tpu.memory_space<vmem>>, vector<1x1x72x72xf32>
    %1 = vector.shape_cast %0 : vector<1x1x72x72xf32> to vector<1x72x72xf32>
    %2 = arith.truncf %1 : vector<1x72x72xf32> to vector<1x72x72xbf16>
    %cst = arith.constant 0.000000e+00 : f32
    %3 = vector.broadcast %cst : f32 to vector<17x272xf32>
    %4 = vector.shape_cast %2 : vector<1x72x72xbf16> to vector<72x72xbf16>
    %c0_3 = arith.constant 0 : index
    %c0_4 = arith.constant 0 : index
    %c0_5 = arith.constant 0 : index
    %5 = vector.load %arg2[%c0_3, %c0_4, %c0_5] : memref<5x17x72xbf16, #tpu.memory_space<vmem>>, vector<1x17x72xbf16>
    %6 = vector.shape_cast %5 : vector<1x17x72xbf16> to vector<17x72xbf16>
    %cst_6 = arith.constant dense<0.000000e+00> : vector<17x72xf32>
    %7 = tpu.matmul %6, %4, %cst_6 {dimension_numbers = #tpu.dot_dimension_numbers<[1], [0], [0], [1], [0, 0, 1, 1], [], []>} : vector<17x72xbf16>, vector<72x72xbf16>, vector<17x72xf32> -> vector<17x72xf32>
    %8 = arith.truncf %7 : vector<17x72xf32> to vector<17x72xbf16>
    %c0_7 = arith.constant 0 : index
    %c0_8 = arith.constant 0 : index
    %c0_9 = arith.constant 0 : index
    %9 = vector.load %arg3[%c0_7, %c0_8, %c0_9] : memref<5x72x272xbf16, #tpu.memory_space<vmem>>, vector<1x72x272xbf16>
    %10 = vector.shape_cast %9 : vector<1x72x272xbf16> to vector<72x272xbf16>
    %cst_10 = arith.constant dense<0.000000e+00> : vector<17x272xf32>
    %11 = tpu.matmul %8, %10, %cst_10 {dimension_numbers = #tpu.dot_dimension_numbers<[1], [0], [0], [1], [0, 0, 1, 1], [], []>} : vector<17x72xbf16>, vector<72x272xbf16>, vector<17x272xf32> -> vector<17x272xf32>
    %12 = arith.addf %3, %11 : vector<17x272xf32>
    %c1 = arith.constant 1 : index
    %c0_11 = arith.constant 0 : index
    %c0_12 = arith.constant 0 : index
    %13 = vector.load %arg2[%c1, %c0_11, %c0_12] : memref<5x17x72xbf16, #tpu.memory_space<vmem>>, vector<1x17x72xbf16>
    %14 = vector.shape_cast %13 : vector<1x17x72xbf16> to vector<17x72xbf16>
    %cst_13 = arith.constant dense<0.000000e+00> : vector<17x72xf32>
    %15 = tpu.matmul %14, %4, %cst_13 {dimension_numbers = #tpu.dot_dimension_numbers<[1], [0], [0], [1], [0, 0, 1, 1], [], []>} : vector<17x72xbf16>, vector<72x72xbf16>, vector<17x72xf32> -> vector<17x72xf32>
    %16 = arith.truncf %15 : vector<17x72xf32> to vector<17x72xbf16>
    %c1_14 = arith.constant 1 : index
    %c0_15 = arith.constant 0 : index
    %c0_16 = arith.constant 0 : index
    %17 = vector.load %arg3[%c1_14, %c0_15, %c0_16] : memref<5x72x272xbf16, #tpu.memory_space<vmem>>, vector<1x72x272xbf16>
    %18 = vector.shape_cast %17 : vector<1x72x272xbf16> to vector<72x272xbf16>
    %cst_17 = arith.constant dense<0.000000e+00> : vector<17x272xf32>
    %19 = tpu.matmul %16, %18, %cst_17 {dimension_numbers = #tpu.dot_dimension_numbers<[1], [0], [0], [1], [0, 0, 1, 1], [], []>} : vector<17x72xbf16>, vector<72x272xbf16>, vector<17x272xf32> -> vector<17x272xf32>
    %20 = arith.addf %12, %19 : vector<17x272xf32>
    %c2 = arith.constant 2 : index
    %c0_18 = arith.constant 0 : index
    %c0_19 = arith.constant 0 : index
    %21 = vector.load %arg2[%c2, %c0_18, %c0_19] : memref<5x17x72xbf16, #tpu.memory_space<vmem>>, vector<1x17x72xbf16>
    %22 = vector.shape_cast %21 : vector<1x17x72xbf16> to vector<17x72xbf16>
    %cst_20 = arith.constant dense<0.000000e+00> : vector<17x72xf32>
    %23 = tpu.matmul %22, %4, %cst_20 {dimension_numbers = #tpu.dot_dimension_numbers<[1], [0], [0], [1], [0, 0, 1, 1], [], []>} : vector<17x72xbf16>, vector<72x72xbf16>, vector<17x72xf32> -> vector<17x72xf32>
    %24 = arith.truncf %23 : vector<17x72xf32> to vector<17x72xbf16>
    %c2_21 = arith.constant 2 : index
    %c0_22 = arith.constant 0 : index
    %c0_23 = arith.constant 0 : index
    %25 = vector.load %arg3[%c2_21, %c0_22, %c0_23] : memref<5x72x272xbf16, #tpu.memory_space<vmem>>, vector<1x72x272xbf16>
    %26 = vector.shape_cast %25 : vector<1x72x272xbf16> to vector<72x272xbf16>
    %cst_24 = arith.constant dense<0.000000e+00> : vector<17x272xf32>
    %27 = tpu.matmul %24, %26, %cst_24 {dimension_numbers = #tpu.dot_dimension_numbers<[1], [0], [0], [1], [0, 0, 1, 1], [], []>} : vector<17x72xbf16>, vector<72x272xbf16>, vector<17x272xf32> -> vector<17x272xf32>
    %28 = arith.addf %20, %27 : vector<17x272xf32>
    %c3 = arith.constant 3 : index
    %c0_25 = arith.constant 0 : index
    %c0_26 = arith.constant 0 : index
    %29 = vector.load %arg2[%c3, %c0_25, %c0_26] : memref<5x17x72xbf16, #tpu.memory_space<vmem>>, vector<1x17x72xbf16>
    %30 = vector.shape_cast %29 : vector<1x17x72xbf16> to vector<17x72xbf16>
    %cst_27 = arith.constant dense<0.000000e+00> : vector<17x72xf32>
    %31 = tpu.matmul %30, %4, %cst_27 {dimension_numbers = #tpu.dot_dimension_numbers<[1], [0], [0], [1], [0, 0, 1, 1], [], []>} : vector<17x72xbf16>, vector<72x72xbf16>, vector<17x72xf32> -> vector<17x72xf32>
    %32 = arith.truncf %31 : vector<17x72xf32> to vector<17x72xbf16>
    %c3_28 = arith.constant 3 : index
    %c0_29 = arith.constant 0 : index
    %c0_30 = arith.constant 0 : index
    %33 = vector.load %arg3[%c3_28, %c0_29, %c0_30] : memref<5x72x272xbf16, #tpu.memory_space<vmem>>, vector<1x72x272xbf16>
    %34 = vector.shape_cast %33 : vector<1x72x272xbf16> to vector<72x272xbf16>
    %cst_31 = arith.constant dense<0.000000e+00> : vector<17x272xf32>
    %35 = tpu.matmul %32, %34, %cst_31 {dimension_numbers = #tpu.dot_dimension_numbers<[1], [0], [0], [1], [0, 0, 1, 1], [], []>} : vector<17x72xbf16>, vector<72x272xbf16>, vector<17x272xf32> -> vector<17x272xf32>
    %36 = arith.addf %28, %35 : vector<17x272xf32>
    %c4 = arith.constant 4 : index
    %c0_32 = arith.constant 0 : index
    %c0_33 = arith.constant 0 : index
    %37 = vector.load %arg2[%c4, %c0_32, %c0_33] : memref<5x17x72xbf16, #tpu.memory_space<vmem>>, vector<1x17x72xbf16>
    %38 = vector.shape_cast %37 : vector<1x17x72xbf16> to vector<17x72xbf16>
    %cst_34 = arith.constant dense<0.000000e+00> : vector<17x72xf32>
    %39 = tpu.matmul %38, %4, %cst_34 {dimension_numbers = #tpu.dot_dimension_numbers<[1], [0], [0], [1], [0, 0, 1, 1], [], []>} : vector<17x72xbf16>, vector<72x72xbf16>, vector<17x72xf32> -> vector<17x72xf32>
    %40 = arith.truncf %39 : vector<17x72xf32> to vector<17x72xbf16>
    %c4_35 = arith.constant 4 : index
    %c0_36 = arith.constant 0 : index
    %c0_37 = arith.constant 0 : index
    %41 = vector.load %arg3[%c4_35, %c0_36, %c0_37] : memref<5x72x272xbf16, #tpu.memory_space<vmem>>, vector<1x72x272xbf16>
    %42 = vector.shape_cast %41 : vector<1x72x272xbf16> to vector<72x272xbf16>
    %cst_38 = arith.constant dense<0.000000e+00> : vector<17x272xf32>
    %43 = tpu.matmul %40, %42, %cst_38 {dimension_numbers = #tpu.dot_dimension_numbers<[1], [0], [0], [1], [0, 0, 1, 1], [], []>} : vector<17x72xbf16>, vector<72x272xbf16>, vector<17x272xf32> -> vector<17x272xf32>
    %44 = arith.addf %36, %43 : vector<17x272xf32>
    %c0_39 = arith.constant 0 : index
    %c0_40 = arith.constant 0 : index
    %45 = vector.load %arg4[%c0_39, %c0_40] : memref<1x272xf32, #tpu.memory_space<vmem>>, vector<1x272xf32>
    %46 = vector.broadcast %45 : vector<1x272xf32> to vector<17x272xf32>
    %47 = arith.addf %44, %46 : vector<17x272xf32>
    %cst_41 = arith.constant 0.000000e+00 : f32
    %48 = vector.broadcast %cst_41 : f32 to vector<17x272xf32>
    %49 = arith.maximumf %47, %48 : vector<17x272xf32>
    %50 = arith.truncf %49 : vector<17x272xf32> to vector<17x272xbf16>
    %cst_42 = arith.constant 0.000000e+00 : f32
    %51 = vector.broadcast %cst_42 : f32 to vector<8x256xf32>
    %c0_43 = arith.constant 0 : index
    %c0_44 = arith.constant 0 : index
    %c0_45 = arith.constant 0 : index
    %52 = vector.load %arg5[%c0_43, %c0_44, %c0_45] : memref<3x8x17xbf16, #tpu.memory_space<vmem>>, vector<1x8x17xbf16>
    %53 = vector.shape_cast %52 : vector<1x8x17xbf16> to vector<8x17xbf16>
    %cst_46 = arith.constant dense<0.000000e+00> : vector<8x272xf32>
    %54 = tpu.matmul %53, %50, %cst_46 {dimension_numbers = #tpu.dot_dimension_numbers<[1], [0], [0], [1], [0, 0, 1, 1], [], []>} : vector<8x17xbf16>, vector<17x272xbf16>, vector<8x272xf32> -> vector<8x272xf32>
    %55 = arith.truncf %54 : vector<8x272xf32> to vector<8x272xbf16>
    %c0_47 = arith.constant 0 : index
    %c0_48 = arith.constant 0 : index
    %c0_49 = arith.constant 0 : index
    %56 = vector.load %arg6[%c0_47, %c0_48, %c0_49] : memref<3x272x256xbf16, #tpu.memory_space<vmem>>, vector<1x272x256xbf16>
    %57 = vector.shape_cast %56 : vector<1x272x256xbf16> to vector<272x256xbf16>
    %cst_50 = arith.constant dense<0.000000e+00> : vector<8x256xf32>
    %58 = tpu.matmul %55, %57, %cst_50 {dimension_numbers = #tpu.dot_dimension_numbers<[1], [0], [0], [1], [0, 0, 1, 1], [], []>} : vector<8x272xbf16>, vector<272x256xbf16>, vector<8x256xf32> -> vector<8x256xf32>
    %59 = arith.addf %51, %58 : vector<8x256xf32>
    %c1_51 = arith.constant 1 : index
    %c0_52 = arith.constant 0 : index
    %c0_53 = arith.constant 0 : index
    %60 = vector.load %arg5[%c1_51, %c0_52, %c0_53] : memref<3x8x17xbf16, #tpu.memory_space<vmem>>, vector<1x8x17xbf16>
    %61 = vector.shape_cast %60 : vector<1x8x17xbf16> to vector<8x17xbf16>
    %cst_54 = arith.constant dense<0.000000e+00> : vector<8x272xf32>
    %62 = tpu.matmul %61, %50, %cst_54 {dimension_numbers = #tpu.dot_dimension_numbers<[1], [0], [0], [1], [0, 0, 1, 1], [], []>} : vector<8x17xbf16>, vector<17x272xbf16>, vector<8x272xf32> -> vector<8x272xf32>
    %63 = arith.truncf %62 : vector<8x272xf32> to vector<8x272xbf16>
    %c1_55 = arith.constant 1 : index
    %c0_56 = arith.constant 0 : index
    %c0_57 = arith.constant 0 : index
    %64 = vector.load %arg6[%c1_55, %c0_56, %c0_57] : memref<3x272x256xbf16, #tpu.memory_space<vmem>>, vector<1x272x256xbf16>
    %65 = vector.shape_cast %64 : vector<1x272x256xbf16> to vector<272x256xbf16>
    %cst_58 = arith.constant dense<0.000000e+00> : vector<8x256xf32>
    %66 = tpu.matmul %63, %65, %cst_58 {dimension_numbers = #tpu.dot_dimension_numbers<[1], [0], [0], [1], [0, 0, 1, 1], [], []>} : vector<8x272xbf16>, vector<272x256xbf16>, vector<8x256xf32> -> vector<8x256xf32>
    %67 = arith.addf %59, %66 : vector<8x256xf32>
    %c2_59 = arith.constant 2 : index
    %c0_60 = arith.constant 0 : index
    %c0_61 = arith.constant 0 : index
    %68 = vector.load %arg5[%c2_59, %c0_60, %c0_61] : memref<3x8x17xbf16, #tpu.memory_space<vmem>>, vector<1x8x17xbf16>
    %69 = vector.shape_cast %68 : vector<1x8x17xbf16> to vector<8x17xbf16>
    %cst_62 = arith.constant dense<0.000000e+00> : vector<8x272xf32>
    %70 = tpu.matmul %69, %50, %cst_62 {dimension_numbers = #tpu.dot_dimension_numbers<[1], [0], [0], [1], [0, 0, 1, 1], [], []>} : vector<8x17xbf16>, vector<17x272xbf16>, vector<8x272xf32> -> vector<8x272xf32>
    %71 = arith.truncf %70 : vector<8x272xf32> to vector<8x272xbf16>
    %c2_63 = arith.constant 2 : index
    %c0_64 = arith.constant 0 : index
    %c0_65 = arith.constant 0 : index
    %72 = vector.load %arg6[%c2_63, %c0_64, %c0_65] : memref<3x272x256xbf16, #tpu.memory_space<vmem>>, vector<1x272x256xbf16>
    %73 = vector.shape_cast %72 : vector<1x272x256xbf16> to vector<272x256xbf16>
    %cst_66 = arith.constant dense<0.000000e+00> : vector<8x256xf32>
    %74 = tpu.matmul %71, %73, %cst_66 {dimension_numbers = #tpu.dot_dimension_numbers<[1], [0], [0], [1], [0, 0, 1, 1], [], []>} : vector<8x272xbf16>, vector<272x256xbf16>, vector<8x256xf32> -> vector<8x256xf32>
    %75 = arith.addf %67, %74 : vector<8x256xf32>
    %c0_67 = arith.constant 0 : index
    %c0_68 = arith.constant 0 : index
    %76 = vector.load %arg7[%c0_67, %c0_68] : memref<1x256xf32, #tpu.memory_space<vmem>>, vector<1x256xf32>
    %77 = vector.broadcast %76 : vector<1x256xf32> to vector<8x256xf32>
    %78 = arith.addf %75, %77 : vector<8x256xf32>
    %cst_69 = arith.constant 0.000000e+00 : f32
    %79 = vector.broadcast %cst_69 : f32 to vector<8x256xf32>
    %80 = arith.maximumf %78, %79 : vector<8x256xf32>
    %81 = arith.truncf %80 : vector<8x256xf32> to vector<8x256xbf16>
    %cst_70 = arith.constant 0.000000e+00 : f32
    %82 = vector.broadcast %cst_70 : f32 to vector<1x128xf32>
    %83 = vector.extract_strided_slice %81 {offsets = [0, 0], sizes = [1, 256], strides = [1, 1]} : vector<8x256xbf16> to vector<1x256xbf16>
    %c0_71 = arith.constant 0 : index
    %c0_72 = arith.constant 0 : index
    %c0_73 = arith.constant 0 : index
    %84 = vector.load %arg8[%c0_71, %c0_72, %c0_73] : memref<8x256x128xbf16, #tpu.memory_space<vmem>>, vector<1x256x128xbf16>
    %85 = vector.shape_cast %84 : vector<1x256x128xbf16> to vector<256x128xbf16>
    %cst_74 = arith.constant dense<0.000000e+00> : vector<1x128xf32>
    %86 = tpu.matmul %83, %85, %cst_74 {dimension_numbers = #tpu.dot_dimension_numbers<[1], [0], [0], [1], [0, 0, 1, 1], [], []>} : vector<1x256xbf16>, vector<256x128xbf16>, vector<1x128xf32> -> vector<1x128xf32>
    %87 = arith.addf %82, %86 : vector<1x128xf32>
    %88 = vector.extract_strided_slice %81 {offsets = [1, 0], sizes = [1, 256], strides = [1, 1]} : vector<8x256xbf16> to vector<1x256xbf16>
    %c1_75 = arith.constant 1 : index
    %c0_76 = arith.constant 0 : index
    %c0_77 = arith.constant 0 : index
    %89 = vector.load %arg8[%c1_75, %c0_76, %c0_77] : memref<8x256x128xbf16, #tpu.memory_space<vmem>>, vector<1x256x128xbf16>
    %90 = vector.shape_cast %89 : vector<1x256x128xbf16> to vector<256x128xbf16>
    %cst_78 = arith.constant dense<0.000000e+00> : vector<1x128xf32>
    %91 = tpu.matmul %88, %90, %cst_78 {dimension_numbers = #tpu.dot_dimension_numbers<[1], [0], [0], [1], [0, 0, 1, 1], [], []>} : vector<1x256xbf16>, vector<256x128xbf16>, vector<1x128xf32> -> vector<1x128xf32>
    %92 = arith.addf %87, %91 : vector<1x128xf32>
    %93 = vector.extract_strided_slice %81 {offsets = [2, 0], sizes = [1, 256], strides = [1, 1]} : vector<8x256xbf16> to vector<1x256xbf16>
    %c2_79 = arith.constant 2 : index
    %c0_80 = arith.constant 0 : index
    %c0_81 = arith.constant 0 : index
    %94 = vector.load %arg8[%c2_79, %c0_80, %c0_81] : memref<8x256x128xbf16, #tpu.memory_space<vmem>>, vector<1x256x128xbf16>
    %95 = vector.shape_cast %94 : vector<1x256x128xbf16> to vector<256x128xbf16>
    %cst_82 = arith.constant dense<0.000000e+00> : vector<1x128xf32>
    %96 = tpu.matmul %93, %95, %cst_82 {dimension_numbers = #tpu.dot_dimension_numbers<[1], [0], [0], [1], [0, 0, 1, 1], [], []>} : vector<1x256xbf16>, vector<256x128xbf16>, vector<1x128xf32> -> vector<1x128xf32>
    %97 = arith.addf %92, %96 : vector<1x128xf32>
    %98 = vector.extract_strided_slice %81 {offsets = [3, 0], sizes = [1, 256], strides = [1, 1]} : vector<8x256xbf16> to vector<1x256xbf16>
    %c3_83 = arith.constant 3 : index
    %c0_84 = arith.constant 0 : index
    %c0_85 = arith.constant 0 : index
    %99 = vector.load %arg8[%c3_83, %c0_84, %c0_85] : memref<8x256x128xbf16, #tpu.memory_space<vmem>>, vector<1x256x128xbf16>
    %100 = vector.shape_cast %99 : vector<1x256x128xbf16> to vector<256x128xbf16>
    %cst_86 = arith.constant dense<0.000000e+00> : vector<1x128xf32>
    %101 = tpu.matmul %98, %100, %cst_86 {dimension_numbers = #tpu.dot_dimension_numbers<[1], [0], [0], [1], [0, 0, 1, 1], [], []>} : vector<1x256xbf16>, vector<256x128xbf16>, vector<1x128xf32> -> vector<1x128xf32>
    %102 = arith.addf %97, %101 : vector<1x128xf32>
    %103 = vector.extract_strided_slice %81 {offsets = [4, 0], sizes = [1, 256], strides = [1, 1]} : vector<8x256xbf16> to vector<1x256xbf16>
    %c4_87 = arith.constant 4 : index
    %c0_88 = arith.constant 0 : index
    %c0_89 = arith.constant 0 : index
    %104 = vector.load %arg8[%c4_87, %c0_88, %c0_89] : memref<8x256x128xbf16, #tpu.memory_space<vmem>>, vector<1x256x128xbf16>
    %105 = vector.shape_cast %104 : vector<1x256x128xbf16> to vector<256x128xbf16>
    %cst_90 = arith.constant dense<0.000000e+00> : vector<1x128xf32>
    %106 = tpu.matmul %103, %105, %cst_90 {dimension_numbers = #tpu.dot_dimension_numbers<[1], [0], [0], [1], [0, 0, 1, 1], [], []>} : vector<1x256xbf16>, vector<256x128xbf16>, vector<1x128xf32> -> vector<1x128xf32>
    %107 = arith.addf %102, %106 : vector<1x128xf32>
    %108 = vector.extract_strided_slice %81 {offsets = [5, 0], sizes = [1, 256], strides = [1, 1]} : vector<8x256xbf16> to vector<1x256xbf16>
    %c5 = arith.constant 5 : index
    %c0_91 = arith.constant 0 : index
    %c0_92 = arith.constant 0 : index
    %109 = vector.load %arg8[%c5, %c0_91, %c0_92] : memref<8x256x128xbf16, #tpu.memory_space<vmem>>, vector<1x256x128xbf16>
    %110 = vector.shape_cast %109 : vector<1x256x128xbf16> to vector<256x128xbf16>
    %cst_93 = arith.constant dense<0.000000e+00> : vector<1x128xf32>
    %111 = tpu.matmul %108, %110, %cst_93 {dimension_numbers = #tpu.dot_dimension_numbers<[1], [0], [0], [1], [0, 0, 1, 1], [], []>} : vector<1x256xbf16>, vector<256x128xbf16>, vector<1x128xf32> -> vector<1x128xf32>
    %112 = arith.addf %107, %111 : vector<1x128xf32>
    %113 = vector.extract_strided_slice %81 {offsets = [6, 0], sizes = [1, 256], strides = [1, 1]} : vector<8x256xbf16> to vector<1x256xbf16>
    %c6 = arith.constant 6 : index
    %c0_94 = arith.constant 0 : index
    %c0_95 = arith.constant 0 : index
    %114 = vector.load %arg8[%c6, %c0_94, %c0_95] : memref<8x256x128xbf16, #tpu.memory_space<vmem>>, vector<1x256x128xbf16>
    %115 = vector.shape_cast %114 : vector<1x256x128xbf16> to vector<256x128xbf16>
    %cst_96 = arith.constant dense<0.000000e+00> : vector<1x128xf32>
    %116 = tpu.matmul %113, %115, %cst_96 {dimension_numbers = #tpu.dot_dimension_numbers<[1], [0], [0], [1], [0, 0, 1, 1], [], []>} : vector<1x256xbf16>, vector<256x128xbf16>, vector<1x128xf32> -> vector<1x128xf32>
    %117 = arith.addf %112, %116 : vector<1x128xf32>
    %118 = vector.extract_strided_slice %81 {offsets = [7, 0], sizes = [1, 256], strides = [1, 1]} : vector<8x256xbf16> to vector<1x256xbf16>
    %c7 = arith.constant 7 : index
    %c0_97 = arith.constant 0 : index
    %c0_98 = arith.constant 0 : index
    %119 = vector.load %arg8[%c7, %c0_97, %c0_98] : memref<8x256x128xbf16, #tpu.memory_space<vmem>>, vector<1x256x128xbf16>
    %120 = vector.shape_cast %119 : vector<1x256x128xbf16> to vector<256x128xbf16>
    %cst_99 = arith.constant dense<0.000000e+00> : vector<1x128xf32>
    %121 = tpu.matmul %118, %120, %cst_99 {dimension_numbers = #tpu.dot_dimension_numbers<[1], [0], [0], [1], [0, 0, 1, 1], [], []>} : vector<1x256xbf16>, vector<256x128xbf16>, vector<1x128xf32> -> vector<1x128xf32>
    %122 = arith.addf %117, %121 : vector<1x128xf32>
    %c0_100 = arith.constant 0 : index
    %c0_101 = arith.constant 0 : index
    %123 = vector.load %arg9[%c0_100, %c0_101] : memref<1x128xf32, #tpu.memory_space<vmem>>, vector<1x128xf32>
    %124 = arith.addf %122, %123 : vector<1x128xf32>
    %cst_102 = arith.constant 0.000000e+00 : f32
    %125 = vector.broadcast %cst_102 : f32 to vector<1x128xf32>
    %126 = arith.maximumf %124, %125 : vector<1x128xf32>
    %127 = arith.truncf %126 : vector<1x128xf32> to vector<1x128xbf16>
    %c0_103 = arith.constant 0 : index
    %c0_104 = arith.constant 0 : index
    %128 = vector.load %arg10[%c0_103, %c0_104] : memref<128x128xbf16, #tpu.memory_space<vmem>>, vector<128x128xbf16>
    %cst_105 = arith.constant dense<0.000000e+00> : vector<1x128xf32>
    %129 = tpu.matmul %127, %128, %cst_105 {dimension_numbers = #tpu.dot_dimension_numbers<[1], [0], [0], [1], [0, 0, 1, 1], [], []>} : vector<1x128xbf16>, vector<128x128xbf16>, vector<1x128xf32> -> vector<1x128xf32>
    %c0_106 = arith.constant 0 : index
    %c0_107 = arith.constant 0 : index
    %130 = vector.load %arg11[%c0_106, %c0_107] : memref<1x128xf32, #tpu.memory_space<vmem>>, vector<1x128xf32>
    %131 = arith.addf %129, %130 : vector<1x128xf32>
    %c0_108 = arith.constant 0 : index
    %c0_109 = arith.constant 0 : index
    %c0_110 = arith.constant 0 : index
    %132 = vector.load %arg12[%c0_108, %c0_109, %c0_110] : memref<1x1x128xf32, #tpu.memory_space<vmem>>, vector<1x1x128xf32>
    %133 = vector.shape_cast %132 : vector<1x1x128xf32> to vector<1x128xf32>
    %134 = vector.shape_cast %131 : vector<1x128xf32> to vector<1x1x128xf32>
    tpu.vector_store %arg12[%c0_108, %c0_109, %c0_110], %134 {strides = array<i32>} : memref<1x1x128xf32, #tpu.memory_space<vmem>>, vector<1x1x128xf32>,
    return
  }
  func.func @transform_0(%arg0: i32) -> (i32, i32, i32, i32) {
    %c0_i32 = arith.constant 0 : i32
    %c0_i32_0 = arith.constant 0 : i32
    %c0_i32_1 = arith.constant 0 : i32
    %c0_i32_2 = arith.constant 0 : i32
    return %arg0, %c0_i32, %c0_i32_0, %c0_i32_1 : i32, i32, i32, i32
  }
  func.func @transform_1(%arg0: i32) -> (i32, i32, i32) {
    %c0_i32 = arith.constant 0 : i32
    %c0_i32_0 = arith.constant 0 : i32
    %c0_i32_1 = arith.constant 0 : i32
    %c0_i32_2 = arith.constant 0 : i32
    return %c0_i32, %c0_i32_0, %c0_i32_1 : i32, i32, i32
  }
  func.func @transform_2(%arg0: i32) -> (i32, i32, i32) {
    %c0_i32 = arith.constant 0 : i32
    %c0_i32_0 = arith.constant 0 : i32
    %c0_i32_1 = arith.constant 0 : i32
    %c0_i32_2 = arith.constant 0 : i32
    return %c0_i32, %c0_i32_0, %c0_i32_1 : i32, i32, i32
  }
  func.func @transform_3(%arg0: i32) -> (i32, i32) {
    %c0_i32 = arith.constant 0 : i32
    %c0_i32_0 = arith.constant 0 : i32
    %c0_i32_1 = arith.constant 0 : i32
    return %c0_i32, %c0_i32_0 : i32, i32
  }
  func.func @transform_4(%arg0: i32) -> (i32, i32, i32) {
    %c0_i32 = arith.constant 0 : i32
    %c0_i32_0 = arith.constant 0 : i32
    %c0_i32_1 = arith.constant 0 : i32
    %c0_i32_2 = arith.constant 0 : i32
    return %c0_i32, %c0_i32_0, %c0_i32_1 : i32, i32, i32
  }
  func.func @transform_5(%arg0: i32) -> (i32, i32, i32) {
    %c0_i32 = arith.constant 0 : i32
    %c0_i32_0 = arith.constant 0 : i32
    %c0_i32_1 = arith.constant 0 : i32
    %c0_i32_2 = arith.constant 0 : i32
    return %c0_i32, %c0_i32_0, %c0_i32_1 : i32, i32, i32
  }
  func.func @transform_6(%arg0: i32) -> (i32, i32) {
    %c0_i32 = arith.constant 0 : i32
    %c0_i32_0 = arith.constant 0 : i32
    %c0_i32_1 = arith.constant 0 : i32
    return %c0_i32, %c0_i32_0 : i32, i32
  }
  func.func @transform_7(%arg0: i32) -> (i32, i32, i32) {
    %c0_i32 = arith.constant 0 : i32
    %c0_i32_0 = arith.constant 0 : i32
    %c0_i32_1 = arith.constant 0 : i32
    %c0_i32_2 = arith.constant 0 : i32
    return %c0_i32, %c0_i32_0, %c0_i32_1 : i32, i32, i32
  }
  func.func @transform_8(%arg0: i32) -> (i32, i32) {
    %c0_i32 = arith.constant 0 : i32
    %c0_i32_0 = arith.constant 0 : i32
    %c0_i32_1 = arith.constant 0 : i32
    return %c0_i32, %c0_i32_0 : i32, i32
  }
  func.func @transform_9(%arg0: i32) -> (i32, i32) {
    %c0_i32 = arith.constant 0 : i32
    %c0_i32_0 = arith.constant 0 : i32
    %c0_i32_1 = arith.constant 0 : i32
    return %c0_i32, %c0_i32_0 : i32, i32
  }
  func.func @transform_10(%arg0: i32) -> (i32, i32) {
    %c0_i32 = arith.constant 0 : i32
    %c0_i32_0 = arith.constant 0 : i32
    %c0_i32_1 = arith.constant 0 : i32
    return %c0_i32, %c0_i32_0 : i32, i32
  }
  func.func @transform_11(%arg0: i32) -> (i32, i32, i32) {
    %c0_i32 = arith.constant 0 : i32
    %c0_i32_0 = arith.constant 0 : i32
    %c0_i32_1 = arith.constant 0 : i32
    return %arg0, %c0_i32, %c0_i32_0 : i32, i32, i32
  }
}

</mosaic_0001>

<llo_original>
// kernel: cnn_forward.1
$region0: #{cnn_forward.1}
  #allocation0 [shape = 'u32[]', space=smem, size = 0x4, offset = 0x4, fixed_abs, tag = 'smem constant byte address 0x4 - core index']
  #allocation1 [shape = 'u32[144,128]{1,0:T(1,128)}', space=vmem, size = 0x12000, scoped, tag = 'internal scratch']
  %s0 = inlined_call_operand.hbm [shape: f32[2,1,72,72], index: 0, kind: input, shape index: {}]
  %s1 = inlined_call_operand.hbm [shape: bf16[5,17,72], index: 1, kind: input, shape index: {}]
  %s2 = inlined_call_operand.hbm [shape: bf16[5,72,272], index: 2, kind: input, shape index: {}]
  %s3 = inlined_call_operand.vmem [shape: f32[1,272], index: 3, kind: input, shape index: {}]
  %s4 = inlined_call_operand.hbm [shape: bf16[3,8,17], index: 4, kind: input, shape index: {}]
  %s5 = inlined_call_operand.hbm [shape: bf16[3,272,256], index: 5, kind: input, shape index: {}]
  %s6 = inlined_call_operand.vmem [shape: f32[1,256], index: 6, kind: input, shape index: {}]
  %s7 = inlined_call_operand.hbm [shape: bf16[8,256,128], index: 7, kind: input, shape index: {}]
  %s8 = inlined_call_operand.vmem [shape: f32[1,128], index: 8, kind: input, shape index: {}]
  %s9 = inlined_call_operand.hbm [shape: bf16[128,128], index: 9, kind: input, shape index: {}]
  %s10 = inlined_call_operand.vmem [shape: f32[1,128], index: 10, kind: input, shape index: {}]
  %s11 = inlined_call_operand.hbm [shape: f32[2,1,128], index: 11, kind: output, shape index: {}]
  %s12 = sld [smem:[#allocation0]]
  $region105: #{cnn_forward.1} parent=0
    _
  %s14 = ssub.s32 1, %s12
  %s15 = scalar_select 0, %s14, %s12
  $region1: #{cnn_forward.1} parent=0
    #allocation2 [shape = 'u8[73728]{0}', space=vmem, size = 0x12000, scoped, tag = 'input window, operand 0']
    #allocation3 [shape = 's32[2]{0}', space=sflag, size = 0x8, scoped, tag = 'scoped memory for cnn_forward.1']
    #allocation4 [shape = 's32[2]{0}', space=sflag, size = 0x8, scoped, tag = 'scoped memory for cnn_forward.1']
    #allocation5 [shape = 'u8[30720]{0}', space=vmem, size = 0x7800, scoped, tag = 'input window, operand 1, single buffered']
    #allocation6 [shape = 's32[1]{0}', space=sflag, size = 0x4, scoped, tag = 'scoped memory for cnn_forward.1']
    #allocation7 [shape = 'u8[276480]{0}', space=vmem, size = 0x43800, scoped, tag = 'input window, operand 2, single buffered']
    #allocation8 [shape = 'u8[6144]{0}', space=vmem, size = 0x1800, scoped, tag = 'input window, operand 4, single buffered']
    #allocation9 [shape = 's32[1]{0}', space=sflag, size = 0x4, scoped, tag = 'scoped memory for cnn_forward.1']
    #allocation10 [shape = 'u8[417792]{0}', space=vmem, size = 0x66000, scoped, tag = 'input window, operand 5, single buffered']
    #allocation11 [shape = 'u8[524288]{0}', space=vmem, size = 0x80000, scoped, tag = 'input window, operand 7, single buffered']
    #allocation12 [shape = 's32[1]{0}', space=sflag, size = 0x4, scoped, tag = 'scoped memory for cnn_forward.1']
    #allocation13 [shape = 'u8[32768]{0}', space=vmem, size = 0x8000, scoped, tag = 'input window, operand 9, single buffered']
    #allocation14 [shape = 'u8[1024]{0}', space=vmem, size = 0x400, scoped, tag = 'output window, operand 0']
    %16 = vsyncpa [#allocation3], 0
    %s17 = scalar_lea.sflag [#allocation3], 1
    %18 = vsyncpa %s17, 0
    %19 = vsyncpa [#allocation6], 0
    %20 = vsyncpa [#allocation9], 0
    %21 = vsyncpa [#allocation12], 0
    %22 = vsyncpa [#allocation4], 0
    %s23 = scalar_lea.sflag [#allocation4], 1
    %24 = vsyncpa %s23, 0
    loop: start=0, step=1, limit=4
    $region2: #{cnn_forward.1} parent=1 // loop_pre_header
      _
    $region3: #{cnn_forward.1} parent=1 // loop_header
      %s26 = sphi 0, %s30
      %p27 = scmp.ge.s32.totalorder %s26, 4
      %s36 = sphi 0, %s38
      %s39 = sphi 0, %s36
      %s40 = sphi 0, %s39
      %s56 = sphi 0, %s40
      %s60 = sphi 0, %s60
      %s62 = sphi 0, %s60
      %s63 = sphi 0, %s62
      %s77 = sphi 0, %s63
      %s81 = sphi 0, %s81
      %s83 = sphi 0, %s81
      %s84 = sphi 0, %s83
      %s98 = sphi 0, %s84
      %s102 = sphi 0, %s102
      %s104 = sphi 0, %s102
      %s105 = sphi 0, %s104
      %s119 = sphi 0, %s105
      %s123 = sphi 0, %s123
      %s125 = sphi 0, %s123
      %s126 = sphi 0, %s125
      %s140 = sphi 0, %s126
      %s144 = sphi 0, %s144
      %s146 = sphi 0, %s144
      %s147 = sphi 0, %s146
      %s161 = sphi 0, %s147
      %s165 = sphi 0, %s165
      %s167 = sphi 0, %s165
      %s168 = sphi 0, %s167
      %s182 = sphi 0, %s168
      %s186 = sphi 0, %s186
      %s188 = sphi 0, %s186
      %s189 = sphi 0, %s188
      %s203 = sphi 0, %s189
      %s207 = sphi 0, %s207
      %s209 = sphi 0, %s207
      %s210 = sphi 0, %s209
      %s224 = sphi 0, %s210
      %s228 = sphi 0, %s228
      %s230 = sphi 0, %s228
      %s231 = sphi 0, %s230
      %s245 = sphi 0, %s231
      %s249 = sphi 0, %s249
      %s251 = sphi 0, %s249
      %s252 = sphi 0, %s251
      %s266 = sphi 0, %s252
      %s272 = sphi 0, %s274
      %s275 = sphi 0, %s272
      %s276 = sphi 0, %s275
      %s292 = sphi 0, %s276
    $region4: #{cnn_forward.1} parent=1 // loop_header_branch
      %29 = sbr.rel (%p27) target = $region8
    $region5: #{cnn_forward.1} parent=1 // loop_body
      %s31 = ssub.s32 %s26, 1
      %s32 = ssub.s32 %s26, 2
      %s33 = sadd.s32 %s26, 1
      %s34 = ssub.s32 %s26, %s33
      %p35 = scmp.eq.s32.totalorder %s34, 0
      %s37 = sadd.s32 %s36, 1
      %s38 = scalar_select %p35, %s36, %s37
      %p41 = pneg %p35
      %p42 = scmp.eq.s32.totalorder %s26, 1
      %p43 = por %p41, %p42
      %p44 = scmp.ne.s32.totalorder %s36, %s39
      %p45 = scmp.eq.s32.totalorder %s26, 0
      %p46 = por %p44, %p45
      %p47 = scmp.ne.s32.totalorder %s36, %s39
      %p48 = scmp.eq.s32.totalorder %s31, 1
      %p49 = por %p47, %p48
      %p50 = scmp.ne.s32.totalorder %s39, %s40
      %p51 = scmp.eq.s32.totalorder %s31, 0
      %p52 = por %p50, %p51
      %p53 = scmp.ne.s32.totalorder %s39, %s40
      %p54 = scmp.eq.s32.totalorder %s32, 1
      %p55 = por %p53, %p54
      %p57 = scmp.ne.s32.totalorder %s40, %s56
      %p58 = scmp.eq.s32.totalorder %s32, 0
      %p59 = por %p57, %p58
      %s61 = sadd.s32 %s60, 1
      %p64 = scmp.eq.s32.totalorder %s26, 1
      %p65 = scmp.ne.s32.totalorder %s60, %s62
      %p66 = scmp.eq.s32.totalorder %s26, 0
      %p67 = por %p65, %p66
      %p68 = scmp.ne.s32.totalorder %s60, %s62
      %p69 = scmp.eq.s32.totalorder %s31, 1
      %p70 = por %p68, %p69
      %p71 = scmp.ne.s32.totalorder %s62, %s63
      %p72 = scmp.eq.s32.totalorder %s31, 0
      %p73 = por %p71, %p72
      %p74 = scmp.ne.s32.totalorder %s62, %s63
      %p75 = scmp.eq.s32.totalorder %s32, 1
      %p76 = por %p74, %p75
      %p78 = scmp.ne.s32.totalorder %s63, %s77
      %p79 = scmp.eq.s32.totalorder %s32, 0
      %p80 = por %p78, %p79
      %s82 = sadd.s32 %s81, 1
      %p85 = scmp.eq.s32.totalorder %s26, 1
      %p86 = scmp.ne.s32.totalorder %s81, %s83
      %p87 = scmp.eq.s32.totalorder %s26, 0
      %p88 = por %p86, %p87
      %p89 = scmp.ne.s32.totalorder %s81, %s83
      %p90 = scmp.eq.s32.totalorder %s31, 1
      %p91 = por %p89, %p90
      %p92 = scmp.ne.s32.totalorder %s83, %s84
      %p93 = scmp.eq.s32.totalorder %s31, 0
      %p94 = por %p92, %p93
      %p95 = scmp.ne.s32.totalorder %s83, %s84
      %p96 = scmp.eq.s32.totalorder %s32, 1
      %p97 = por %p95, %p96
      %p99 = scmp.ne.s32.totalorder %s84, %s98
      %p100 = scmp.eq.s32.totalorder %s32, 0
      %p101 = por %p99, %p100
      %s103 = sadd.s32 %s102, 1
      %p106 = scmp.eq.s32.totalorder %s26, 1
      %p107 = scmp.ne.s32.totalorder %s102, %s104
      %p108 = scmp.eq.s32.totalorder %s26, 0
      %p109 = por %p107, %p108
      %p110 = scmp.ne.s32.totalorder %s102, %s104
      %p111 = scmp.eq.s32.totalorder %s31, 1
      %p112 = por %p110, %p111
      %p113 = scmp.ne.s32.totalorder %s104, %s105
      %p114 = scmp.eq.s32.totalorder %s31, 0
      %p115 = por %p113, %p114
      %p116 = scmp.ne.s32.totalorder %s104, %s105
      %p117 = scmp.eq.s32.totalorder %s32, 1
      %p118 = por %p116, %p117
      %p120 = scmp.ne.s32.totalorder %s105, %s119
      %p121 = scmp.eq.s32.totalorder %s32, 0
      %p122 = por %p120, %p121
      %s124 = sadd.s32 %s123, 1
      %p127 = scmp.eq.s32.totalorder %s26, 1
      %p128 = scmp.ne.s32.totalorder %s123, %s125
      %p129 = scmp.eq.s32.totalorder %s26, 0
      %p130 = por %p128, %p129
      %p131 = scmp.ne.s32.totalorder %s123, %s125
      %p132 = scmp.eq.s32.totalorder %s31, 1
      %p133 = por %p131, %p132
      %p134 = scmp.ne.s32.totalorder %s125, %s126
      %p135 = scmp.eq.s32.totalorder %s31, 0
      %p136 = por %p134, %p135
      %p137 = scmp.ne.s32.totalorder %s125, %s126
      %p138 = scmp.eq.s32.totalorder %s32, 1
      %p139 = por %p137, %p138
      %p141 = scmp.ne.s32.totalorder %s126, %s140
      %p142 = scmp.eq.s32.totalorder %s32, 0
      %p143 = por %p141, %p142
      %s145 = sadd.s32 %s144, 1
      %p148 = scmp.eq.s32.totalorder %s26, 1
      %p149 = scmp.ne.s32.totalorder %s144, %s146
      %p150 = scmp.eq.s32.totalorder %s26, 0
      %p151 = por %p149, %p150
      %p152 = scmp.ne.s32.totalorder %s144, %s146
      %p153 = scmp.eq.s32.totalorder %s31, 1
      %p154 = por %p152, %p153
      %p155 = scmp.ne.s32.totalorder %s146, %s147
      %p156 = scmp.eq.s32.totalorder %s31, 0
      %p157 = por %p155, %p156
      %p158 = scmp.ne.s32.totalorder %s146, %s147
      %p159 = scmp.eq.s32.totalorder %s32, 1
      %p160 = por %p158, %p159
      %p162 = scmp.ne.s32.totalorder %s147, %s161
      %p163 = scmp.eq.s32.totalorder %s32, 0
      %p164 = por %p162, %p163
      %s166 = sadd.s32 %s165, 1
      %p169 = scmp.eq.s32.totalorder %s26, 1
      %p170 = scmp.ne.s32.totalorder %s165, %s167
      %p171 = scmp.eq.s32.totalorder %s26, 0
      %p172 = por %p170, %p171
      %p173 = scmp.ne.s32.totalorder %s165, %s167
      %p174 = scmp.eq.s32.totalorder %s31, 1
      %p175 = por %p173, %p174
      %p176 = scmp.ne.s32.totalorder %s167, %s168
      %p177 = scmp.eq.s32.totalorder %s31, 0
      %p178 = por %p176, %p177
      %p179 = scmp.ne.s32.totalorder %s167, %s168
      %p180 = scmp.eq.s32.totalorder %s32, 1
      %p181 = por %p179, %p180
      %p183 = scmp.ne.s32.totalorder %s168, %s182
      %p184 = scmp.eq.s32.totalorder %s32, 0
      %p185 = por %p183, %p184
      %s187 = sadd.s32 %s186, 1
      %p190 = scmp.eq.s32.totalorder %s26, 1
      %p191 = scmp.ne.s32.totalorder %s186, %s188
      %p192 = scmp.eq.s32.totalorder %s26, 0
      %p193 = por %p191, %p192
      %p194 = scmp.ne.s32.totalorder %s186, %s188
      %p195 = scmp.eq.s32.totalorder %s31, 1
      %p196 = por %p194, %p195
      %p197 = scmp.ne.s32.totalorder %s188, %s189
      %p198 = scmp.eq.s32.totalorder %s31, 0
      %p199 = por %p197, %p198
      %p200 = scmp.ne.s32.totalorder %s188, %s189
      %p201 = scmp.eq.s32.totalorder %s32, 1
      %p202 = por %p200, %p201
      %p204 = scmp.ne.s32.totalorder %s189, %s203
      %p205 = scmp.eq.s32.totalorder %s32, 0
      %p206 = por %p204, %p205
      %s208 = sadd.s32 %s207, 1
      %p211 = scmp.eq.s32.totalorder %s26, 1
      %p212 = scmp.ne.s32.totalorder %s207, %s209
      %p213 = scmp.eq.s32.totalorder %s26, 0
      %p214 = por %p212, %p213
      %p215 = scmp.ne.s32.totalorder %s207, %s209
      %p216 = scmp.eq.s32.totalorder %s31, 1
      %p217 = por %p215, %p216
      %p218 = scmp.ne.s32.totalorder %s209, %s210
      %p219 = scmp.eq.s32.totalorder %s31, 0
      %p220 = por %p218, %p219
      %p221 = scmp.ne.s32.totalorder %s209, %s210
      %p222 = scmp.eq.s32.totalorder %s32, 1
      %p223 = por %p221, %p222
      %p225 = scmp.ne.s32.totalorder %s210, %s224
      %p226 = scmp.eq.s32.totalorder %s32, 0
      %p227 = por %p225, %p226
      %s229 = sadd.s32 %s228, 1
      %p232 = scmp.eq.s32.totalorder %s26, 1
      %p233 = scmp.ne.s32.totalorder %s228, %s230
      %p234 = scmp.eq.s32.totalorder %s26, 0
      %p235 = por %p233, %p234
      %p236 = scmp.ne.s32.totalorder %s228, %s230
      %p237 = scmp.eq.s32.totalorder %s31, 1
      %p238 = por %p236, %p237
      %p239 = scmp.ne.s32.totalorder %s230, %s231
      %p240 = scmp.eq.s32.totalorder %s31, 0
      %p241 = por %p239, %p240
      %p242 = scmp.ne.s32.totalorder %s230, %s231
      %p243 = scmp.eq.s32.totalorder %s32, 1
      %p244 = por %p242, %p243
      %p246 = scmp.ne.s32.totalorder %s231, %s245
      %p247 = scmp.eq.s32.totalorder %s32, 0
      %p248 = por %p246, %p247
      %s250 = sadd.s32 %s249, 1
      %p253 = scmp.eq.s32.totalorder %s26, 1
      %p254 = scmp.ne.s32.totalorder %s249, %s251
      %p255 = scmp.eq.s32.totalorder %s26, 0
      %p256 = por %p254, %p255
      %p257 = scmp.ne.s32.totalorder %s249, %s251
      %p258 = scmp.eq.s32.totalorder %s31, 1
      %p259 = por %p257, %p258
      %p260 = scmp.ne.s32.totalorder %s251, %s252
      %p261 = scmp.eq.s32.totalorder %s31, 0
      %p262 = por %p260, %p261
      %p263 = scmp.ne.s32.totalorder %s251, %s252
      %p264 = scmp.eq.s32.totalorder %s32, 1
      %p265 = por %p263, %p264
      %p267 = scmp.ne.s32.totalorder %s252, %s266
      %p268 = scmp.eq.s32.totalorder %s32, 0
      %p269 = por %p267, %p268
      %s270 = ssub.s32 %s26, %s33
      %p271 = scmp.eq.s32.totalorder %s270, 0
      %s273 = sadd.s32 %s272, 1
      %s274 = scalar_select %p271, %s272, %s273
      %p277 = pneg %p271
      %p278 = scmp.eq.s32.totalorder %s26, 1
      %p279 = por %p277, %p278
      %p280 = scmp.ne.s32.totalorder %s272, %s275
      %p281 = scmp.eq.s32.totalorder %s26, 0
      %p282 = por %p280, %p281
      %p283 = scmp.ne.s32.totalorder %s272, %s275
      %p284 = scmp.eq.s32.totalorder %s31, 1
      %p285 = por %p283, %p284
      %p286 = scmp.ne.s32.totalorder %s275, %s276
      %p287 = scmp.eq.s32.totalorder %s31, 0
      %p288 = por %p286, %p287
      %p289 = scmp.ne.s32.totalorder %s275, %s276
      %p290 = scmp.eq.s32.totalorder %s32, 1
      %p291 = por %p289, %p290
      %p293 = scmp.ne.s32.totalorder %s276, %s292
      %p294 = scmp.eq.s32.totalorder %s32, 0
      %p295 = por %p293, %p294
      %p296 = scmp.le.s32.totalorder 1, %s26
      %p297 = scmp.lt.s32.totalorder %s26, 3
      %p298 = pnand %p296, %p297
      %p299 = pneg %p298
      // Predicated region
      $region9: #{cnn_forward.1} parent=5 // pred_check
        _
      $region10: #{cnn_forward.1} parent=5 // pred_check_branch
        %301 = sbr.rel (%p298) target = $region12
      $region11: #{cnn_forward.1} parent=5 // pred_region
        %s302 = ssub.s32 %s26, 1
        // Predicated region
        $region13: #{cnn_forward.1} parent=11 // pred_check
          %p303 = pneg %p73
        $region14: #{cnn_forward.1} parent=11 // pred_check_branch
          %305 = sbr.rel (%p303) target = $region16
        $region15: #{cnn_forward.1} parent=11 // pred_region
          %s307 = ssub.s32 960, 960
          %308 = vsyncadd [#allocation6], %s307
          %s309 = sshll.u32 [#allocation5], 4
          %s310 = int_to_ptr.vmem [resolvable:$true] %s309
          %315 = dma.hbm_to_vmem [thread:$0]  %s1, 960, %s310, [#allocation6], 64, 64, 4
        $region16: #{cnn_forward.1} parent=11 // pred_fallthru
          _
        // Predicated region
        $region17: #{cnn_forward.1} parent=11 // pred_check
          %p316 = pneg %p94
        $region18: #{cnn_forward.1} parent=11 // pred_check_branch
          %318 = sbr.rel (%p316) target = $region20
        $region19: #{cnn_forward.1} parent=11 // pred_region
          %s320 = ssub.s32 8640, 8640
          %321 = vsyncadd [#allocation6], %s320
          %s322 = sshll.u32 [#allocation7], 4
          %s323 = int_to_ptr.vmem [resolvable:$true] %s322
          %328 = dma.hbm_to_vmem [thread:$0]  %s2, 8640, %s323, [#allocation6], 192, 192, 12
        $region20: #{cnn_forward.1} parent=11 // pred_fallthru
          _
        // Predicated region
        $region21: #{cnn_forward.1} parent=11 // pred_check
          %p329 = pneg %p115
        $region22: #{cnn_forward.1} parent=11 // pred_check_branch
          %331 = sbr.rel (%p329) target = $region24
        $region23: #{cnn_forward.1} parent=11 // pred_region
          _
        $region24: #{cnn_forward.1} parent=11 // pred_fallthru
          _
        // Predicated region
        $region25: #{cnn_forward.1} parent=11 // pred_check
          %p332 = pneg %p136
        $region26: #{cnn_forward.1} parent=11 // pred_check_branch
          %334 = sbr.rel (%p332) target = $region28
        $region27: #{cnn_forward.1} parent=11 // pred_region
          %s336 = ssub.s32 192, 192
          %337 = vsyncadd [#allocation9], %s336
          %s338 = sshll.u32 [#allocation8], 4
          %s339 = int_to_ptr.vmem [resolvable:$true] %s338
          %344 = dma.hbm_to_vmem [thread:$0]  %s4, 192, %s339, [#allocation9], 64, 64, 4
        $region28: #{cnn_forward.1} parent=11 // pred_fallthru
          _
        // Predicated region
        $region29: #{cnn_forward.1} parent=11 // pred_check
          %p345 = pneg %p157
        $region30: #{cnn_forward.1} parent=11 // pred_check_branch
          %347 = sbr.rel (%p345) target = $region32
        $region31: #{cnn_forward.1} parent=11 // pred_region
          %s349 = ssub.s32 13056, 13056
          %350 = vsyncadd [#allocation9], %s349
          %s351 = sshll.u32 [#allocation10], 4
          %s352 = int_to_ptr.vmem [resolvable:$true] %s351
          %357 = dma.hbm_to_vmem [thread:$0]  %s5, 13056, %s352, [#allocation9], 128, 128, 8
        $region32: #{cnn_forward.1} parent=11 // pred_fallthru
          _
        // Predicated region
        $region33: #{cnn_forward.1} parent=11 // pred_check
          %p358 = pneg %p178
        $region34: #{cnn_forward.1} parent=11 // pred_check_branch
          %360 = sbr.rel (%p358) target = $region36
        $region35: #{cnn_forward.1} parent=11 // pred_region
          _
        $region36: #{cnn_forward.1} parent=11 // pred_fallthru
          _
        // Predicated region
        $region37: #{cnn_forward.1} parent=11 // pred_check
          %p361 = pneg %p199
        $region38: #{cnn_forward.1} parent=11 // pred_check_branch
          %363 = sbr.rel (%p361) target = $region40
        $region39: #{cnn_forward.1} parent=11 // pred_region
          %s365 = ssub.s32 16384, 16384
          %366 = vsyncadd [#allocation12], %s365
          %s367 = sshll.u32 [#allocation11], 4
          %s368 = int_to_ptr.vmem [resolvable:$true] %s367
          %373 = dma.hbm_to_vmem [thread:$0]  %s7, 16384, %s368, [#allocation12], 64, 64, 4
        $region40: #{cnn_forward.1} parent=11 // pred_fallthru
          _
        // Predicated region
        $region41: #{cnn_forward.1} parent=11 // pred_check
          %p374 = pneg %p220
        $region42: #{cnn_forward.1} parent=11 // pred_check_branch
          %376 = sbr.rel (%p374) target = $region44
        $region43: #{cnn_forward.1} parent=11 // pred_region
          _
        $region44: #{cnn_forward.1} parent=11 // pred_fallthru
          _
        // Predicated region
        $region45: #{cnn_forward.1} parent=11 // pred_check
          %p377 = pneg %p241
        $region46: #{cnn_forward.1} parent=11 // pred_check_branch
          %379 = sbr.rel (%p377) target = $region48
        $region47: #{cnn_forward.1} parent=11 // pred_region
          %s381 = ssub.s32 1024, 1024
          %382 = vsyncadd [#allocation12], %s381
          %s383 = sshll.u32 [#allocation13], 4
          %s384 = int_to_ptr.vmem [resolvable:$true] %s383
          %389 = dma.hbm_to_vmem [thread:$0]  %s9, 1024, %s384, [#allocation12], 64, 64, 4
        $region48: #{cnn_forward.1} parent=11 // pred_fallthru
          _
        // Predicated region
        $region49: #{cnn_forward.1} parent=11 // pred_check
          %p390 = pneg %p262
        $region50: #{cnn_forward.1} parent=11 // pred_check_branch
          %392 = sbr.rel (%p390) target = $region52
        $region51: #{cnn_forward.1} parent=11 // pred_region
          _
        $region52: #{cnn_forward.1} parent=11 // pred_fallthru
          _
      $region12: #{cnn_forward.1} parent=5 // pred_fallthru
        _
      %p393 = scmp.lt.s32.totalorder %s26, 2
      // Predicated region
      $region53: #{cnn_forward.1} parent=5 // pred_check
        %p394 = pneg %p393
      $region54: #{cnn_forward.1} parent=5 // pred_check_branch
        %396 = sbr.rel (%p394) target = $region56
      $region55: #{cnn_forward.1} parent=5 // pred_region
        // Predicated region
        $region57: #{cnn_forward.1} parent=55 // pred_check
          %p397 = pneg %p46
        $region58: #{cnn_forward.1} parent=55 // pred_check_branch
          %399 = sbr.rel (%p397) target = $region60
        $region59: #{cnn_forward.1} parent=55 // pred_region
          %s400 = sand.u32 %s36, 1
          %s401 = scalar_lea.sflag [#allocation3], %s400
          %s402 = sand.u32 %s36, 1
          %s403 = smul.addr %s402, 72
          %s404 = scalar_lea.vmem [#allocation2], %s403
          %s406 = ssub.s32 1152, 1152
          %407 = vsyncadd %s401, %s406
          %s408 = smul.addr %s26, 9
          %s409 = smul.addr %s408, 128
          %s410 = scalar_lea.hbm %s0, %s409
          %s411 = sshll.u32 %s404, 4
          %s412 = int_to_ptr.vmem [resolvable:$true] %s411
          %417 = dma.hbm_to_vmem [thread:$0]  %s410, 1152, %s412, %s401, 128, 128, 8
        $region60: #{cnn_forward.1} parent=55 // pred_fallthru
          _
      $region56: #{cnn_forward.1} parent=5 // pred_fallthru
        _
      %p418 = scmp.le.s32.totalorder 1, %s26
      %p419 = scmp.lt.s32.totalorder %s26, 3
      %p420 = pnand %p418, %p419
      %p421 = pneg %p420
      // Predicated region
      $region61: #{cnn_forward.1} parent=5 // pred_check
        _
      $region62: #{cnn_forward.1} parent=5 // pred_check_branch
        %423 = sbr.rel (%p420) target = $region64
      $region63: #{cnn_forward.1} parent=5 // pred_region
        %s424 = ssub.s32 %s26, 1
        %s425 = sand.u32 %s39, 1
        %s426 = scalar_lea.sflag [#allocation3], %s425
        %s427 = sand.u32 %s39, 1
        %s428 = smul.addr %s427, 72
        %s429 = scalar_lea.vmem [#allocation2], %s428
        // Predicated region
        $region65: #{cnn_forward.1} parent=63 // pred_check
          %p430 = pneg %p52
        $region66: #{cnn_forward.1} parent=63 // pred_check_branch
          %432 = sbr.rel (%p430) target = $region68
        $region67: #{cnn_forward.1} parent=63 // pred_region
          %433 = dma.done %s426, 1152
        $region68: #{cnn_forward.1} parent=63 // pred_fallthru
          _
        // Predicated region
        $region69: #{cnn_forward.1} parent=63 // pred_check
          %p434 = pneg %p73
        $region70: #{cnn_forward.1} parent=63 // pred_check_branch
          %436 = sbr.rel (%p434) target = $region72
        $region71: #{cnn_forward.1} parent=63 // pred_region
          %437 = dma.done [#allocation6], 960
        $region72: #{cnn_forward.1} parent=63 // pred_fallthru
          _
        // Predicated region
        $region73: #{cnn_forward.1} parent=63 // pred_check
          %p438 = pneg %p94
        $region74: #{cnn_forward.1} parent=63 // pred_check_branch
          %440 = sbr.rel (%p438) target = $region76
        $region75: #{cnn_forward.1} parent=63 // pred_region
          %441 = dma.done [#allocation6], 8640
        $region76: #{cnn_forward.1} parent=63 // pred_fallthru
          _
        // Predicated region
        $region77: #{cnn_forward.1} parent=63 // pred_check
          %p442 = pneg %p136
        $region78: #{cnn_forward.1} parent=63 // pred_check_branch
          %444 = sbr.rel (%p442) target = $region80
        $region79: #{cnn_forward.1} parent=63 // pred_region
          %445 = dma.done [#allocation9], 192
        $region80: #{cnn_forward.1} parent=63 // pred_fallthru
          _
        // Predicated region
        $region81: #{cnn_forward.1} parent=63 // pred_check
          %p446 = pneg %p157
        $region82: #{cnn_forward.1} parent=63 // pred_check_branch
          %448 = sbr.rel (%p446) target = $region84
        $region83: #{cnn_forward.1} parent=63 // pred_region
          %449 = dma.done [#allocation9], 13056
        $region84: #{cnn_forward.1} parent=63 // pred_fallthru
          _
        // Predicated region
        $region85: #{cnn_forward.1} parent=63 // pred_check
          %p450 = pneg %p199
        $region86: #{cnn_forward.1} parent=63 // pred_check_branch
          %452 = sbr.rel (%p450) target = $region88
        $region87: #{cnn_forward.1} parent=63 // pred_region
          %453 = dma.done [#allocation12], 16384
        $region88: #{cnn_forward.1} parent=63 // pred_fallthru
          _
        // Predicated region
        $region89: #{cnn_forward.1} parent=63 // pred_check
          %p454 = pneg %p241
        $region90: #{cnn_forward.1} parent=63 // pred_check_branch
          %456 = sbr.rel (%p454) target = $region92
        $region91: #{cnn_forward.1} parent=63 // pred_region
          %457 = dma.done [#allocation12], 1024
        $region92: #{cnn_forward.1} parent=63 // pred_fallthru
          _
        %s458 = sand.u32 %s39, 1
        %s459 = scalar_lea.sflag [#allocation3], %s458
        %s460 = sand.u32 %s39, 1
        %s461 = smul.addr %s460, 72
        %s462 = scalar_lea.vmem [#allocation2], %s461
        %p463 = pneg %p52
        %p464 = pneg %p49
        %p465 = pneg %p73
        %p466 = pneg %p70
        %p467 = pneg %p94
        %p468 = pneg %p91
        %p469 = pneg %p115
        %p470 = pneg %p112
        %p471 = pneg %p136
        %p472 = pneg %p133
        %p473 = pneg %p157
        %p474 = pneg %p154
        %p475 = pneg %p178
        %p476 = pneg %p175
        %p477 = pneg %p199
        %p478 = pneg %p196
        %p479 = pneg %p220
        %p480 = pneg %p217
        %p481 = pneg %p241
        %p482 = pneg %p238
        %p483 = pneg %p262
        %p484 = pneg %p259
        %p485 = pneg %p288
        %p486 = pneg %p285
        %s487 = sand.u32 %s275, 1
        %s488 = scalar_lea.sflag [#allocation4], %s487
        %s489 = sand.u32 %s275, 1
        %s490 = scalar_lea.vmem [#allocation14], %s489
        %v492 = vld [vmem:[%s429] sm:$0xff]
        %v493 = vld [vmem:[%s429 + $0x8] sm:$0xff]
        %v494 = vld [vmem:[%s429 + $0x10] sm:$0xff]
        %v495 = vld [vmem:[%s429 + $0x18] sm:$0xff]
        %v496 = vld [vmem:[%s429 + $0x20] sm:$0xff]
        %v497 = vld [vmem:[%s429 + $0x28] sm:$0xff]
        %v498 = vld [vmem:[%s429 + $0x30] sm:$0xff]
        %v499 = vld [vmem:[%s429 + $0x38] sm:$0xff]
        %v500 = vld [vmem:[%s429 + $0x40] sm:$0xff]
        %v501 = vpack.c.bf16 %v493, %v492
        %v502 = vpack.c.bf16 %v495, %v494
        %v503 = vpack.c.bf16 %v497, %v496
        %v504 = vpack.c.bf16 %v499, %v498
        %v505 = vpack.c.bf16 %v500, %v500
        %v506 = vld [vmem:[#allocation5] sm:$0xf]
        %v507 = vld [vmem:[#allocation5 + $0x4] sm:$0xf]
        %v508 = vld [vmem:[#allocation5 + $0x8] sm:$0x1]
        %v512 = vunpack.c.l.b16 %v506
        %v513 = vunpack.c.l.b16 %v507
        %v514 = vunpack.c.l.b16 %v508
        %v515 = vpack.c.b16 %v513, %v512
        %v516 = vpack.c.b16 %v514, %v514
        %vm517 = vcmask 588800
        %v519 = vsel %vm517, %v515, 0
        %v522 = vsel %vm517, %v516, 0
        %vm524 = vcmask 1043456
        %v526 = vsel %vm524, %v505, 0
        %528 = vmatprep.subr.bf16.mxu0 0
        %529 = vmatpush1.bf16.msra.mxu0 %v501
        %530 = vmatprep.subr.bf16.mxu0 0
        %531 = vmatpush1.bf16.msra.mxu0 %v502
        %532 = vmatprep.subr.bf16.mxu0 0
        %533 = vmatpush1.bf16.msra.mxu0 %v503
        %534 = vmatprep.subr.bf16.mxu0 0
        %535 = vmatpush1.bf16.msra.mxu0 %v504
        %536 = vmatprep.subr.bf16.mxu0 0
        %537 = vmatpush1.bf16.msra.mxu0 %v526
        %538 = vmatprep.subr.bf16.mxu0 0
        %539 = vmatpush1.bf16.msra.mxu0 0
        %540 = vmatprep.subr.bf16.mxu0 0
        %541 = vmatpush1.bf16.msra.mxu0 0
        %542 = vmatprep.subr.bf16.mxu0 0
        %543 = vmatpush1.bf16.msra.mxu0 0
        %544 = vmatprep.subr.bf16.mxu0 0
        %545 = vmatpush1.bf16.msra.mxu0 0
        %546 = vmatprep.subr.bf16.mxu0 0
        %547 = vmatpush1.bf16.msra.mxu0 0
        %548 = vmatprep.subr.bf16.mxu0 0
        %549 = vmatpush1.bf16.msra.mxu0 0
        %550 = vmatprep.subr.bf16.mxu0 0
        %551 = vmatpush1.bf16.msra.mxu0 0
        %552 = vmatprep.subr.bf16.mxu0 0
        %553 = vmatpush1.bf16.msra.mxu0 0
        %554 = vmatprep.subr.bf16.mxu0 0
        %555 = vmatpush1.bf16.msra.mxu0 0
        %556 = vmatprep.subr.bf16.mxu0 0
        %557 = vmatpush1.bf16.msra.mxu0 0
        %558 = vmatprep.subr.bf16.mxu0 0
        %559 = vmatpush1.bf16.msra.mxu0 0
        %560 = vmatprep.mubr.bf16.mxu0 0
        %561 = vmatmul.mubr.bf16.gmra.mrb[0].mxu0 %v519
        %v562 = vpop.f32.mrb[0].mxu0
        %v563 = vadd.f32 0.0, %v562
        %v564 = vpop.f32.mrb[0].mxu0
        %v565 = vpop.f32.mrb[0].mxu0
        %v566 = vadd.f32 0.0, %v565
        %v567 = vpop.f32.mrb[0].mxu0
        %568 = vmatprep.mubr.bf16.mxu0 0
        %569 = vmatmul.mubr.bf16.gmra.mrb[0].mxu0 %v522
        %v570 = vpop.f32.mrb[0].mxu0
        %v571 = vadd.f32 0.0, %v570
        %v572 = vpop.f32.mrb[0].mxu0
        %v573 = vpop.f32.mrb[0].mxu0
        %v574 = vpop.f32.mrb[0].mxu0
        %575 = vdwg.mxu0
        %v576 = vpack.c.bf16 %v566, %v563
        %v577 = vpack.c.bf16 %v571, %v571
        %v578 = vld [vmem:[#allocation7] sm:$0xff]
        %v579 = vld [vmem:[#allocation7 + $0x8] sm:$0xf]
        %v580 = vld [vmem:[#allocation7 + $0xc] sm:$0xff]
        %v581 = vld [vmem:[#allocation7 + $0x14] sm:$0xf]
        %v582 = vld [vmem:[#allocation7 + $0x18] sm:$0xff]
        %v583 = vld [vmem:[#allocation7 + $0x20] sm:$0xf]
        %v584 = vld [vmem:[#allocation7 + $0x24] sm:$0xff]
        %v585 = vld [vmem:[#allocation7 + $0x2c] sm:$0xf]
        %v586 = vld [vmem:[#allocation7 + $0x30] sm:$0xff]
        %v587 = vld [vmem:[#allocation7 + $0x38] sm:$0xf]
        %v588 = vld [vmem:[#allocation7 + $0x3c] sm:$0xff]
        %v589 = vld [vmem:[#allocation7 + $0x44] sm:$0xf]
        %v590 = vld [vmem:[#allocation7 + $0x48] sm:$0xff]
        %v591 = vld [vmem:[#allocation7 + $0x50] sm:$0xf]
        %v592 = vld [vmem:[#allocation7 + $0x54] sm:$0xff]
        %v593 = vld [vmem:[#allocation7 + $0x5c] sm:$0xf]
        %v594 = vld [vmem:[#allocation7 + $0x60] sm:$0xff]
        %v595 = vld [vmem:[#allocation7 + $0x68] sm:$0xf]
        %s596 = scalar_lea.vmem [#allocation5], 12
        %v597 = vld [vmem:[%s596] sm:$0xf]
        %v598 = vld [vmem:[%s596 + $0x4] sm:$0xf]
        %v599 = vld [vmem:[%s596 + $0x8] sm:$0x1]
        %v603 = vunpack.c.l.b16 %v597
        %v604 = vunpack.c.l.b16 %v598
        %v605 = vunpack.c.l.b16 %v599
        %v606 = vpack.c.b16 %v604, %v603
        %v607 = vpack.c.b16 %v605, %v605
        %v609 = vsel %vm517, %v606, 0
        %v612 = vsel %vm517, %v607, 0
        %614 = vmatprep.subr.bf16.mxu0 0
        %615 = vmatpush1.bf16.msra.mxu0 %v501
        %616 = vmatprep.subr.bf16.mxu0 0
        %617 = vmatpush1.bf16.msra.mxu0 %v502
        %618 = vmatprep.subr.bf16.mxu0 0
        %619 = vmatpush1.bf16.msra.mxu0 %v503
        %620 = vmatprep.subr.bf16.mxu0 0
        %621 = vmatpush1.bf16.msra.mxu0 %v504
        %622 = vmatprep.subr.bf16.mxu0 0
        %623 = vmatpush1.bf16.msra.mxu0 %v526
        %624 = vmatprep.subr.bf16.mxu0 0
        %625 = vmatpush1.bf16.msra.mxu0 0
        %626 = vmatprep.subr.bf16.mxu0 0
        %627 = vmatpush1.bf16.msra.mxu0 0
        %628 = vmatprep.subr.bf16.mxu0 0
        %629 = vmatpush1.bf16.msra.mxu0 0
        %630 = vmatprep.subr.bf16.mxu0 0
        %631 = vmatpush1.bf16.msra.mxu0 0
        %632 = vmatprep.subr.bf16.mxu0 0
        %633 = vmatpush1.bf16.msra.mxu0 0
        %634 = vmatprep.subr.bf16.mxu0 0
        %635 = vmatpush1.bf16.msra.mxu0 0
        %636 = vmatprep.subr.bf16.mxu0 0
        %637 = vmatpush1.bf16.msra.mxu0 0
        %638 = vmatprep.subr.bf16.mxu0 0
        %639 = vmatpush1.bf16.msra.mxu0 0
        %640 = vmatprep.subr.bf16.mxu0 0
        %641 = vmatpush1.bf16.msra.mxu0 0
        %642 = vmatprep.subr.bf16.mxu0 0
        %643 = vmatpush1.bf16.msra.mxu0 0
        %644 = vmatprep.subr.bf16.mxu0 0
        %645 = vmatpush1.bf16.msra.mxu0 0
        %646 = vmatprep.mubr.bf16.mxu0 0
        %647 = vmatmul.mubr.bf16.gmra.mrb[0].mxu0 %v609
        %v648 = vpop.f32.mrb[0].mxu0
        %v649 = vadd.f32 0.0, %v648
        %v650 = vpop.f32.mrb[0].mxu0
        %v651 = vpop.f32.mrb[0].mxu0
        %v652 = vadd.f32 0.0, %v651
        %v653 = vpop.f32.mrb[0].mxu0
        %654 = vmatprep.mubr.bf16.mxu0 0
        %655 = vmatmul.mubr.bf16.gmra.mrb[0].mxu0 %v612
        %v656 = vpop.f32.mrb[0].mxu0
        %v657 = vadd.f32 0.0, %v656
        %v658 = vpop.f32.mrb[0].mxu0
        %v659 = vpop.f32.mrb[0].mxu0
        %v660 = vpop.f32.mrb[0].mxu0
        %661 = vdwg.mxu0
        %v662 = vpack.c.bf16 %v652, %v649
        %v663 = vpack.c.bf16 %v657, %v657
        %s664 = scalar_lea.vmem [#allocation7], 108
        %v665 = vld [vmem:[%s664] sm:$0xff]
        %v666 = vld [vmem:[%s664 + $0x8] sm:$0xf]
        %v667 = vld [vmem:[%s664 + $0xc] sm:$0xff]
        %v668 = vld [vmem:[%s664 + $0x14] sm:$0xf]
        %v669 = vld [vmem:[%s664 + $0x18] sm:$0xff]
        %v670 = vld [vmem:[%s664 + $0x20] sm:$0xf]
        %v671 = vld [vmem:[%s664 + $0x24] sm:$0xff]
        %v672 = vld [vmem:[%s664 + $0x2c] sm:$0xf]
        %v673 = vld [vmem:[%s664 + $0x30] sm:$0xff]
        %v674 = vld [vmem:[%s664 + $0x38] sm:$0xf]
        %v675 = vld [vmem:[%s664 + $0x3c] sm:$0xff]
        %v676 = vld [vmem:[%s664 + $0x44] sm:$0xf]
        %v677 = vld [vmem:[%s664 + $0x48] sm:$0xff]
        %v678 = vld [vmem:[%s664 + $0x50] sm:$0xf]
        %v679 = vld [vmem:[%s664 + $0x54] sm:$0xff]
        %v680 = vld [vmem:[%s664 + $0x5c] sm:$0xf]
        %v681 = vld [vmem:[%s664 + $0x60] sm:$0xff]
        %v682 = vld [vmem:[%s664 + $0x68] sm:$0xf]
        %v701 = vunpack.c.l.b16 %v665
        %v702 = vunpack.c.h.b16 %v665
        %v703 = vunpack.c.l.b16 %v666
        %v704 = vunpack.c.l.b16 %v667
        %v705 = vunpack.c.h.b16 %v667
        %v706 = vunpack.c.l.b16 %v668
        %v707 = vunpack.c.l.b16 %v669
        %v708 = vunpack.c.h.b16 %v669
        %v709 = vunpack.c.l.b16 %v670
        %v710 = vunpack.c.l.b16 %v671
        %v711 = vunpack.c.h.b16 %v671
        %v712 = vunpack.c.l.b16 %v672
        %v713 = vunpack.c.l.b16 %v673
        %v714 = vunpack.c.h.b16 %v673
        %v715 = vunpack.c.l.b16 %v674
        %v716 = vunpack.c.l.b16 %v675
        %v717 = vunpack.c.h.b16 %v675
        %v718 = vunpack.c.l.b16 %v676
        %v719 = vunpack.c.l.b16 %v677
        %v720 = vunpack.c.h.b16 %v677
        %v721 = vunpack.c.l.b16 %v678
        %v722 = vunpack.c.l.b16 %v679
        %v723 = vunpack.c.h.b16 %v679
        %v724 = vunpack.c.l.b16 %v680
        %v725 = vunpack.c.l.b16 %v681
        %v726 = vunpack.c.h.b16 %v681
        %v727 = vunpack.c.l.b16 %v682
        %v728 = vpack.c.b16 %v704, %v701
        %v729 = vpack.c.b16 %v705, %v702
        %v730 = vpack.c.b16 %v706, %v703
        %v731 = vpack.c.b16 %v710, %v707
        %v732 = vpack.c.b16 %v711, %v708
        %v733 = vpack.c.b16 %v712, %v709
        %v734 = vpack.c.b16 %v716, %v713
        %v735 = vpack.c.b16 %v717, %v714
        %v736 = vpack.c.b16 %v718, %v715
        %v737 = vpack.c.b16 %v722, %v719
        %v738 = vpack.c.b16 %v723, %v720
        %v739 = vpack.c.b16 %v724, %v721
        %v740 = vpack.c.b16 %v725, %v725
        %v741 = vpack.c.b16 %v726, %v726
        %v742 = vpack.c.b16 %v727, %v727
        %v756 = vsel %vm517, %v662, 0
        %v759 = vsel %vm517, %v663, 0
        %v762 = vsel %vm524, %v740, 0
        %v765 = vsel %vm524, %v741, 0
        %v768 = vsel %vm524, %v742, 0
        %770 = vmatprep.subr.bf16.mxu0 %v729
        %771 = vmatpush1.bf16.msra.mxu0 %v728
        %772 = vmatprep.subr.bf16.mxu0 %v732
        %773 = vmatpush1.bf16.msra.mxu0 %v731
        %774 = vmatprep.subr.bf16.mxu0 %v735
        %775 = vmatpush1.bf16.msra.mxu0 %v734
        %776 = vmatprep.subr.bf16.mxu0 %v738
        %777 = vmatpush1.bf16.msra.mxu0 %v737
        %778 = vmatprep.subr.bf16.mxu0 %v765
        %779 = vmatpush1.bf16.msra.mxu0 %v762
        %780 = vmatprep.subr.bf16.mxu0 0
        %781 = vmatpush1.bf16.msra.mxu0 0
        %782 = vmatprep.subr.bf16.mxu0 0
        %783 = vmatpush1.bf16.msra.mxu0 0
        %784 = vmatprep.subr.bf16.mxu0 0
        %785 = vmatpush1.bf16.msra.mxu0 0
        %786 = vmatprep.subr.bf16.mxu0 0
        %787 = vmatpush1.bf16.msra.mxu0 0
        %788 = vmatprep.subr.bf16.mxu0 0
        %789 = vmatpush1.bf16.msra.mxu0 0
        %790 = vmatprep.subr.bf16.mxu0 0
        %791 = vmatpush1.bf16.msra.mxu0 0
        %792 = vmatprep.subr.bf16.mxu0 0
        %793 = vmatpush1.bf16.msra.mxu0 0
        %794 = vmatprep.subr.bf16.mxu0 0
        %795 = vmatpush1.bf16.msra.mxu0 0
        %796 = vmatprep.subr.bf16.mxu0 0
        %797 = vmatpush1.bf16.msra.mxu0 0
        %798 = vmatprep.subr.bf16.mxu0 0
        %799 = vmatpush1.bf16.msra.mxu0 0
        %800 = vmatprep.subr.bf16.mxu0 0
        %801 = vmatpush1.bf16.msra.mxu0 0
        %802 = vmatprep.mubr.bf16.mxu0 0
        %803 = vmatmul.mubr.bf16.gmra.mrb[0].mxu0 %v756
        %v804 = vpop.f32.mrb[0].mxu0
        %v805 = vadd.f32 0.0, %v804
        %v806 = vpop.f32.mrb[0].mxu0
        %v807 = vadd.f32 0.0, %v806
        %v808 = vpop.f32.mrb[0].mxu0
        %v809 = vadd.f32 0.0, %v808
        %v810 = vpop.f32.mrb[0].mxu0
        %v811 = vadd.f32 0.0, %v810
        %812 = vmatprep.mubr.bf16.mxu0 0
        %813 = vmatmul.mubr.bf16.gmra.mrb[0].mxu0 %v759
        %v814 = vpop.f32.mrb[0].mxu0
        %v815 = vadd.f32 0.0, %v814
        %v816 = vpop.f32.mrb[0].mxu0
        %v817 = vadd.f32 0.0, %v816
        %v818 = vpop.f32.mrb[0].mxu0
        %v819 = vpop.f32.mrb[0].mxu0
        %820 = vdwg.mxu0
        %821 = vmatprep.subr.bf16.mxu0 0
        %822 = vmatpush1.bf16.msra.mxu0 %v730
        %823 = vmatprep.subr.bf16.mxu0 0
        %824 = vmatpush1.bf16.msra.mxu0 %v733
        %825 = vmatprep.subr.bf16.mxu0 0
        %826 = vmatpush1.bf16.msra.mxu0 %v736
        %827 = vmatprep.subr.bf16.mxu0 0
        %828 = vmatpush1.bf16.msra.mxu0 %v739
        %829 = vmatprep.subr.bf16.mxu0 0
        %830 = vmatpush1.bf16.msra.mxu0 %v768
        %831 = vmatprep.subr.bf16.mxu0 0
        %832 = vmatpush1.bf16.msra.mxu0 0
        %833 = vmatprep.subr.bf16.mxu0 0
        %834 = vmatpush1.bf16.msra.mxu0 0
        %835 = vmatprep.subr.bf16.mxu0 0
        %836 = vmatpush1.bf16.msra.mxu0 0
        %837 = vmatprep.subr.bf16.mxu0 0
        %838 = vmatpush1.bf16.msra.mxu0 0
        %839 = vmatprep.subr.bf16.mxu0 0
        %840 = vmatpush1.bf16.msra.mxu0 0
        %841 = vmatprep.subr.bf16.mxu0 0
        %842 = vmatpush1.bf16.msra.mxu0 0
        %843 = vmatprep.subr.bf16.mxu0 0
        %844 = vmatpush1.bf16.msra.mxu0 0
        %845 = vmatprep.subr.bf16.mxu0 0
        %846 = vmatpush1.bf16.msra.mxu0 0
        %847 = vmatprep.subr.bf16.mxu0 0
        %848 = vmatpush1.bf16.msra.mxu0 0
        %849 = vmatprep.subr.bf16.mxu0 0
        %850 = vmatpush1.bf16.msra.mxu0 0
        %851 = vmatprep.subr.bf16.mxu0 0
        %852 = vmatpush1.bf16.msra.mxu0 0
        %853 = vmatprep.mubr.bf16.mxu0 0
        %854 = vmatmul.mubr.bf16.gmra.mrb[0].mxu0 %v756
        %v855 = vpop.f32.mrb[0].mxu0
        %v856 = vadd.f32 0.0, %v855
        %v857 = vpop.f32.mrb[0].mxu0
        %v858 = vpop.f32.mrb[0].mxu0
        %v859 = vadd.f32 0.0, %v858
        %v860 = vpop.f32.mrb[0].mxu0
        %861 = vmatprep.mubr.bf16.mxu0 0
        %862 = vmatmul.mubr.bf16.gmra.mrb[0].mxu0 %v759
        %v863 = vpop.f32.mrb[0].mxu0
        %v864 = vadd.f32 0.0, %v863
        %v865 = vpop.f32.mrb[0].mxu0
        %v866 = vpop.f32.mrb[0].mxu0
        %v867 = vpop.f32.mrb[0].mxu0
        %868 = vdwg.mxu0
        %v887 = vunpack.c.l.b16 %v578
        %v888 = vunpack.c.h.b16 %v578
        %v889 = vunpack.c.l.b16 %v579
        %v890 = vunpack.c.l.b16 %v580
        %v891 = vunpack.c.h.b16 %v580
        %v892 = vunpack.c.l.b16 %v581
        %v893 = vunpack.c.l.b16 %v582
        %v894 = vunpack.c.h.b16 %v582
        %v895 = vunpack.c.l.b16 %v583
        %v896 = vunpack.c.l.b16 %v584
        %v897 = vunpack.c.h.b16 %v584
        %v898 = vunpack.c.l.b16 %v585
        %v899 = vunpack.c.l.b16 %v586
        %v900 = vunpack.c.h.b16 %v586
        %v901 = vunpack.c.l.b16 %v587
        %v902 = vunpack.c.l.b16 %v588
        %v903 = vunpack.c.h.b16 %v588
        %v904 = vunpack.c.l.b16 %v589
        %v905 = vunpack.c.l.b16 %v590
        %v906 = vunpack.c.h.b16 %v590
        %v907 = vunpack.c.l.b16 %v591
        %v908 = vunpack.c.l.b16 %v592
        %v909 = vunpack.c.h.b16 %v592
        %v910 = vunpack.c.l.b16 %v593
        %v911 = vunpack.c.l.b16 %v594
        %v912 = vunpack.c.h.b16 %v594
        %v913 = vunpack.c.l.b16 %v595
        %v914 = vpack.c.b16 %v890, %v887
        %v915 = vpack.c.b16 %v891, %v888
        %v916 = vpack.c.b16 %v892, %v889
        %v917 = vpack.c.b16 %v896, %v893
        %v918 = vpack.c.b16 %v897, %v894
        %v919 = vpack.c.b16 %v898, %v895
        %v920 = vpack.c.b16 %v902, %v899
        %v921 = vpack.c.b16 %v903, %v900
        %v922 = vpack.c.b16 %v904, %v901
        %v923 = vpack.c.b16 %v908, %v905
        %v924 = vpack.c.b16 %v909, %v906
        %v925 = vpack.c.b16 %v910, %v907
        %v926 = vpack.c.b16 %v911, %v911
        %v927 = vpack.c.b16 %v912, %v912
        %v928 = vpack.c.b16 %v913, %v913
        %v942 = vsel %vm517, %v576, 0
        %v945 = vsel %vm517, %v577, 0
        %v948 = vsel %vm524, %v926, 0
        %v951 = vsel %vm524, %v927, 0
        %v954 = vsel %vm524, %v928, 0
        %956 = vmatprep.subr.bf16.mxu0 %v915
        %957 = vmatpush1.bf16.msra.mxu0 %v914
        %958 = vmatprep.subr.bf16.mxu0 %v918
        %959 = vmatpush1.bf16.msra.mxu0 %v917
        %960 = vmatprep.subr.bf16.mxu0 %v921
        %961 = vmatpush1.bf16.msra.mxu0 %v920
        %962 = vmatprep.subr.bf16.mxu0 %v924
        %963 = vmatpush1.bf16.msra.mxu0 %v923
        %964 = vmatprep.subr.bf16.mxu0 %v951
        %965 = vmatpush1.bf16.msra.mxu0 %v948
        %966 = vmatprep.subr.bf16.mxu0 0
        %967 = vmatpush1.bf16.msra.mxu0 0
        %968 = vmatprep.subr.bf16.mxu0 0
        %969 = vmatpush1.bf16.msra.mxu0 0
        %970 = vmatprep.subr.bf16.mxu0 0
        %971 = vmatpush1.bf16.msra.mxu0 0
        %972 = vmatprep.subr.bf16.mxu0 0
        %973 = vmatpush1.bf16.msra.mxu0 0
        %974 = vmatprep.subr.bf16.mxu0 0
        %975 = vmatpush1.bf16.msra.mxu0 0
        %976 = vmatprep.subr.bf16.mxu0 0
        %977 = vmatpush1.bf16.msra.mxu0 0
        %978 = vmatprep.subr.bf16.mxu0 0
        %979 = vmatpush1.bf16.msra.mxu0 0
        %980 = vmatprep.subr.bf16.mxu0 0
        %981 = vmatpush1.bf16.msra.mxu0 0
        %982 = vmatprep.subr.bf16.mxu0 0
        %983 = vmatpush1.bf16.msra.mxu0 0
        %984 = vmatprep.subr.bf16.mxu0 0
        %985 = vmatpush1.bf16.msra.mxu0 0
        %986 = vmatprep.subr.bf16.mxu0 0
        %987 = vmatpush1.bf16.msra.mxu0 0
        %988 = vmatprep.mubr.bf16.mxu0 0
        %989 = vmatmul.mubr.bf16.gmra.mrb[0].mxu0 %v942
        %v990 = vpop.f32.mrb[0].mxu0
        %v991 = vadd.f32 %v805, %v990
        %v992 = vpop.f32.mrb[0].mxu0
        %v993 = vadd.f32 %v807, %v992
        %v994 = vpop.f32.mrb[0].mxu0
        %v995 = vadd.f32 %v809, %v994
        %v996 = vpop.f32.mrb[0].mxu0
        %v997 = vadd.f32 %v811, %v996
        %998 = vmatprep.mubr.bf16.mxu0 0
        %999 = vmatmul.mubr.bf16.gmra.mrb[0].mxu0 %v945
        %v1000 = vpop.f32.mrb[0].mxu0
        %v1001 = vadd.f32 %v815, %v1000
        %v1002 = vpop.f32.mrb[0].mxu0
        %v1003 = vadd.f32 %v817, %v1002
        %v1004 = vpop.f32.mrb[0].mxu0
        %v1005 = vpop.f32.mrb[0].mxu0
        %1006 = vdwg.mxu0
        %1007 = vmatprep.subr.bf16.mxu0 0
        %1008 = vmatpush1.bf16.msra.mxu0 %v916
        %1009 = vmatprep.subr.bf16.mxu0 0
        %1010 = vmatpush1.bf16.msra.mxu0 %v919
        %1011 = vmatprep.subr.bf16.mxu0 0
        %1012 = vmatpush1.bf16.msra.mxu0 %v922
        %1013 = vmatprep.subr.bf16.mxu0 0
        %1014 = vmatpush1.bf16.msra.mxu0 %v925
        %1015 = vmatprep.subr.bf16.mxu0 0
        %1016 = vmatpush1.bf16.msra.mxu0 %v954
        %1017 = vmatprep.subr.bf16.mxu0 0
        %1018 = vmatpush1.bf16.msra.mxu0 0
        %1019 = vmatprep.subr.bf16.mxu0 0
        %1020 = vmatpush1.bf16.msra.mxu0 0
        %1021 = vmatprep.subr.bf16.mxu0 0
        %1022 = vmatpush1.bf16.msra.mxu0 0
        %1023 = vmatprep.subr.bf16.mxu0 0
        %1024 = vmatpush1.bf16.msra.mxu0 0
        %1025 = vmatprep.subr.bf16.mxu0 0
        %1026 = vmatpush1.bf16.msra.mxu0 0
        %1027 = vmatprep.subr.bf16.mxu0 0
        %1028 = vmatpush1.bf16.msra.mxu0 0
        %1029 = vmatprep.subr.bf16.mxu0 0
        %1030 = vmatpush1.bf16.msra.mxu0 0
        %1031 = vmatprep.subr.bf16.mxu0 0
        %1032 = vmatpush1.bf16.msra.mxu0 0
        %1033 = vmatprep.subr.bf16.mxu0 0
        %1034 = vmatpush1.bf16.msra.mxu0 0
        %1035 = vmatprep.subr.bf16.mxu0 0
        %1036 = vmatpush1.bf16.msra.mxu0 0
        %1037 = vmatprep.subr.bf16.mxu0 0
        %1038 = vmatpush1.bf16.msra.mxu0 0
        %1039 = vmatprep.mubr.bf16.mxu0 0
        %1040 = vmatmul.mubr.bf16.gmra.mrb[0].mxu0 %v942
        %v1041 = vpop.f32.mrb[0].mxu0
        %v1042 = vadd.f32 %v856, %v1041
        %v1043 = vpop.f32.mrb[0].mxu0
        %v1044 = vpop.f32.mrb[0].mxu0
        %v1045 = vadd.f32 %v859, %v1044
        %v1046 = vpop.f32.mrb[0].mxu0
        %1047 = vmatprep.mubr.bf16.mxu0 0
        %1048 = vmatmul.mubr.bf16.gmra.mrb[0].mxu0 %v945
        %v1049 = vpop.f32.mrb[0].mxu0
        %v1050 = vadd.f32 %v864, %v1049
        %v1051 = vpop.f32.mrb[0].mxu0
        %v1052 = vpop.f32.mrb[0].mxu0
        %v1053 = vpop.f32.mrb[0].mxu0
        %1054 = vdwg.mxu0
        %s1055 = scalar_lea.vmem [#allocation5], 24
        %v1056 = vld [vmem:[%s1055] sm:$0xf]
        %v1057 = vld [vmem:[%s1055 + $0x4] sm:$0xf]
        %v1058 = vld [vmem:[%s1055 + $0x8] sm:$0x1]
        %v1062 = vunpack.c.l.b16 %v1056
        %v1063 = vunpack.c.l.b16 %v1057
        %v1064 = vunpack.c.l.b16 %v1058
        %v1065 = vpack.c.b16 %v1063, %v1062
        %v1066 = vpack.c.b16 %v1064, %v1064
        %v1068 = vsel %vm517, %v1065, 0
        %v1071 = vsel %vm517, %v1066, 0
        %1073 = vmatprep.subr.bf16.mxu0 0
        %1074 = vmatpush1.bf16.msra.mxu0 %v501
        %1075 = vmatprep.subr.bf16.mxu0 0
        %1076 = vmatpush1.bf16.msra.mxu0 %v502
        %1077 = vmatprep.subr.bf16.mxu0 0
        %1078 = vmatpush1.bf16.msra.mxu0 %v503
        %1079 = vmatprep.subr.bf16.mxu0 0
        %1080 = vmatpush1.bf16.msra.mxu0 %v504
        %1081 = vmatprep.subr.bf16.mxu0 0
        %1082 = vmatpush1.bf16.msra.mxu0 %v526
        %1083 = vmatprep.subr.bf16.mxu0 0
        %1084 = vmatpush1.bf16.msra.mxu0 0
        %1085 = vmatprep.subr.bf16.mxu0 0
        %1086 = vmatpush1.bf16.msra.mxu0 0
        %1087 = vmatprep.subr.bf16.mxu0 0
        %1088 = vmatpush1.bf16.msra.mxu0 0
        %1089 = vmatprep.subr.bf16.mxu0 0
        %1090 = vmatpush1.bf16.msra.mxu0 0
        %1091 = vmatprep.subr.bf16.mxu0 0
        %1092 = vmatpush1.bf16.msra.mxu0 0
        %1093 = vmatprep.subr.bf16.mxu0 0
        %1094 = vmatpush1.bf16.msra.mxu0 0
        %1095 = vmatprep.subr.bf16.mxu0 0
        %1096 = vmatpush1.bf16.msra.mxu0 0
        %1097 = vmatprep.subr.bf16.mxu0 0
        %1098 = vmatpush1.bf16.msra.mxu0 0
        %1099 = vmatprep.subr.bf16.mxu0 0
        %1100 = vmatpush1.bf16.msra.mxu0 0
        %1101 = vmatprep.subr.bf16.mxu0 0
        %1102 = vmatpush1.bf16.msra.mxu0 0
        %1103 = vmatprep.subr.bf16.mxu0 0
        %1104 = vmatpush1.bf16.msra.mxu0 0
        %1105 = vmatprep.mubr.bf16.mxu0 0
        %1106 = vmatmul.mubr.bf16.gmra.mrb[0].mxu0 %v1068
        %v1107 = vpop.f32.mrb[0].mxu0
        %v1108 = vadd.f32 0.0, %v1107
        %v1109 = vpop.f32.mrb[0].mxu0
        %v1110 = vpop.f32.mrb[0].mxu0
        %v1111 = vadd.f32 0.0, %v1110
        %v1112 = vpop.f32.mrb[0].mxu0
        %1113 = vmatprep.mubr.bf16.mxu0 0
        %1114 = vmatmul.mubr.bf16.gmra.mrb[0].mxu0 %v1071
        %v1115 = vpop.f32.mrb[0].mxu0
        %v1116 = vadd.f32 0.0, %v1115
        %v1117 = vpop.f32.mrb[0].mxu0
        %v1118 = vpop.f32.mrb[0].mxu0
        %v1119 = vpop.f32.mrb[0].mxu0
        %1120 = vdwg.mxu0
        %v1121 = vpack.c.bf16 %v1111, %v1108
        %v1122 = vpack.c.bf16 %v1116, %v1116
        %s1123 = scalar_lea.vmem [#allocation7], 216
        %v1124 = vld [vmem:[%s1123] sm:$0xff]
        %v1125 = vld [vmem:[%s1123 + $0x8] sm:$0xf]
        %v1126 = vld [vmem:[%s1123 + $0xc] sm:$0xff]
        %v1127 = vld [vmem:[%s1123 + $0x14] sm:$0xf]
        %v1128 = vld [vmem:[%s1123 + $0x18] sm:$0xff]
        %v1129 = vld [vmem:[%s1123 + $0x20] sm:$0xf]
        %v1130 = vld [vmem:[%s1123 + $0x24] sm:$0xff]
        %v1131 = vld [vmem:[%s1123 + $0x2c] sm:$0xf]
        %v1132 = vld [vmem:[%s1123 + $0x30] sm:$0xff]
        %v1133 = vld [vmem:[%s1123 + $0x38] sm:$0xf]
        %v1134 = vld [vmem:[%s1123 + $0x3c] sm:$0xff]
        %v1135 = vld [vmem:[%s1123 + $0x44] sm:$0xf]
        %v1136 = vld [vmem:[%s1123 + $0x48] sm:$0xff]
        %v1137 = vld [vmem:[%s1123 + $0x50] sm:$0xf]
        %v1138 = vld [vmem:[%s1123 + $0x54] sm:$0xff]
        %v1139 = vld [vmem:[%s1123 + $0x5c] sm:$0xf]
        %v1140 = vld [vmem:[%s1123 + $0x60] sm:$0xff]
        %v1141 = vld [vmem:[%s1123 + $0x68] sm:$0xf]
        %v1160 = vunpack.c.l.b16 %v1124
        %v1161 = vunpack.c.h.b16 %v1124
        %v1162 = vunpack.c.l.b16 %v1125
        %v1163 = vunpack.c.l.b16 %v1126
        %v1164 = vunpack.c.h.b16 %v1126
        %v1165 = vunpack.c.l.b16 %v1127
        %v1166 = vunpack.c.l.b16 %v1128
        %v1167 = vunpack.c.h.b16 %v1128
        %v1168 = vunpack.c.l.b16 %v1129
        %v1169 = vunpack.c.l.b16 %v1130
        %v1170 = vunpack.c.h.b16 %v1130
        %v1171 = vunpack.c.l.b16 %v1131
        %v1172 = vunpack.c.l.b16 %v1132
        %v1173 = vunpack.c.h.b16 %v1132
        %v1174 = vunpack.c.l.b16 %v1133
        %v1175 = vunpack.c.l.b16 %v1134
        %v1176 = vunpack.c.h.b16 %v1134
        %v1177 = vunpack.c.l.b16 %v1135
        %v1178 = vunpack.c.l.b16 %v1136
        %v1179 = vunpack.c.h.b16 %v1136
        %v1180 = vunpack.c.l.b16 %v1137
        %v1181 = vunpack.c.l.b16 %v1138
        %v1182 = vunpack.c.h.b16 %v1138
        %v1183 = vunpack.c.l.b16 %v1139
        %v1184 = vunpack.c.l.b16 %v1140
        %v1185 = vunpack.c.h.b16 %v1140
        %v1186 = vunpack.c.l.b16 %v1141
        %v1187 = vpack.c.b16 %v1163, %v1160
        %v1188 = vpack.c.b16 %v1164, %v1161
        %v1189 = vpack.c.b16 %v1165, %v1162
        %v1190 = vpack.c.b16 %v1169, %v1166
        %v1191 = vpack.c.b16 %v1170, %v1167
        %v1192 = vpack.c.b16 %v1171, %v1168
        %v1193 = vpack.c.b16 %v1175, %v1172
        %v1194 = vpack.c.b16 %v1176, %v1173
        %v1195 = vpack.c.b16 %v1177, %v1174
        %v1196 = vpack.c.b16 %v1181, %v1178
        %v1197 = vpack.c.b16 %v1182, %v1179
        %v1198 = vpack.c.b16 %v1183, %v1180
        %v1199 = vpack.c.b16 %v1184, %v1184
        %v1200 = vpack.c.b16 %v1185, %v1185
        %v1201 = vpack.c.b16 %v1186, %v1186
        %v1215 = vsel %vm517, %v1121, 0
        %v1218 = vsel %vm517, %v1122, 0
        %v1221 = vsel %vm524, %v1199, 0
        %v1224 = vsel %vm524, %v1200, 0
        %v1227 = vsel %vm524, %v1201, 0
        %1229 = vmatprep.subr.bf16.mxu0 %v1188
        %1230 = vmatpush1.bf16.msra.mxu0 %v1187
        %1231 = vmatprep.subr.bf16.mxu0 %v1191
        %1232 = vmatpush1.bf16.msra.mxu0 %v1190
        %1233 = vmatprep.subr.bf16.mxu0 %v1194
        %1234 = vmatpush1.bf16.msra.mxu0 %v1193
        %1235 = vmatprep.subr.bf16.mxu0 %v1197
        %1236 = vmatpush1.bf16.msra.mxu0 %v1196
        %1237 = vmatprep.subr.bf16.mxu0 %v1224
        %1238 = vmatpush1.bf16.msra.mxu0 %v1221
        %1239 = vmatprep.subr.bf16.mxu0 0
        %1240 = vmatpush1.bf16.msra.mxu0 0
        %1241 = vmatprep.subr.bf16.mxu0 0
        %1242 = vmatpush1.bf16.msra.mxu0 0
        %1243 = vmatprep.subr.bf16.mxu0 0
        %1244 = vmatpush1.bf16.msra.mxu0 0
        %1245 = vmatprep.subr.bf16.mxu0 0
        %1246 = vmatpush1.bf16.msra.mxu0 0
        %1247 = vmatprep.subr.bf16.mxu0 0
        %1248 = vmatpush1.bf16.msra.mxu0 0
        %1249 = vmatprep.subr.bf16.mxu0 0
        %1250 = vmatpush1.bf16.msra.mxu0 0
        %1251 = vmatprep.subr.bf16.mxu0 0
        %1252 = vmatpush1.bf16.msra.mxu0 0
        %1253 = vmatprep.subr.bf16.mxu0 0
        %1254 = vmatpush1.bf16.msra.mxu0 0
        %1255 = vmatprep.subr.bf16.mxu0 0
        %1256 = vmatpush1.bf16.msra.mxu0 0
        %1257 = vmatprep.subr.bf16.mxu0 0
        %1258 = vmatpush1.bf16.msra.mxu0 0
        %1259 = vmatprep.subr.bf16.mxu0 0
        %1260 = vmatpush1.bf16.msra.mxu0 0
        %1261 = vmatprep.mubr.bf16.mxu0 0
        %1262 = vmatmul.mubr.bf16.gmra.mrb[0].mxu0 %v1215
        %v1263 = vpop.f32.mrb[0].mxu0
        %v1264 = vadd.f32 0.0, %v1263
        %v1265 = vpop.f32.mrb[0].mxu0
        %v1266 = vadd.f32 0.0, %v1265
        %v1267 = vpop.f32.mrb[0].mxu0
        %v1268 = vadd.f32 0.0, %v1267
        %v1269 = vpop.f32.mrb[0].mxu0
        %v1270 = vadd.f32 0.0, %v1269
        %1271 = vmatprep.mubr.bf16.mxu0 0
        %1272 = vmatmul.mubr.bf16.gmra.mrb[0].mxu0 %v1218
        %v1273 = vpop.f32.mrb[0].mxu0
        %v1274 = vadd.f32 0.0, %v1273
        %v1275 = vpop.f32.mrb[0].mxu0
        %v1276 = vadd.f32 0.0, %v1275
        %v1277 = vpop.f32.mrb[0].mxu0
        %v1278 = vpop.f32.mrb[0].mxu0
        %1279 = vdwg.mxu0
        %1280 = vmatprep.subr.bf16.mxu0 0
        %1281 = vmatpush1.bf16.msra.mxu0 %v1189
        %1282 = vmatprep.subr.bf16.mxu0 0
        %1283 = vmatpush1.bf16.msra.mxu0 %v1192
        %1284 = vmatprep.subr.bf16.mxu0 0
        %1285 = vmatpush1.bf16.msra.mxu0 %v1195
        %1286 = vmatprep.subr.bf16.mxu0 0
        %1287 = vmatpush1.bf16.msra.mxu0 %v1198
        %1288 = vmatprep.subr.bf16.mxu0 0
        %1289 = vmatpush1.bf16.msra.mxu0 %v1227
        %1290 = vmatprep.subr.bf16.mxu0 0
        %1291 = vmatpush1.bf16.msra.mxu0 0
        %1292 = vmatprep.subr.bf16.mxu0 0
        %1293 = vmatpush1.bf16.msra.mxu0 0
        %1294 = vmatprep.subr.bf16.mxu0 0
        %1295 = vmatpush1.bf16.msra.mxu0 0
        %1296 = vmatprep.subr.bf16.mxu0 0
        %1297 = vmatpush1.bf16.msra.mxu0 0
        %1298 = vmatprep.subr.bf16.mxu0 0
        %1299 = vmatpush1.bf16.msra.mxu0 0
        %1300 = vmatprep.subr.bf16.mxu0 0
        %1301 = vmatpush1.bf16.msra.mxu0 0
        %1302 = vmatprep.subr.bf16.mxu0 0
        %1303 = vmatpush1.bf16.msra.mxu0 0
        %1304 = vmatprep.subr.bf16.mxu0 0
        %1305 = vmatpush1.bf16.msra.mxu0 0
        %1306 = vmatprep.subr.bf16.mxu0 0
        %1307 = vmatpush1.bf16.msra.mxu0 0
        %1308 = vmatprep.subr.bf16.mxu0 0
        %1309 = vmatpush1.bf16.msra.mxu0 0
        %1310 = vmatprep.subr.bf16.mxu0 0
        %1311 = vmatpush1.bf16.msra.mxu0 0
        %1312 = vmatprep.mubr.bf16.mxu0 0
        %1313 = vmatmul.mubr.bf16.gmra.mrb[0].mxu0 %v1215
        %v1314 = vpop.f32.mrb[0].mxu0
        %v1315 = vadd.f32 0.0, %v1314
        %v1316 = vpop.f32.mrb[0].mxu0
        %v1317 = vpop.f32.mrb[0].mxu0
        %v1318 = vadd.f32 0.0, %v1317
        %v1319 = vpop.f32.mrb[0].mxu0
        %1320 = vmatprep.mubr.bf16.mxu0 0
        %1321 = vmatmul.mubr.bf16.gmra.mrb[0].mxu0 %v1218
        %v1322 = vpop.f32.mrb[0].mxu0
        %v1323 = vadd.f32 0.0, %v1322
        %v1324 = vpop.f32.mrb[0].mxu0
        %v1325 = vpop.f32.mrb[0].mxu0
        %v1326 = vpop.f32.mrb[0].mxu0
        %1327 = vdwg.mxu0
        %v1328 = vadd.f32 %v991, %v1264
        %v1329 = vadd.f32 %v993, %v1266
        %v1330 = vadd.f32 %v1042, %v1315
        %v1331 = vadd.f32 %v995, %v1268
        %v1332 = vadd.f32 %v997, %v1270
        %v1333 = vadd.f32 %v1045, %v1318
        %v1334 = vadd.f32 %v1001, %v1274
        %v1335 = vadd.f32 %v1003, %v1276
        %v1336 = vadd.f32 %v1050, %v1323
        %s1337 = scalar_lea.vmem [#allocation5], 36
        %v1338 = vld [vmem:[%s1337] sm:$0xf]
        %v1339 = vld [vmem:[%s1337 + $0x4] sm:$0xf]
        %v1340 = vld [vmem:[%s1337 + $0x8] sm:$0x1]
        %v1344 = vunpack.c.l.b16 %v1338
        %v1345 = vunpack.c.l.b16 %v1339
        %v1346 = vunpack.c.l.b16 %v1340
        %v1347 = vpack.c.b16 %v1345, %v1344
        %v1348 = vpack.c.b16 %v1346, %v1346
        %v1350 = vsel %vm517, %v1347, 0
        %v1353 = vsel %vm517, %v1348, 0
        %1355 = vmatprep.subr.bf16.mxu0 0
        %1356 = vmatpush1.bf16.msra.mxu0 %v501
        %1357 = vmatprep.subr.bf16.mxu0 0
        %1358 = vmatpush1.bf16.msra.mxu0 %v502
        %1359 = vmatprep.subr.bf16.mxu0 0
        %1360 = vmatpush1.bf16.msra.mxu0 %v503
        %1361 = vmatprep.subr.bf16.mxu0 0
        %1362 = vmatpush1.bf16.msra.mxu0 %v504
        %1363 = vmatprep.subr.bf16.mxu0 0
        %1364 = vmatpush1.bf16.msra.mxu0 %v526
        %1365 = vmatprep.subr.bf16.mxu0 0
        %1366 = vmatpush1.bf16.msra.mxu0 0
        %1367 = vmatprep.subr.bf16.mxu0 0
        %1368 = vmatpush1.bf16.msra.mxu0 0
        %1369 = vmatprep.subr.bf16.mxu0 0
        %1370 = vmatpush1.bf16.msra.mxu0 0
        %1371 = vmatprep.subr.bf16.mxu0 0
        %1372 = vmatpush1.bf16.msra.mxu0 0
        %1373 = vmatprep.subr.bf16.mxu0 0
        %1374 = vmatpush1.bf16.msra.mxu0 0
        %1375 = vmatprep.subr.bf16.mxu0 0
        %1376 = vmatpush1.bf16.msra.mxu0 0
        %1377 = vmatprep.subr.bf16.mxu0 0
        %1378 = vmatpush1.bf16.msra.mxu0 0
        %1379 = vmatprep.subr.bf16.mxu0 0
        %1380 = vmatpush1.bf16.msra.mxu0 0
        %1381 = vmatprep.subr.bf16.mxu0 0
        %1382 = vmatpush1.bf16.msra.mxu0 0
        %1383 = vmatprep.subr.bf16.mxu0 0
        %1384 = vmatpush1.bf16.msra.mxu0 0
        %1385 = vmatprep.subr.bf16.mxu0 0
        %1386 = vmatpush1.bf16.msra.mxu0 0
        %1387 = vmatprep.mubr.bf16.mxu0 0
        %1388 = vmatmul.mubr.bf16.gmra.mrb[0].mxu0 %v1350
        %v1389 = vpop.f32.mrb[0].mxu0
        %v1390 = vadd.f32 0.0, %v1389
        %v1391 = vpop.f32.mrb[0].mxu0
        %v1392 = vpop.f32.mrb[0].mxu0
        %v1393 = vadd.f32 0.0, %v1392
        %v1394 = vpop.f32.mrb[0].mxu0
        %1395 = vmatprep.mubr.bf16.mxu0 0
        %1396 = vmatmul.mubr.bf16.gmra.mrb[0].mxu0 %v1353
        %v1397 = vpop.f32.mrb[0].mxu0
        %v1398 = vadd.f32 0.0, %v1397
        %v1399 = vpop.f32.mrb[0].mxu0
        %v1400 = vpop.f32.mrb[0].mxu0
        %v1401 = vpop.f32.mrb[0].mxu0
        %1402 = vdwg.mxu0
        %v1403 = vpack.c.bf16 %v1393, %v1390
        %v1404 = vpack.c.bf16 %v1398, %v1398
        %s1405 = scalar_lea.vmem [#allocation7], 324
        %v1406 = vld [vmem:[%s1405] sm:$0xff]
        %v1407 = vld [vmem:[%s1405 + $0x8] sm:$0xf]
        %v1408 = vld [vmem:[%s1405 + $0xc] sm:$0xff]
        %v1409 = vld [vmem:[%s1405 + $0x14] sm:$0xf]
        %v1410 = vld [vmem:[%s1405 + $0x18] sm:$0xff]
        %v1411 = vld [vmem:[%s1405 + $0x20] sm:$0xf]
        %v1412 = vld [vmem:[%s1405 + $0x24] sm:$0xff]
        %v1413 = vld [vmem:[%s1405 + $0x2c] sm:$0xf]
        %v1414 = vld [vmem:[%s1405 + $0x30] sm:$0xff]
        %v1415 = vld [vmem:[%s1405 + $0x38] sm:$0xf]
        %v1416 = vld [vmem:[%s1405 + $0x3c] sm:$0xff]
        %v1417 = vld [vmem:[%s1405 + $0x44] sm:$0xf]
        %v1418 = vld [vmem:[%s1405 + $0x48] sm:$0xff]
        %v1419 = vld [vmem:[%s1405 + $0x50] sm:$0xf]
        %v1420 = vld [vmem:[%s1405 + $0x54] sm:$0xff]
        %v1421 = vld [vmem:[%s1405 + $0x5c] sm:$0xf]
        %v1422 = vld [vmem:[%s1405 + $0x60] sm:$0xff]
        %v1423 = vld [vmem:[%s1405 + $0x68] sm:$0xf]
        %v1442 = vunpack.c.l.b16 %v1406
        %v1443 = vunpack.c.h.b16 %v1406
        %v1444 = vunpack.c.l.b16 %v1407
        %v1445 = vunpack.c.l.b16 %v1408
        %v1446 = vunpack.c.h.b16 %v1408
        %v1447 = vunpack.c.l.b16 %v1409
        %v1448 = vunpack.c.l.b16 %v1410
        %v1449 = vunpack.c.h.b16 %v1410
        %v1450 = vunpack.c.l.b16 %v1411
        %v1451 = vunpack.c.l.b16 %v1412
        %v1452 = vunpack.c.h.b16 %v1412
        %v1453 = vunpack.c.l.b16 %v1413
        %v1454 = vunpack.c.l.b16 %v1414
        %v1455 = vunpack.c.h.b16 %v1414
        %v1456 = vunpack.c.l.b16 %v1415
        %v1457 = vunpack.c.l.b16 %v1416
        %v1458 = vunpack.c.h.b16 %v1416
        %v1459 = vunpack.c.l.b16 %v1417
        %v1460 = vunpack.c.l.b16 %v1418
        %v1461 = vunpack.c.h.b16 %v1418
        %v1462 = vunpack.c.l.b16 %v1419
        %v1463 = vunpack.c.l.b16 %v1420
        %v1464 = vunpack.c.h.b16 %v1420
        %v1465 = vunpack.c.l.b16 %v1421
        %v1466 = vunpack.c.l.b16 %v1422
        %v1467 = vunpack.c.h.b16 %v1422
        %v1468 = vunpack.c.l.b16 %v1423
        %v1469 = vpack.c.b16 %v1445, %v1442
        %v1470 = vpack.c.b16 %v1446, %v1443
        %v1471 = vpack.c.b16 %v1447, %v1444
        %v1472 = vpack.c.b16 %v1451, %v1448
        %v1473 = vpack.c.b16 %v1452, %v1449
        %v1474 = vpack.c.b16 %v1453, %v1450
        %v1475 = vpack.c.b16 %v1457, %v1454
        %v1476 = vpack.c.b16 %v1458, %v1455
        %v1477 = vpack.c.b16 %v1459, %v1456
        %v1478 = vpack.c.b16 %v1463, %v1460
        %v1479 = vpack.c.b16 %v1464, %v1461
        %v1480 = vpack.c.b16 %v1465, %v1462
        %v1481 = vpack.c.b16 %v1466, %v1466
        %v1482 = vpack.c.b16 %v1467, %v1467
        %v1483 = vpack.c.b16 %v1468, %v1468
        %v1497 = vsel %vm517, %v1403, 0
        %v1500 = vsel %vm517, %v1404, 0
        %v1503 = vsel %vm524, %v1481, 0
        %v1506 = vsel %vm524, %v1482, 0
        %v1509 = vsel %vm524, %v1483, 0
        %1511 = vmatprep.subr.bf16.mxu0 %v1470
        %1512 = vmatpush1.bf16.msra.mxu0 %v1469
        %1513 = vmatprep.subr.bf16.mxu0 %v1473
        %1514 = vmatpush1.bf16.msra.mxu0 %v1472
        %1515 = vmatprep.subr.bf16.mxu0 %v1476
        %1516 = vmatpush1.bf16.msra.mxu0 %v1475
        %1517 = vmatprep.subr.bf16.mxu0 %v1479
        %1518 = vmatpush1.bf16.msra.mxu0 %v1478
        %1519 = vmatprep.subr.bf16.mxu0 %v1506
        %1520 = vmatpush1.bf16.msra.mxu0 %v1503
        %1521 = vmatprep.subr.bf16.mxu0 0
        %1522 = vmatpush1.bf16.msra.mxu0 0
        %1523 = vmatprep.subr.bf16.mxu0 0
        %1524 = vmatpush1.bf16.msra.mxu0 0
        %1525 = vmatprep.subr.bf16.mxu0 0
        %1526 = vmatpush1.bf16.msra.mxu0 0
        %1527 = vmatprep.subr.bf16.mxu0 0
        %1528 = vmatpush1.bf16.msra.mxu0 0
        %1529 = vmatprep.subr.bf16.mxu0 0
        %1530 = vmatpush1.bf16.msra.mxu0 0
        %1531 = vmatprep.subr.bf16.mxu0 0
        %1532 = vmatpush1.bf16.msra.mxu0 0
        %1533 = vmatprep.subr.bf16.mxu0 0
        %1534 = vmatpush1.bf16.msra.mxu0 0
        %1535 = vmatprep.subr.bf16.mxu0 0
        %1536 = vmatpush1.bf16.msra.mxu0 0
        %1537 = vmatprep.subr.bf16.mxu0 0
        %1538 = vmatpush1.bf16.msra.mxu0 0
        %1539 = vmatprep.subr.bf16.mxu0 0
        %1540 = vmatpush1.bf16.msra.mxu0 0
        %1541 = vmatprep.subr.bf16.mxu0 0
        %1542 = vmatpush1.bf16.msra.mxu0 0
        %1543 = vmatprep.mubr.bf16.mxu0 0
        %1544 = vmatmul.mubr.bf16.gmra.mrb[0].mxu0 %v1497
        %v1545 = vpop.f32.mrb[0].mxu0
        %v1546 = vadd.f32 0.0, %v1545
        %v1547 = vpop.f32.mrb[0].mxu0
        %v1548 = vadd.f32 0.0, %v1547
        %v1549 = vpop.f32.mrb[0].mxu0
        %v1550 = vadd.f32 0.0, %v1549
        %v1551 = vpop.f32.mrb[0].mxu0
        %v1552 = vadd.f32 0.0, %v1551
        %1553 = vmatprep.mubr.bf16.mxu0 0
        %1554 = vmatmul.mubr.bf16.gmra.mrb[0].mxu0 %v1500
        %v1555 = vpop.f32.mrb[0].mxu0
        %v1556 = vadd.f32 0.0, %v1555
        %v1557 = vpop.f32.mrb[0].mxu0
        %v1558 = vadd.f32 0.0, %v1557
        %v1559 = vpop.f32.mrb[0].mxu0
        %v1560 = vpop.f32.mrb[0].mxu0
        %1561 = vdwg.mxu0
        %1562 = vmatprep.subr.bf16.mxu0 0
        %1563 = vmatpush1.bf16.msra.mxu0 %v1471
        %1564 = vmatprep.subr.bf16.mxu0 0
        %1565 = vmatpush1.bf16.msra.mxu0 %v1474
        %1566 = vmatprep.subr.bf16.mxu0 0
        %1567 = vmatpush1.bf16.msra.mxu0 %v1477
        %1568 = vmatprep.subr.bf16.mxu0 0
        %1569 = vmatpush1.bf16.msra.mxu0 %v1480
        %1570 = vmatprep.subr.bf16.mxu0 0
        %1571 = vmatpush1.bf16.msra.mxu0 %v1509
        %1572 = vmatprep.subr.bf16.mxu0 0
        %1573 = vmatpush1.bf16.msra.mxu0 0
        %1574 = vmatprep.subr.bf16.mxu0 0
        %1575 = vmatpush1.bf16.msra.mxu0 0
        %1576 = vmatprep.subr.bf16.mxu0 0
        %1577 = vmatpush1.bf16.msra.mxu0 0
        %1578 = vmatprep.subr.bf16.mxu0 0
        %1579 = vmatpush1.bf16.msra.mxu0 0
        %1580 = vmatprep.subr.bf16.mxu0 0
        %1581 = vmatpush1.bf16.msra.mxu0 0
        %1582 = vmatprep.subr.bf16.mxu0 0
        %1583 = vmatpush1.bf16.msra.mxu0 0
        %1584 = vmatprep.subr.bf16.mxu0 0
        %1585 = vmatpush1.bf16.msra.mxu0 0
        %1586 = vmatprep.subr.bf16.mxu0 0
        %1587 = vmatpush1.bf16.msra.mxu0 0
        %1588 = vmatprep.subr.bf16.mxu0 0
        %1589 = vmatpush1.bf16.msra.mxu0 0
        %1590 = vmatprep.subr.bf16.mxu0 0
        %1591 = vmatpush1.bf16.msra.mxu0 0
        %1592 = vmatprep.subr.bf16.mxu0 0
        %1593 = vmatpush1.bf16.msra.mxu0 0
        %1594 = vmatprep.mubr.bf16.mxu0 0
        %1595 = vmatmul.mubr.bf16.gmra.mrb[0].mxu0 %v1497
        %v1596 = vpop.f32.mrb[0].mxu0
        %v1597 = vadd.f32 0.0, %v1596
        %v1598 = vpop.f32.mrb[0].mxu0
        %v1599 = vpop.f32.mrb[0].mxu0
        %v1600 = vadd.f32 0.0, %v1599
        %v1601 = vpop.f32.mrb[0].mxu0
        %1602 = vmatprep.mubr.bf16.mxu0 0
        %1603 = vmatmul.mubr.bf16.gmra.mrb[0].mxu0 %v1500
        %v1604 = vpop.f32.mrb[0].mxu0
        %v1605 = vadd.f32 0.0, %v1604
        %v1606 = vpop.f32.mrb[0].mxu0
        %v1607 = vpop.f32.mrb[0].mxu0
        %v1608 = vpop.f32.mrb[0].mxu0
        %1609 = vdwg.mxu0
        %v1610 = vadd.f32 %v1328, %v1546
        %v1611 = vadd.f32 %v1329, %v1548
        %v1612 = vadd.f32 %v1330, %v1597
        %v1613 = vadd.f32 %v1331, %v1550
        %v1614 = vadd.f32 %v1332, %v1552
        %v1615 = vadd.f32 %v1333, %v1600
        %v1616 = vadd.f32 %v1334, %v1556
        %v1617 = vadd.f32 %v1335, %v1558
        %v1618 = vadd.f32 %v1336, %v1605
        %s1619 = scalar_lea.vmem [#allocation5], 48
        %v1620 = vld [vmem:[%s1619] sm:$0xf]
        %v1621 = vld [vmem:[%s1619 + $0x4] sm:$0xf]
        %v1622 = vld [vmem:[%s1619 + $0x8] sm:$0x1]
        %v1626 = vunpack.c.l.b16 %v1620
        %v1627 = vunpack.c.l.b16 %v1621
        %v1628 = vunpack.c.l.b16 %v1622
        %v1629 = vpack.c.b16 %v1627, %v1626
        %v1630 = vpack.c.b16 %v1628, %v1628
        %v1632 = vsel %vm517, %v1629, 0
        %v1635 = vsel %vm517, %v1630, 0
        %1637 = vmatprep.subr.bf16.mxu0 0
        %1638 = vmatpush1.bf16.msra.mxu0 %v501
        %1639 = vmatprep.subr.bf16.mxu0 0
        %1640 = vmatpush1.bf16.msra.mxu0 %v502
        %1641 = vmatprep.subr.bf16.mxu0 0
        %1642 = vmatpush1.bf16.msra.mxu0 %v503
        %1643 = vmatprep.subr.bf16.mxu0 0
        %1644 = vmatpush1.bf16.msra.mxu0 %v504
        %1645 = vmatprep.subr.bf16.mxu0 0
        %1646 = vmatpush1.bf16.msra.mxu0 %v526
        %1647 = vmatprep.subr.bf16.mxu0 0
        %1648 = vmatpush1.bf16.msra.mxu0 0
        %1649 = vmatprep.subr.bf16.mxu0 0
        %1650 = vmatpush1.bf16.msra.mxu0 0
        %1651 = vmatprep.subr.bf16.mxu0 0
        %1652 = vmatpush1.bf16.msra.mxu0 0
        %1653 = vmatprep.subr.bf16.mxu0 0
        %1654 = vmatpush1.bf16.msra.mxu0 0
        %1655 = vmatprep.subr.bf16.mxu0 0
        %1656 = vmatpush1.bf16.msra.mxu0 0
        %1657 = vmatprep.subr.bf16.mxu0 0
        %1658 = vmatpush1.bf16.msra.mxu0 0
        %1659 = vmatprep.subr.bf16.mxu0 0
        %1660 = vmatpush1.bf16.msra.mxu0 0
        %1661 = vmatprep.subr.bf16.mxu0 0
        %1662 = vmatpush1.bf16.msra.mxu0 0
        %1663 = vmatprep.subr.bf16.mxu0 0
        %1664 = vmatpush1.bf16.msra.mxu0 0
        %1665 = vmatprep.subr.bf16.mxu0 0
        %1666 = vmatpush1.bf16.msra.mxu0 0
        %1667 = vmatprep.subr.bf16.mxu0 0
        %1668 = vmatpush1.bf16.msra.mxu0 0
        %1669 = vmatprep.mubr.bf16.mxu0 0
        %1670 = vmatmul.mubr.bf16.gmra.mrb[0].mxu0 %v1632
        %v1671 = vpop.f32.mrb[0].mxu0
        %v1672 = vadd.f32 0.0, %v1671
        %v1673 = vpop.f32.mrb[0].mxu0
        %v1674 = vpop.f32.mrb[0].mxu0
        %v1675 = vadd.f32 0.0, %v1674
        %v1676 = vpop.f32.mrb[0].mxu0
        %1677 = vmatprep.mubr.bf16.mxu0 0
        %1678 = vmatmul.mubr.bf16.gmra.mrb[0].mxu0 %v1635
        %v1679 = vpop.f32.mrb[0].mxu0
        %v1680 = vadd.f32 0.0, %v1679
        %v1681 = vpop.f32.mrb[0].mxu0
        %v1682 = vpop.f32.mrb[0].mxu0
        %v1683 = vpop.f32.mrb[0].mxu0
        %1684 = vdwg.mxu0
        %v1685 = vpack.c.bf16 %v1675, %v1672
        %v1686 = vpack.c.bf16 %v1680, %v1680
        %s1687 = scalar_lea.vmem [#allocation7], 432
        %v1688 = vld [vmem:[%s1687] sm:$0xff]
        %v1689 = vld [vmem:[%s1687 + $0x8] sm:$0xf]
        %v1690 = vld [vmem:[%s1687 + $0xc] sm:$0xff]
        %v1691 = vld [vmem:[%s1687 + $0x14] sm:$0xf]
        %v1692 = vld [vmem:[%s1687 + $0x18] sm:$0xff]
        %v1693 = vld [vmem:[%s1687 + $0x20] sm:$0xf]
        %v1694 = vld [vmem:[%s1687 + $0x24] sm:$0xff]
        %v1695 = vld [vmem:[%s1687 + $0x2c] sm:$0xf]
        %v1696 = vld [vmem:[%s1687 + $0x30] sm:$0xff]
        %v1697 = vld [vmem:[%s1687 + $0x38] sm:$0xf]
        %v1698 = vld [vmem:[%s1687 + $0x3c] sm:$0xff]
        %v1699 = vld [vmem:[%s1687 + $0x44] sm:$0xf]
        %v1700 = vld [vmem:[%s1687 + $0x48] sm:$0xff]
        %v1701 = vld [vmem:[%s1687 + $0x50] sm:$0xf]
        %v1702 = vld [vmem:[%s1687 + $0x54] sm:$0xff]
        %v1703 = vld [vmem:[%s1687 + $0x5c] sm:$0xf]
        %v1704 = vld [vmem:[%s1687 + $0x60] sm:$0xff]
        %v1705 = vld [vmem:[%s1687 + $0x68] sm:$0xf]
        %v1724 = vunpack.c.l.b16 %v1688
        %v1725 = vunpack.c.h.b16 %v1688
        %v1726 = vunpack.c.l.b16 %v1689
        %v1727 = vunpack.c.l.b16 %v1690
        %v1728 = vunpack.c.h.b16 %v1690
        %v1729 = vunpack.c.l.b16 %v1691
        %v1730 = vunpack.c.l.b16 %v1692
        %v1731 = vunpack.c.h.b16 %v1692
        %v1732 = vunpack.c.l.b16 %v1693
        %v1733 = vunpack.c.l.b16 %v1694
        %v1734 = vunpack.c.h.b16 %v1694
        %v1735 = vunpack.c.l.b16 %v1695
        %v1736 = vunpack.c.l.b16 %v1696
        %v1737 = vunpack.c.h.b16 %v1696
        %v1738 = vunpack.c.l.b16 %v1697
        %v1739 = vunpack.c.l.b16 %v1698
        %v1740 = vunpack.c.h.b16 %v1698
        %v1741 = vunpack.c.l.b16 %v1699
        %v1742 = vunpack.c.l.b16 %v1700
        %v1743 = vunpack.c.h.b16 %v1700
        %v1744 = vunpack.c.l.b16 %v1701
        %v1745 = vunpack.c.l.b16 %v1702
        %v1746 = vunpack.c.h.b16 %v1702
        %v1747 = vunpack.c.l.b16 %v1703
        %v1748 = vunpack.c.l.b16 %v1704
        %v1749 = vunpack.c.h.b16 %v1704
        %v1750 = vunpack.c.l.b16 %v1705
        %v1751 = vpack.c.b16 %v1727, %v1724
        %v1752 = vpack.c.b16 %v1728, %v1725
        %v1753 = vpack.c.b16 %v1729, %v1726
        %v1754 = vpack.c.b16 %v1733, %v1730
        %v1755 = vpack.c.b16 %v1734, %v1731
        %v1756 = vpack.c.b16 %v1735, %v1732
        %v1757 = vpack.c.b16 %v1739, %v1736
        %v1758 = vpack.c.b16 %v1740, %v1737
        %v1759 = vpack.c.b16 %v1741, %v1738
        %v1760 = vpack.c.b16 %v1745, %v1742
        %v1761 = vpack.c.b16 %v1746, %v1743
        %v1762 = vpack.c.b16 %v1747, %v1744
        %v1763 = vpack.c.b16 %v1748, %v1748
        %v1764 = vpack.c.b16 %v1749, %v1749
        %v1765 = vpack.c.b16 %v1750, %v1750
        %v1779 = vsel %vm517, %v1685, 0
        %v1782 = vsel %vm517, %v1686, 0
        %v1785 = vsel %vm524, %v1763, 0
        %v1788 = vsel %vm524, %v1764, 0
        %v1791 = vsel %vm524, %v1765, 0
        %1793 = vmatprep.subr.bf16.mxu0 %v1752
        %1794 = vmatpush1.bf16.msra.mxu0 %v1751
        %1795 = vmatprep.subr.bf16.mxu0 %v1755
        %1796 = vmatpush1.bf16.msra.mxu0 %v1754
        %1797 = vmatprep.subr.bf16.mxu0 %v1758
        %1798 = vmatpush1.bf16.msra.mxu0 %v1757
        %1799 = vmatprep.subr.bf16.mxu0 %v1761
        %1800 = vmatpush1.bf16.msra.mxu0 %v1760
        %1801 = vmatprep.subr.bf16.mxu0 %v1788
        %1802 = vmatpush1.bf16.msra.mxu0 %v1785
        %1803 = vmatprep.subr.bf16.mxu0 0
        %1804 = vmatpush1.bf16.msra.mxu0 0
        %1805 = vmatprep.subr.bf16.mxu0 0
        %1806 = vmatpush1.bf16.msra.mxu0 0
        %1807 = vmatprep.subr.bf16.mxu0 0
        %1808 = vmatpush1.bf16.msra.mxu0 0
        %1809 = vmatprep.subr.bf16.mxu0 0
        %1810 = vmatpush1.bf16.msra.mxu0 0
        %1811 = vmatprep.subr.bf16.mxu0 0
        %1812 = vmatpush1.bf16.msra.mxu0 0
        %1813 = vmatprep.subr.bf16.mxu0 0
        %1814 = vmatpush1.bf16.msra.mxu0 0
        %1815 = vmatprep.subr.bf16.mxu0 0
        %1816 = vmatpush1.bf16.msra.mxu0 0
        %1817 = vmatprep.subr.bf16.mxu0 0
        %1818 = vmatpush1.bf16.msra.mxu0 0
        %1819 = vmatprep.subr.bf16.mxu0 0
        %1820 = vmatpush1.bf16.msra.mxu0 0
        %1821 = vmatprep.subr.bf16.mxu0 0
        %1822 = vmatpush1.bf16.msra.mxu0 0
        %1823 = vmatprep.subr.bf16.mxu0 0
        %1824 = vmatpush1.bf16.msra.mxu0 0
        %1825 = vmatprep.mubr.bf16.mxu0 0
        %1826 = vmatmul.mubr.bf16.gmra.mrb[0].mxu0 %v1779
        %v1827 = vpop.f32.mrb[0].mxu0
        %v1828 = vadd.f32 0.0, %v1827
        %v1829 = vpop.f32.mrb[0].mxu0
        %v1830 = vadd.f32 0.0, %v1829
        %v1831 = vpop.f32.mrb[0].mxu0
        %v1832 = vadd.f32 0.0, %v1831
        %v1833 = vpop.f32.mrb[0].mxu0
        %v1834 = vadd.f32 0.0, %v1833
        %1835 = vmatprep.mubr.bf16.mxu0 0
        %1836 = vmatmul.mubr.bf16.gmra.mrb[0].mxu0 %v1782
        %v1837 = vpop.f32.mrb[0].mxu0
        %v1838 = vadd.f32 0.0, %v1837
        %v1839 = vpop.f32.mrb[0].mxu0
        %v1840 = vadd.f32 0.0, %v1839
        %v1841 = vpop.f32.mrb[0].mxu0
        %v1842 = vpop.f32.mrb[0].mxu0
        %1843 = vdwg.mxu0
        %1844 = vmatprep.subr.bf16.mxu0 0
        %1845 = vmatpush1.bf16.msra.mxu0 %v1753
        %1846 = vmatprep.subr.bf16.mxu0 0
        %1847 = vmatpush1.bf16.msra.mxu0 %v1756
        %1848 = vmatprep.subr.bf16.mxu0 0
        %1849 = vmatpush1.bf16.msra.mxu0 %v1759
        %1850 = vmatprep.subr.bf16.mxu0 0
        %1851 = vmatpush1.bf16.msra.mxu0 %v1762
        %1852 = vmatprep.subr.bf16.mxu0 0
        %1853 = vmatpush1.bf16.msra.mxu0 %v1791
        %1854 = vmatprep.subr.bf16.mxu0 0
        %1855 = vmatpush1.bf16.msra.mxu0 0
        %1856 = vmatprep.subr.bf16.mxu0 0
        %1857 = vmatpush1.bf16.msra.mxu0 0
        %1858 = vmatprep.subr.bf16.mxu0 0
        %1859 = vmatpush1.bf16.msra.mxu0 0
        %1860 = vmatprep.subr.bf16.mxu0 0
        %1861 = vmatpush1.bf16.msra.mxu0 0
        %1862 = vmatprep.subr.bf16.mxu0 0
        %1863 = vmatpush1.bf16.msra.mxu0 0
        %1864 = vmatprep.subr.bf16.mxu0 0
        %1865 = vmatpush1.bf16.msra.mxu0 0
        %1866 = vmatprep.subr.bf16.mxu0 0
        %1867 = vmatpush1.bf16.msra.mxu0 0
        %1868 = vmatprep.subr.bf16.mxu0 0
        %1869 = vmatpush1.bf16.msra.mxu0 0
        %1870 = vmatprep.subr.bf16.mxu0 0
        %1871 = vmatpush1.bf16.msra.mxu0 0
        %1872 = vmatprep.subr.bf16.mxu0 0
        %1873 = vmatpush1.bf16.msra.mxu0 0
        %1874 = vmatprep.subr.bf16.mxu0 0
        %1875 = vmatpush1.bf16.msra.mxu0 0
        %1876 = vmatprep.mubr.bf16.mxu0 0
        %1877 = vmatmul.mubr.bf16.gmra.mrb[0].mxu0 %v1779
        %v1878 = vpop.f32.mrb[0].mxu0
        %v1879 = vadd.f32 0.0, %v1878
        %v1880 = vpop.f32.mrb[0].mxu0
        %v1881 = vpop.f32.mrb[0].mxu0
        %v1882 = vadd.f32 0.0, %v1881
        %v1883 = vpop.f32.mrb[0].mxu0
        %1884 = vmatprep.mubr.bf16.mxu0 0
        %1885 = vmatmul.mubr.bf16.gmra.mrb[0].mxu0 %v1782
        %v1886 = vpop.f32.mrb[0].mxu0
        %v1887 = vadd.f32 0.0, %v1886
        %v1888 = vpop.f32.mrb[0].mxu0
        %v1889 = vpop.f32.mrb[0].mxu0
        %v1890 = vpop.f32.mrb[0].mxu0
        %1891 = vdwg.mxu0
        %v1892 = vadd.f32 %v1610, %v1828
        %v1893 = vadd.f32 %v1611, %v1830
        %v1894 = vadd.f32 %v1612, %v1879
        %v1895 = vadd.f32 %v1613, %v1832
        %v1896 = vadd.f32 %v1614, %v1834
        %v1897 = vadd.f32 %v1615, %v1882
        %v1898 = vadd.f32 %v1616, %v1838
        %v1899 = vadd.f32 %v1617, %v1840
        %v1900 = vadd.f32 %v1618, %v1887
        %v1901 = vld [vmem:[%s3] sm:$0x7]
        %v1903 = vlaneseq
        %v1904 = vshrl.u32 %v1903, 7
        %v1905 = vsub.s32 0, %v1904
        %v1906 = vrot.slane %v1901, %v1905
        %v1907 = vlaneseq
        %v1908 = vshrl.u32 %v1907, 7
        %v1909 = vsub.s32 1, %v1908
        %v1910 = vrot.slane %v1901, %v1909
        %v1911 = vlaneseq
        %v1912 = vshrl.u32 %v1911, 7
        %v1913 = vsub.s32 2, %v1912
        %v1914 = vrot.slane %v1901, %v1913
        %v1918 = vadd.f32 %v1892, %v1906
        %v1919 = vadd.f32 %v1893, %v1910
        %v1920 = vadd.f32 %v1894, %v1914
        %v1921 = vadd.f32 %v1895, %v1906
        %v1922 = vadd.f32 %v1896, %v1910
        %v1923 = vadd.f32 %v1897, %v1914
        %v1924 = vadd.f32 %v1898, %v1906
        %v1925 = vadd.f32 %v1899, %v1910
        %v1926 = vadd.f32 %v1900, %v1914
        %v1927 = vmax.f32 %v1918, 0.0
        %v1928 = vmax.f32 %v1919, 0.0
        %v1929 = vmax.f32 %v1920, 0.0
        %v1930 = vmax.f32 %v1921, 0.0
        %v1931 = vmax.f32 %v1922, 0.0
        %v1932 = vmax.f32 %v1923, 0.0
        %v1933 = vmax.f32 %v1924, 0.0
        %v1934 = vmax.f32 %v1925, 0.0
        %v1935 = vmax.f32 %v1926, 0.0
        %v1936 = vpack.c.bf16 %v1930, %v1927
        %v1937 = vpack.c.bf16 %v1931, %v1928
        %v1938 = vpack.c.bf16 %v1932, %v1929
        %v1939 = vpack.c.bf16 %v1933, %v1933
        %v1940 = vpack.c.bf16 %v1934, %v1934
        %v1941 = vpack.c.bf16 %v1935, %v1935
        %v1942 = vld [vmem:[#allocation8] sm:$0xf]
        %vm1943 = vcmask 138240
        %v1945 = vsel %vm1943, %v1942, 0
        %vm1947 = vcmask 1040384
        %v1948 = vsel 0, 4294967295, 65535
        %v1949 = vsel %vm1947, %v1948, 0
        %v1951 = vand.u32 %v1939, %v1949
        %v1954 = vand.u32 %v1940, %v1949
        %v1957 = vand.u32 %v1941, %v1949
        %1959 = vmatprep.subr.bf16.mxu0 %v1937
        %1960 = vmatpush1.bf16.msra.mxu0 %v1936
        %1961 = vmatprep.subr.bf16.mxu0 %v1954
        %1962 = vmatpush1.bf16.msra.mxu0 %v1951
        %1963 = vmatprep.subr.bf16.mxu0 0
        %1964 = vmatpush1.bf16.msra.mxu0 0
        %1965 = vmatprep.subr.bf16.mxu0 0
        %1966 = vmatpush1.bf16.msra.mxu0 0
        %1967 = vmatprep.subr.bf16.mxu0 0
        %1968 = vmatpush1.bf16.msra.mxu0 0
        %1969 = vmatprep.subr.bf16.mxu0 0
        %1970 = vmatpush1.bf16.msra.mxu0 0
        %1971 = vmatprep.subr.bf16.mxu0 0
        %1972 = vmatpush1.bf16.msra.mxu0 0
        %1973 = vmatprep.subr.bf16.mxu0 0
        %1974 = vmatpush1.bf16.msra.mxu0 0
        %1975 = vmatprep.subr.bf16.mxu0 0
        %1976 = vmatpush1.bf16.msra.mxu0 0
        %1977 = vmatprep.subr.bf16.mxu0 0
        %1978 = vmatpush1.bf16.msra.mxu0 0
        %1979 = vmatprep.subr.bf16.mxu0 0
        %1980 = vmatpush1.bf16.msra.mxu0 0
        %1981 = vmatprep.subr.bf16.mxu0 0
        %1982 = vmatpush1.bf16.msra.mxu0 0
        %1983 = vmatprep.subr.bf16.mxu0 0
        %1984 = vmatpush1.bf16.msra.mxu0 0
        %1985 = vmatprep.subr.bf16.mxu0 0
        %1986 = vmatpush1.bf16.msra.mxu0 0
        %1987 = vmatprep.subr.bf16.mxu0 0
        %1988 = vmatpush1.bf16.msra.mxu0 0
        %1989 = vmatprep.subr.bf16.mxu0 0
        %1990 = vmatpush1.bf16.msra.mxu0 0
        %1991 = vmatprep.mubr.bf16.mxu0 0
        %1992 = vmatmul.mubr.bf16.gmra.mrb[0].mxu0 %v1945
        %v1993 = vpop.f32.mrb[0].mxu0
        %v1994 = vadd.f32 0.0, %v1993
        %v1995 = vpop.f32.mrb[0].mxu0
        %v1996 = vadd.f32 0.0, %v1995
        %v1997 = vpop.f32.mrb[0].mxu0
        %v1998 = vpop.f32.mrb[0].mxu0
        %1999 = vdwg.mxu0
        %2000 = vmatprep.subr.bf16.mxu0 0
        %2001 = vmatpush1.bf16.msra.mxu0 %v1938
        %2002 = vmatprep.subr.bf16.mxu0 0
        %2003 = vmatpush1.bf16.msra.mxu0 %v1957
        %2004 = vmatprep.subr.bf16.mxu0 0
        %2005 = vmatpush1.bf16.msra.mxu0 0
        %2006 = vmatprep.subr.bf16.mxu0 0
        %2007 = vmatpush1.bf16.msra.mxu0 0
        %2008 = vmatprep.subr.bf16.mxu0 0
        %2009 = vmatpush1.bf16.msra.mxu0 0
        %2010 = vmatprep.subr.bf16.mxu0 0
        %2011 = vmatpush1.bf16.msra.mxu0 0
        %2012 = vmatprep.subr.bf16.mxu0 0
        %2013 = vmatpush1.bf16.msra.mxu0 0
        %2014 = vmatprep.subr.bf16.mxu0 0
        %2015 = vmatpush1.bf16.msra.mxu0 0
        %2016 = vmatprep.subr.bf16.mxu0 0
        %2017 = vmatpush1.bf16.msra.mxu0 0
        %2018 = vmatprep.subr.bf16.mxu0 0
        %2019 = vmatpush1.bf16.msra.mxu0 0
        %2020 = vmatprep.subr.bf16.mxu0 0
        %2021 = vmatpush1.bf16.msra.mxu0 0
        %2022 = vmatprep.subr.bf16.mxu0 0
        %2023 = vmatpush1.bf16.msra.mxu0 0
        %2024 = vmatprep.subr.bf16.mxu0 0
        %2025 = vmatpush1.bf16.msra.mxu0 0
        %2026 = vmatprep.subr.bf16.mxu0 0
        %2027 = vmatpush1.bf16.msra.mxu0 0
        %2028 = vmatprep.subr.bf16.mxu0 0
        %2029 = vmatpush1.bf16.msra.mxu0 0
        %2030 = vmatprep.subr.bf16.mxu0 0
        %2031 = vmatpush1.bf16.msra.mxu0 0
        %2032 = vmatprep.mubr.bf16.mxu0 0
        %2033 = vmatmul.mubr.bf16.gmra.mrb[0].mxu0 %v1945
        %v2034 = vpop.f32.mrb[0].mxu0
        %v2035 = vadd.f32 0.0, %v2034
        %v2036 = vpop.f32.mrb[0].mxu0
        %v2037 = vpop.f32.mrb[0].mxu0
        %v2038 = vpop.f32.mrb[0].mxu0
        %2039 = vdwg.mxu0
        %v2040 = vpack.c.bf16 %v1994, %v1994
        %v2041 = vpack.c.bf16 %v1996, %v1996
        %v2042 = vpack.c.bf16 %v2035, %v2035
        %v2043 = vld [vmem:[#allocation10] sm:$0xff]
        %v2044 = vld [vmem:[#allocation10 + $0x8] sm:$0xff]
        %v2045 = vld [vmem:[#allocation10 + $0x10] sm:$0xff]
        %v2046 = vld [vmem:[#allocation10 + $0x18] sm:$0xff]
        %v2047 = vld [vmem:[#allocation10 + $0x20] sm:$0xff]
        %v2048 = vld [vmem:[#allocation10 + $0x28] sm:$0xff]
        %v2049 = vld [vmem:[#allocation10 + $0x30] sm:$0xff]
        %v2050 = vld [vmem:[#allocation10 + $0x38] sm:$0xff]
        %v2051 = vld [vmem:[#allocation10 + $0x40] sm:$0xff]
        %v2052 = vld [vmem:[#allocation10 + $0x48] sm:$0xff]
        %v2053 = vld [vmem:[#allocation10 + $0x50] sm:$0xff]
        %v2054 = vld [vmem:[#allocation10 + $0x58] sm:$0xff]
        %v2055 = vld [vmem:[#allocation10 + $0x60] sm:$0xff]
        %v2056 = vld [vmem:[#allocation10 + $0x68] sm:$0xff]
        %v2057 = vld [vmem:[#allocation10 + $0x70] sm:$0xff]
        %v2058 = vld [vmem:[#allocation10 + $0x78] sm:$0xff]
        %v2059 = vld [vmem:[#allocation10 + $0x80] sm:$0xff]
        %v2060 = vld [vmem:[#allocation10 + $0x88] sm:$0xff]
        %v2061 = vld [vmem:[#allocation10 + $0x90] sm:$0xff]
        %v2062 = vld [vmem:[#allocation10 + $0x98] sm:$0xff]
        %v2063 = vld [vmem:[#allocation10 + $0xa0] sm:$0xff]
        %v2064 = vld [vmem:[#allocation10 + $0xa8] sm:$0xff]
        %v2065 = vld [vmem:[#allocation10 + $0xb0] sm:$0xff]
        %v2066 = vld [vmem:[#allocation10 + $0xb8] sm:$0xff]
        %v2067 = vld [vmem:[#allocation10 + $0xc0] sm:$0xff]
        %v2068 = vld [vmem:[#allocation10 + $0xc8] sm:$0xff]
        %v2069 = vld [vmem:[#allocation10 + $0xd0] sm:$0xff]
        %v2070 = vld [vmem:[#allocation10 + $0xd8] sm:$0xff]
        %v2071 = vld [vmem:[#allocation10 + $0xe0] sm:$0xff]
        %v2072 = vld [vmem:[#allocation10 + $0xe8] sm:$0xff]
        %v2073 = vld [vmem:[#allocation10 + $0xf0] sm:$0xff]
        %v2074 = vld [vmem:[#allocation10 + $0xf8] sm:$0xff]
        %v2075 = vld [vmem:[#allocation10 + $0x100] sm:$0xff]
        %v2076 = vld [vmem:[#allocation10 + $0x108] sm:$0xff]
        %s2077 = scalar_lea.vmem [#allocation8], 4
        %v2078 = vld [vmem:[%s2077] sm:$0xf]
        %v2080 = vsel %vm1943, %v2078, 0
        %2082 = vmatprep.subr.bf16.mxu0 %v1937
        %2083 = vmatpush1.bf16.msra.mxu0 %v1936
        %2084 = vmatprep.subr.bf16.mxu0 %v1954
        %2085 = vmatpush1.bf16.msra.mxu0 %v1951
        %2086 = vmatprep.subr.bf16.mxu0 0
        %2087 = vmatpush1.bf16.msra.mxu0 0
        %2088 = vmatprep.subr.bf16.mxu0 0
        %2089 = vmatpush1.bf16.msra.mxu0 0
        %2090 = vmatprep.subr.bf16.mxu0 0
        %2091 = vmatpush1.bf16.msra.mxu0 0
        %2092 = vmatprep.subr.bf16.mxu0 0
        %2093 = vmatpush1.bf16.msra.mxu0 0
        %2094 = vmatprep.subr.bf16.mxu0 0
        %2095 = vmatpush1.bf16.msra.mxu0 0
        %2096 = vmatprep.subr.bf16.mxu0 0
        %2097 = vmatpush1.bf16.msra.mxu0 0
        %2098 = vmatprep.subr.bf16.mxu0 0
        %2099 = vmatpush1.bf16.msra.mxu0 0
        %2100 = vmatprep.subr.bf16.mxu0 0
        %2101 = vmatpush1.bf16.msra.mxu0 0
        %2102 = vmatprep.subr.bf16.mxu0 0
        %2103 = vmatpush1.bf16.msra.mxu0 0
        %2104 = vmatprep.subr.bf16.mxu0 0
        %2105 = vmatpush1.bf16.msra.mxu0 0
        %2106 = vmatprep.subr.bf16.mxu0 0
        %2107 = vmatpush1.bf16.msra.mxu0 0
        %2108 = vmatprep.subr.bf16.mxu0 0
        %2109 = vmatpush1.bf16.msra.mxu0 0
        %2110 = vmatprep.subr.bf16.mxu0 0
        %2111 = vmatpush1.bf16.msra.mxu0 0
        %2112 = vmatprep.subr.bf16.mxu0 0
        %2113 = vmatpush1.bf16.msra.mxu0 0
        %2114 = vmatprep.mubr.bf16.mxu0 0
        %2115 = vmatmul.mubr.bf16.gmra.mrb[0].mxu0 %v2080
        %v2116 = vpop.f32.mrb[0].mxu0
        %v2117 = vadd.f32 0.0, %v2116
        %v2118 = vpop.f32.mrb[0].mxu0
        %v2119 = vadd.f32 0.0, %v2118
        %v2120 = vpop.f32.mrb[0].mxu0
        %v2121 = vpop.f32.mrb[0].mxu0
        %2122 = vdwg.mxu0
        %2123 = vmatprep.subr.bf16.mxu0 0
        %2124 = vmatpush1.bf16.msra.mxu0 %v1938
        %2125 = vmatprep.subr.bf16.mxu0 0
        %2126 = vmatpush1.bf16.msra.mxu0 %v1957
        %2127 = vmatprep.subr.bf16.mxu0 0
        %2128 = vmatpush1.bf16.msra.mxu0 0
        %2129 = vmatprep.subr.bf16.mxu0 0
        %2130 = vmatpush1.bf16.msra.mxu0 0
        %2131 = vmatprep.subr.bf16.mxu0 0
        %2132 = vmatpush1.bf16.msra.mxu0 0
        %2133 = vmatprep.subr.bf16.mxu0 0
        %2134 = vmatpush1.bf16.msra.mxu0 0
        %2135 = vmatprep.subr.bf16.mxu0 0
        %2136 = vmatpush1.bf16.msra.mxu0 0
        %2137 = vmatprep.subr.bf16.mxu0 0
        %2138 = vmatpush1.bf16.msra.mxu0 0
        %2139 = vmatprep.subr.bf16.mxu0 0
        %2140 = vmatpush1.bf16.msra.mxu0 0
        %2141 = vmatprep.subr.bf16.mxu0 0
        %2142 = vmatpush1.bf16.msra.mxu0 0
        %2143 = vmatprep.subr.bf16.mxu0 0
        %2144 = vmatpush1.bf16.msra.mxu0 0
        %2145 = vmatprep.subr.bf16.mxu0 0
        %2146 = vmatpush1.bf16.msra.mxu0 0
        %2147 = vmatprep.subr.bf16.mxu0 0
        %2148 = vmatpush1.bf16.msra.mxu0 0
        %2149 = vmatprep.subr.bf16.mxu0 0
        %2150 = vmatpush1.bf16.msra.mxu0 0
        %2151 = vmatprep.subr.bf16.mxu0 0
        %2152 = vmatpush1.bf16.msra.mxu0 0
        %2153 = vmatprep.subr.bf16.mxu0 0
        %2154 = vmatpush1.bf16.msra.mxu0 0
        %2155 = vmatprep.mubr.bf16.mxu0 0
        %2156 = vmatmul.mubr.bf16.gmra.mrb[0].mxu0 %v2080
        %v2157 = vpop.f32.mrb[0].mxu0
        %v2158 = vadd.f32 0.0, %v2157
        %v2159 = vpop.f32.mrb[0].mxu0
        %v2160 = vpop.f32.mrb[0].mxu0
        %v2161 = vpop.f32.mrb[0].mxu0
        %2162 = vdwg.mxu0
        %v2163 = vpack.c.bf16 %v2117, %v2117
        %v2164 = vpack.c.bf16 %v2119, %v2119
        %v2165 = vpack.c.bf16 %v2158, %v2158
        %s2166 = scalar_lea.vmem [#allocation10], 272
        %v2167 = vld [vmem:[%s2166] sm:$0xff]
        %v2168 = vld [vmem:[%s2166 + $0x8] sm:$0xff]
        %v2169 = vld [vmem:[%s2166 + $0x10] sm:$0xff]
        %v2170 = vld [vmem:[%s2166 + $0x18] sm:$0xff]
        %v2171 = vld [vmem:[%s2166 + $0x20] sm:$0xff]
        %v2172 = vld [vmem:[%s2166 + $0x28] sm:$0xff]
        %v2173 = vld [vmem:[%s2166 + $0x30] sm:$0xff]
        %v2174 = vld [vmem:[%s2166 + $0x38] sm:$0xff]
        %v2175 = vld [vmem:[%s2166 + $0x40] sm:$0xff]
        %v2176 = vld [vmem:[%s2166 + $0x48] sm:$0xff]
        %v2177 = vld [vmem:[%s2166 + $0x50] sm:$0xff]
        %v2178 = vld [vmem:[%s2166 + $0x58] sm:$0xff]
        %v2179 = vld [vmem:[%s2166 + $0x60] sm:$0xff]
        %v2180 = vld [vmem:[%s2166 + $0x68] sm:$0xff]
        %v2181 = vld [vmem:[%s2166 + $0x70] sm:$0xff]
        %v2182 = vld [vmem:[%s2166 + $0x78] sm:$0xff]
        %v2183 = vld [vmem:[%s2166 + $0x80] sm:$0xff]
        %v2184 = vld [vmem:[%s2166 + $0x88] sm:$0xff]
        %v2185 = vld [vmem:[%s2166 + $0x90] sm:$0xff]
        %v2186 = vld [vmem:[%s2166 + $0x98] sm:$0xff]
        %v2187 = vld [vmem:[%s2166 + $0xa0] sm:$0xff]
        %v2188 = vld [vmem:[%s2166 + $0xa8] sm:$0xff]
        %v2189 = vld [vmem:[%s2166 + $0xb0] sm:$0xff]
        %v2190 = vld [vmem:[%s2166 + $0xb8] sm:$0xff]
        %v2191 = vld [vmem:[%s2166 + $0xc0] sm:$0xff]
        %v2192 = vld [vmem:[%s2166 + $0xc8] sm:$0xff]
        %v2193 = vld [vmem:[%s2166 + $0xd0] sm:$0xff]
        %v2194 = vld [vmem:[%s2166 + $0xd8] sm:$0xff]
        %v2195 = vld [vmem:[%s2166 + $0xe0] sm:$0xff]
        %v2196 = vld [vmem:[%s2166 + $0xe8] sm:$0xff]
        %v2197 = vld [vmem:[%s2166 + $0xf0] sm:$0xff]
        %v2198 = vld [vmem:[%s2166 + $0xf8] sm:$0xff]
        %v2199 = vld [vmem:[%s2166 + $0x100] sm:$0xff]
        %v2200 = vld [vmem:[%s2166 + $0x108] sm:$0xff]
        %v2235 = vunpack.c.l.b16 %v2167
        %v2236 = vunpack.c.h.b16 %v2167
        %v2237 = vunpack.c.l.b16 %v2168
        %v2238 = vunpack.c.h.b16 %v2168
        %v2239 = vunpack.c.l.b16 %v2169
        %v2240 = vunpack.c.h.b16 %v2169
        %v2241 = vunpack.c.l.b16 %v2170
        %v2242 = vunpack.c.h.b16 %v2170
        %v2243 = vunpack.c.l.b16 %v2171
        %v2244 = vunpack.c.h.b16 %v2171
        %v2245 = vunpack.c.l.b16 %v2172
        %v2246 = vunpack.c.h.b16 %v2172
        %v2247 = vunpack.c.l.b16 %v2173
        %v2248 = vunpack.c.h.b16 %v2173
        %v2249 = vunpack.c.l.b16 %v2174
        %v2250 = vunpack.c.h.b16 %v2174
        %v2251 = vunpack.c.l.b16 %v2175
        %v2252 = vunpack.c.h.b16 %v2175
        %v2253 = vunpack.c.l.b16 %v2176
        %v2254 = vunpack.c.h.b16 %v2176
        %v2255 = vunpack.c.l.b16 %v2177
        %v2256 = vunpack.c.h.b16 %v2177
        %v2257 = vunpack.c.l.b16 %v2178
        %v2258 = vunpack.c.h.b16 %v2178
        %v2259 = vunpack.c.l.b16 %v2179
        %v2260 = vunpack.c.h.b16 %v2179
        %v2261 = vunpack.c.l.b16 %v2180
        %v2262 = vunpack.c.h.b16 %v2180
        %v2263 = vunpack.c.l.b16 %v2181
        %v2264 = vunpack.c.h.b16 %v2181
        %v2265 = vunpack.c.l.b16 %v2182
        %v2266 = vunpack.c.h.b16 %v2182
        %v2267 = vunpack.c.l.b16 %v2183
        %v2268 = vunpack.c.h.b16 %v2183
        %v2269 = vunpack.c.l.b16 %v2184
        %v2270 = vunpack.c.h.b16 %v2184
        %v2271 = vunpack.c.l.b16 %v2185
        %v2272 = vunpack.c.h.b16 %v2185
        %v2273 = vunpack.c.l.b16 %v2186
        %v2274 = vunpack.c.h.b16 %v2186
        %v2275 = vunpack.c.l.b16 %v2187
        %v2276 = vunpack.c.h.b16 %v2187
        %v2277 = vunpack.c.l.b16 %v2188
        %v2278 = vunpack.c.h.b16 %v2188
        %v2279 = vunpack.c.l.b16 %v2189
        %v2280 = vunpack.c.h.b16 %v2189
        %v2281 = vunpack.c.l.b16 %v2190
        %v2282 = vunpack.c.h.b16 %v2190
        %v2283 = vunpack.c.l.b16 %v2191
        %v2284 = vunpack.c.h.b16 %v2191
        %v2285 = vunpack.c.l.b16 %v2192
        %v2286 = vunpack.c.h.b16 %v2192
        %v2287 = vunpack.c.l.b16 %v2193
        %v2288 = vunpack.c.h.b16 %v2193
        %v2289 = vunpack.c.l.b16 %v2194
        %v2290 = vunpack.c.h.b16 %v2194
        %v2291 = vunpack.c.l.b16 %v2195
        %v2292 = vunpack.c.h.b16 %v2195
        %v2293 = vunpack.c.l.b16 %v2196
        %v2294 = vunpack.c.h.b16 %v2196
        %v2295 = vunpack.c.l.b16 %v2197
        %v2296 = vunpack.c.h.b16 %v2197
        %v2297 = vunpack.c.l.b16 %v2198
        %v2298 = vunpack.c.h.b16 %v2198
        %v2299 = vunpack.c.l.b16 %v2199
        %v2300 = vunpack.c.h.b16 %v2199
        %v2301 = vunpack.c.l.b16 %v2200
        %v2302 = vunpack.c.h.b16 %v2200
        %v2303 = vpack.c.b16 %v2237, %v2235
        %v2304 = vpack.c.b16 %v2238, %v2236
        %v2305 = vpack.c.b16 %v2241, %v2239
        %v2306 = vpack.c.b16 %v2242, %v2240
        %v2307 = vpack.c.b16 %v2245, %v2243
        %v2308 = vpack.c.b16 %v2246, %v2244
        %v2309 = vpack.c.b16 %v2249, %v2247
        %v2310 = vpack.c.b16 %v2250, %v2248
        %v2311 = vpack.c.b16 %v2253, %v2251
        %v2312 = vpack.c.b16 %v2254, %v2252
        %v2313 = vpack.c.b16 %v2257, %v2255
        %v2314 = vpack.c.b16 %v2258, %v2256
        %v2315 = vpack.c.b16 %v2261, %v2259
        %v2316 = vpack.c.b16 %v2262, %v2260
        %v2317 = vpack.c.b16 %v2265, %v2263
        %v2318 = vpack.c.b16 %v2266, %v2264
        %v2319 = vpack.c.b16 %v2269, %v2267
        %v2320 = vpack.c.b16 %v2270, %v2268
        %v2321 = vpack.c.b16 %v2273, %v2271
        %v2322 = vpack.c.b16 %v2274, %v2272
        %v2323 = vpack.c.b16 %v2277, %v2275
        %v2324 = vpack.c.b16 %v2278, %v2276
        %v2325 = vpack.c.b16 %v2281, %v2279
        %v2326 = vpack.c.b16 %v2282, %v2280
        %v2327 = vpack.c.b16 %v2285, %v2283
        %v2328 = vpack.c.b16 %v2286, %v2284
        %v2329 = vpack.c.b16 %v2289, %v2287
        %v2330 = vpack.c.b16 %v2290, %v2288
        %v2331 = vpack.c.b16 %v2293, %v2291
        %v2332 = vpack.c.b16 %v2294, %v2292
        %v2333 = vpack.c.b16 %v2297, %v2295
        %v2334 = vpack.c.b16 %v2298, %v2296
        %v2335 = vpack.c.b16 %v2301, %v2299
        %v2336 = vpack.c.b16 %v2302, %v2300
        %vm2371 = vcmask 130048
        %v2373 = vsel %vm2371, %v2165, 0
        %2375 = vmatprep.subr.bf16.mxu0 %v2304
        %2376 = vmatpush1.bf16.msra.mxu0 %v2303
        %2377 = vmatprep.subr.bf16.mxu0 %v2306
        %2378 = vmatpush1.bf16.msra.mxu0 %v2305
        %2379 = vmatprep.subr.bf16.mxu0 %v2308
        %2380 = vmatpush1.bf16.msra.mxu0 %v2307
        %2381 = vmatprep.subr.bf16.mxu0 %v2310
        %2382 = vmatpush1.bf16.msra.mxu0 %v2309
        %2383 = vmatprep.subr.bf16.mxu0 %v2312
        %2384 = vmatpush1.bf16.msra.mxu0 %v2311
        %2385 = vmatprep.subr.bf16.mxu0 %v2314
        %2386 = vmatpush1.bf16.msra.mxu0 %v2313
        %2387 = vmatprep.subr.bf16.mxu0 %v2316
        %2388 = vmatpush1.bf16.msra.mxu0 %v2315
        %2389 = vmatprep.subr.bf16.mxu0 %v2318
        %2390 = vmatpush1.bf16.msra.mxu0 %v2317
        %2391 = vmatprep.subr.bf16.mxu0 %v2320
        %2392 = vmatpush1.bf16.msra.mxu0 %v2319
        %2393 = vmatprep.subr.bf16.mxu0 %v2322
        %2394 = vmatpush1.bf16.msra.mxu0 %v2321
        %2395 = vmatprep.subr.bf16.mxu0 %v2324
        %2396 = vmatpush1.bf16.msra.mxu0 %v2323
        %2397 = vmatprep.subr.bf16.mxu0 %v2326
        %2398 = vmatpush1.bf16.msra.mxu0 %v2325
        %2399 = vmatprep.subr.bf16.mxu0 %v2328
        %2400 = vmatpush1.bf16.msra.mxu0 %v2327
        %2401 = vmatprep.subr.bf16.mxu0 %v2330
        %2402 = vmatpush1.bf16.msra.mxu0 %v2329
        %2403 = vmatprep.subr.bf16.mxu0 %v2332
        %2404 = vmatpush1.bf16.msra.mxu0 %v2331
        %2405 = vmatprep.subr.bf16.mxu0 %v2334
        %2406 = vmatpush1.bf16.msra.mxu0 %v2333
        %2407 = vmatprep.mubr.bf16.mxu0 %v2164
        %2408 = vmatmul.mubr.bf16.gmra.mrb[0].mxu0 %v2163
        %v2409 = vpop.f32.mrb[0].mxu0
        %v2410 = vadd.f32 0.0, %v2409
        %v2411 = vpop.f32.mrb[0].mxu0
        %v2412 = vadd.f32 0.0, %v2411
        %v2413 = vpop.f32.mrb[0].mxu0
        %v2414 = vpop.f32.mrb[0].mxu0
        %2415 = vdwg.mxu0
        %2416 = vmatprep.subr.bf16.mxu0 %v2336
        %2417 = vmatpush1.bf16.msra.mxu0 %v2335
        %2418 = vmatprep.subr.bf16.mxu0 0
        %2419 = vmatpush1.bf16.msra.mxu0 0
        %2420 = vmatprep.subr.bf16.mxu0 0
        %2421 = vmatpush1.bf16.msra.mxu0 0
        %2422 = vmatprep.subr.bf16.mxu0 0
        %2423 = vmatpush1.bf16.msra.mxu0 0
        %2424 = vmatprep.subr.bf16.mxu0 0
        %2425 = vmatpush1.bf16.msra.mxu0 0
        %2426 = vmatprep.subr.bf16.mxu0 0
        %2427 = vmatpush1.bf16.msra.mxu0 0
        %2428 = vmatprep.subr.bf16.mxu0 0
        %2429 = vmatpush1.bf16.msra.mxu0 0
        %2430 = vmatprep.subr.bf16.mxu0 0
        %2431 = vmatpush1.bf16.msra.mxu0 0
        %2432 = vmatprep.subr.bf16.mxu0 0
        %2433 = vmatpush1.bf16.msra.mxu0 0
        %2434 = vmatprep.subr.bf16.mxu0 0
        %2435 = vmatpush1.bf16.msra.mxu0 0
        %2436 = vmatprep.subr.bf16.mxu0 0
        %2437 = vmatpush1.bf16.msra.mxu0 0
        %2438 = vmatprep.subr.bf16.mxu0 0
        %2439 = vmatpush1.bf16.msra.mxu0 0
        %2440 = vmatprep.subr.bf16.mxu0 0
        %2441 = vmatpush1.bf16.msra.mxu0 0
        %2442 = vmatprep.subr.bf16.mxu0 0
        %2443 = vmatpush1.bf16.msra.mxu0 0
        %2444 = vmatprep.subr.bf16.mxu0 0
        %2445 = vmatpush1.bf16.msra.mxu0 0
        %2446 = vmatprep.subr.bf16.mxu0 0
        %2447 = vmatpush1.bf16.msra.mxu0 0
        %2448 = vmatprep.mubr.bf16.mxu0 0
        %2449 = vmatmul.mubr.bf16.gmra.mrb[0].mxu0 %v2373
        %v2450 = vpop.f32.mrb[0].mxu0
        %v2451 = vadd.f32 %v2410, %v2450
        %v2452 = vpop.f32.mrb[0].mxu0
        %v2453 = vadd.f32 %v2412, %v2452
        %v2454 = vpop.f32.mrb[0].mxu0
        %v2455 = vpop.f32.mrb[0].mxu0
        %2456 = vdwg.mxu0
        %v2491 = vunpack.c.l.b16 %v2043
        %v2492 = vunpack.c.h.b16 %v2043
        %v2493 = vunpack.c.l.b16 %v2044
        %v2494 = vunpack.c.h.b16 %v2044
        %v2495 = vunpack.c.l.b16 %v2045
        %v2496 = vunpack.c.h.b16 %v2045
        %v2497 = vunpack.c.l.b16 %v2046
        %v2498 = vunpack.c.h.b16 %v2046
        %v2499 = vunpack.c.l.b16 %v2047
        %v2500 = vunpack.c.h.b16 %v2047
        %v2501 = vunpack.c.l.b16 %v2048
        %v2502 = vunpack.c.h.b16 %v2048
        %v2503 = vunpack.c.l.b16 %v2049
        %v2504 = vunpack.c.h.b16 %v2049
        %v2505 = vunpack.c.l.b16 %v2050
        %v2506 = vunpack.c.h.b16 %v2050
        %v2507 = vunpack.c.l.b16 %v2051
        %v2508 = vunpack.c.h.b16 %v2051
        %v2509 = vunpack.c.l.b16 %v2052
        %v2510 = vunpack.c.h.b16 %v2052
        %v2511 = vunpack.c.l.b16 %v2053
        %v2512 = vunpack.c.h.b16 %v2053
        %v2513 = vunpack.c.l.b16 %v2054
        %v2514 = vunpack.c.h.b16 %v2054
        %v2515 = vunpack.c.l.b16 %v2055
        %v2516 = vunpack.c.h.b16 %v2055
        %v2517 = vunpack.c.l.b16 %v2056
        %v2518 = vunpack.c.h.b16 %v2056
        %v2519 = vunpack.c.l.b16 %v2057
        %v2520 = vunpack.c.h.b16 %v2057
        %v2521 = vunpack.c.l.b16 %v2058
        %v2522 = vunpack.c.h.b16 %v2058
        %v2523 = vunpack.c.l.b16 %v2059
        %v2524 = vunpack.c.h.b16 %v2059
        %v2525 = vunpack.c.l.b16 %v2060
        %v2526 = vunpack.c.h.b16 %v2060
        %v2527 = vunpack.c.l.b16 %v2061
        %v2528 = vunpack.c.h.b16 %v2061
        %v2529 = vunpack.c.l.b16 %v2062
        %v2530 = vunpack.c.h.b16 %v2062
        %v2531 = vunpack.c.l.b16 %v2063
        %v2532 = vunpack.c.h.b16 %v2063
        %v2533 = vunpack.c.l.b16 %v2064
        %v2534 = vunpack.c.h.b16 %v2064
        %v2535 = vunpack.c.l.b16 %v2065
        %v2536 = vunpack.c.h.b16 %v2065
        %v2537 = vunpack.c.l.b16 %v2066
        %v2538 = vunpack.c.h.b16 %v2066
        %v2539 = vunpack.c.l.b16 %v2067
        %v2540 = vunpack.c.h.b16 %v2067
        %v2541 = vunpack.c.l.b16 %v2068
        %v2542 = vunpack.c.h.b16 %v2068
        %v2543 = vunpack.c.l.b16 %v2069
        %v2544 = vunpack.c.h.b16 %v2069
        %v2545 = vunpack.c.l.b16 %v2070
        %v2546 = vunpack.c.h.b16 %v2070
        %v2547 = vunpack.c.l.b16 %v2071
        %v2548 = vunpack.c.h.b16 %v2071
        %v2549 = vunpack.c.l.b16 %v2072
        %v2550 = vunpack.c.h.b16 %v2072
        %v2551 = vunpack.c.l.b16 %v2073
        %v2552 = vunpack.c.h.b16 %v2073
        %v2553 = vunpack.c.l.b16 %v2074
        %v2554 = vunpack.c.h.b16 %v2074
        %v2555 = vunpack.c.l.b16 %v2075
        %v2556 = vunpack.c.h.b16 %v2075
        %v2557 = vunpack.c.l.b16 %v2076
        %v2558 = vunpack.c.h.b16 %v2076
        %v2559 = vpack.c.b16 %v2493, %v2491
        %v2560 = vpack.c.b16 %v2494, %v2492
        %v2561 = vpack.c.b16 %v2497, %v2495
        %v2562 = vpack.c.b16 %v2498, %v2496
        %v2563 = vpack.c.b16 %v2501, %v2499
        %v2564 = vpack.c.b16 %v2502, %v2500
        %v2565 = vpack.c.b16 %v2505, %v2503
        %v2566 = vpack.c.b16 %v2506, %v2504
        %v2567 = vpack.c.b16 %v2509, %v2507
        %v2568 = vpack.c.b16 %v2510, %v2508
        %v2569 = vpack.c.b16 %v2513, %v2511
        %v2570 = vpack.c.b16 %v2514, %v2512
        %v2571 = vpack.c.b16 %v2517, %v2515
        %v2572 = vpack.c.b16 %v2518, %v2516
        %v2573 = vpack.c.b16 %v2521, %v2519
        %v2574 = vpack.c.b16 %v2522, %v2520
        %v2575 = vpack.c.b16 %v2525, %v2523
        %v2576 = vpack.c.b16 %v2526, %v2524
        %v2577 = vpack.c.b16 %v2529, %v2527
        %v2578 = vpack.c.b16 %v2530, %v2528
        %v2579 = vpack.c.b16 %v2533, %v2531
        %v2580 = vpack.c.b16 %v2534, %v2532
        %v2581 = vpack.c.b16 %v2537, %v2535
        %v2582 = vpack.c.b16 %v2538, %v2536
        %v2583 = vpack.c.b16 %v2541, %v2539
        %v2584 = vpack.c.b16 %v2542, %v2540
        %v2585 = vpack.c.b16 %v2545, %v2543
        %v2586 = vpack.c.b16 %v2546, %v2544
        %v2587 = vpack.c.b16 %v2549, %v2547
        %v2588 = vpack.c.b16 %v2550, %v2548
        %v2589 = vpack.c.b16 %v2553, %v2551
        %v2590 = vpack.c.b16 %v2554, %v2552
        %v2591 = vpack.c.b16 %v2557, %v2555
        %v2592 = vpack.c.b16 %v2558, %v2556
        %v2628 = vsel %vm2371, %v2042, 0
        %2630 = vmatprep.subr.bf16.mxu0 %v2560
        %2631 = vmatpush1.bf16.msra.mxu0 %v2559
        %2632 = vmatprep.subr.bf16.mxu0 %v2562
        %2633 = vmatpush1.bf16.msra.mxu0 %v2561
        %2634 = vmatprep.subr.bf16.mxu0 %v2564
        %2635 = vmatpush1.bf16.msra.mxu0 %v2563
        %2636 = vmatprep.subr.bf16.mxu0 %v2566
        %2637 = vmatpush1.bf16.msra.mxu0 %v2565
        %2638 = vmatprep.subr.bf16.mxu0 %v2568
        %2639 = vmatpush1.bf16.msra.mxu0 %v2567
        %2640 = vmatprep.subr.bf16.mxu0 %v2570
        %2641 = vmatpush1.bf16.msra.mxu0 %v2569
        %2642 = vmatprep.subr.bf16.mxu0 %v2572
        %2643 = vmatpush1.bf16.msra.mxu0 %v2571
        %2644 = vmatprep.subr.bf16.mxu0 %v2574
        %2645 = vmatpush1.bf16.msra.mxu0 %v2573
        %2646 = vmatprep.subr.bf16.mxu0 %v2576
        %2647 = vmatpush1.bf16.msra.mxu0 %v2575
        %2648 = vmatprep.subr.bf16.mxu0 %v2578
        %2649 = vmatpush1.bf16.msra.mxu0 %v2577
        %2650 = vmatprep.subr.bf16.mxu0 %v2580
        %2651 = vmatpush1.bf16.msra.mxu0 %v2579
        %2652 = vmatprep.subr.bf16.mxu0 %v2582
        %2653 = vmatpush1.bf16.msra.mxu0 %v2581
        %2654 = vmatprep.subr.bf16.mxu0 %v2584
        %2655 = vmatpush1.bf16.msra.mxu0 %v2583
        %2656 = vmatprep.subr.bf16.mxu0 %v2586
        %2657 = vmatpush1.bf16.msra.mxu0 %v2585
        %2658 = vmatprep.subr.bf16.mxu0 %v2588
        %2659 = vmatpush1.bf16.msra.mxu0 %v2587
        %2660 = vmatprep.subr.bf16.mxu0 %v2590
        %2661 = vmatpush1.bf16.msra.mxu0 %v2589
        %2662 = vmatprep.mubr.bf16.mxu0 %v2041
        %2663 = vmatmul.mubr.bf16.gmra.mrb[0].mxu0 %v2040
        %v2664 = vpop.f32.mrb[0].mxu0
        %v2665 = vadd.f32 %v2451, %v2664
        %v2666 = vpop.f32.mrb[0].mxu0
        %v2667 = vadd.f32 %v2453, %v2666
        %v2668 = vpop.f32.mrb[0].mxu0
        %v2669 = vpop.f32.mrb[0].mxu0
        %2670 = vdwg.mxu0
        %2671 = vmatprep.subr.bf16.mxu0 %v2592
        %2672 = vmatpush1.bf16.msra.mxu0 %v2591
        %2673 = vmatprep.subr.bf16.mxu0 0
        %2674 = vmatpush1.bf16.msra.mxu0 0
        %2675 = vmatprep.subr.bf16.mxu0 0
        %2676 = vmatpush1.bf16.msra.mxu0 0
        %2677 = vmatprep.subr.bf16.mxu0 0
        %2678 = vmatpush1.bf16.msra.mxu0 0
        %2679 = vmatprep.subr.bf16.mxu0 0
        %2680 = vmatpush1.bf16.msra.mxu0 0
        %2681 = vmatprep.subr.bf16.mxu0 0
        %2682 = vmatpush1.bf16.msra.mxu0 0
        %2683 = vmatprep.subr.bf16.mxu0 0
        %2684 = vmatpush1.bf16.msra.mxu0 0
        %2685 = vmatprep.subr.bf16.mxu0 0
        %2686 = vmatpush1.bf16.msra.mxu0 0
        %2687 = vmatprep.subr.bf16.mxu0 0
        %2688 = vmatpush1.bf16.msra.mxu0 0
        %2689 = vmatprep.subr.bf16.mxu0 0
        %2690 = vmatpush1.bf16.msra.mxu0 0
        %2691 = vmatprep.subr.bf16.mxu0 0
        %2692 = vmatpush1.bf16.msra.mxu0 0
        %2693 = vmatprep.subr.bf16.mxu0 0
        %2694 = vmatpush1.bf16.msra.mxu0 0
        %2695 = vmatprep.subr.bf16.mxu0 0
        %2696 = vmatpush1.bf16.msra.mxu0 0
        %2697 = vmatprep.subr.bf16.mxu0 0
        %2698 = vmatpush1.bf16.msra.mxu0 0
        %2699 = vmatprep.subr.bf16.mxu0 0
        %2700 = vmatpush1.bf16.msra.mxu0 0
        %2701 = vmatprep.subr.bf16.mxu0 0
        %2702 = vmatpush1.bf16.msra.mxu0 0
        %2703 = vmatprep.mubr.bf16.mxu0 0
        %2704 = vmatmul.mubr.bf16.gmra.mrb[0].mxu0 %v2628
        %v2705 = vpop.f32.mrb[0].mxu0
        %v2706 = vadd.f32 %v2665, %v2705
        %v2707 = vpop.f32.mrb[0].mxu0
        %v2708 = vadd.f32 %v2667, %v2707
        %v2709 = vpop.f32.mrb[0].mxu0
        %v2710 = vpop.f32.mrb[0].mxu0
        %2711 = vdwg.mxu0
        %s2712 = scalar_lea.vmem [#allocation8], 8
        %v2713 = vld [vmem:[%s2712] sm:$0xf]
        %v2715 = vsel %vm1943, %v2713, 0
        %2717 = vmatprep.subr.bf16.mxu0 %v1937
        %2718 = vmatpush1.bf16.msra.mxu0 %v1936
        %2719 = vmatprep.subr.bf16.mxu0 %v1954
        %2720 = vmatpush1.bf16.msra.mxu0 %v1951
        %2721 = vmatprep.subr.bf16.mxu0 0
        %2722 = vmatpush1.bf16.msra.mxu0 0
        %2723 = vmatprep.subr.bf16.mxu0 0
        %2724 = vmatpush1.bf16.msra.mxu0 0
        %2725 = vmatprep.subr.bf16.mxu0 0
        %2726 = vmatpush1.bf16.msra.mxu0 0
        %2727 = vmatprep.subr.bf16.mxu0 0
        %2728 = vmatpush1.bf16.msra.mxu0 0
        %2729 = vmatprep.subr.bf16.mxu0 0
        %2730 = vmatpush1.bf16.msra.mxu0 0
        %2731 = vmatprep.subr.bf16.mxu0 0
        %2732 = vmatpush1.bf16.msra.mxu0 0
        %2733 = vmatprep.subr.bf16.mxu0 0
        %2734 = vmatpush1.bf16.msra.mxu0 0
        %2735 = vmatprep.subr.bf16.mxu0 0
        %2736 = vmatpush1.bf16.msra.mxu0 0
        %2737 = vmatprep.subr.bf16.mxu0 0
        %2738 = vmatpush1.bf16.msra.mxu0 0
        %2739 = vmatprep.subr.bf16.mxu0 0
        %2740 = vmatpush1.bf16.msra.mxu0 0
        %2741 = vmatprep.subr.bf16.mxu0 0
        %2742 = vmatpush1.bf16.msra.mxu0 0
        %2743 = vmatprep.subr.bf16.mxu0 0
        %2744 = vmatpush1.bf16.msra.mxu0 0
        %2745 = vmatprep.subr.bf16.mxu0 0
        %2746 = vmatpush1.bf16.msra.mxu0 0
        %2747 = vmatprep.subr.bf16.mxu0 0
        %2748 = vmatpush1.bf16.msra.mxu0 0
        %2749 = vmatprep.mubr.bf16.mxu0 0
        %2750 = vmatmul.mubr.bf16.gmra.mrb[0].mxu0 %v2715
        %v2751 = vpop.f32.mrb[0].mxu0
        %v2752 = vadd.f32 0.0, %v2751
        %v2753 = vpop.f32.mrb[0].mxu0
        %v2754 = vadd.f32 0.0, %v2753
        %v2755 = vpop.f32.mrb[0].mxu0
        %v2756 = vpop.f32.mrb[0].mxu0
        %2757 = vdwg.mxu0
        %2758 = vmatprep.subr.bf16.mxu0 0
        %2759 = vmatpush1.bf16.msra.mxu0 %v1938
        %2760 = vmatprep.subr.bf16.mxu0 0
        %2761 = vmatpush1.bf16.msra.mxu0 %v1957
        %2762 = vmatprep.subr.bf16.mxu0 0
        %2763 = vmatpush1.bf16.msra.mxu0 0
        %2764 = vmatprep.subr.bf16.mxu0 0
        %2765 = vmatpush1.bf16.msra.mxu0 0
        %2766 = vmatprep.subr.bf16.mxu0 0
        %2767 = vmatpush1.bf16.msra.mxu0 0
        %2768 = vmatprep.subr.bf16.mxu0 0
        %2769 = vmatpush1.bf16.msra.mxu0 0
        %2770 = vmatprep.subr.bf16.mxu0 0
        %2771 = vmatpush1.bf16.msra.mxu0 0
        %2772 = vmatprep.subr.bf16.mxu0 0
        %2773 = vmatpush1.bf16.msra.mxu0 0
        %2774 = vmatprep.subr.bf16.mxu0 0
        %2775 = vmatpush1.bf16.msra.mxu0 0
        %2776 = vmatprep.subr.bf16.mxu0 0
        %2777 = vmatpush1.bf16.msra.mxu0 0
        %2778 = vmatprep.subr.bf16.mxu0 0
        %2779 = vmatpush1.bf16.msra.mxu0 0
        %2780 = vmatprep.subr.bf16.mxu0 0
        %2781 = vmatpush1.bf16.msra.mxu0 0
        %2782 = vmatprep.subr.bf16.mxu0 0
        %2783 = vmatpush1.bf16.msra.mxu0 0
        %2784 = vmatprep.subr.bf16.mxu0 0
        %2785 = vmatpush1.bf16.msra.mxu0 0
        %2786 = vmatprep.subr.bf16.mxu0 0
        %2787 = vmatpush1.bf16.msra.mxu0 0
        %2788 = vmatprep.subr.bf16.mxu0 0
        %2789 = vmatpush1.bf16.msra.mxu0 0
        %2790 = vmatprep.mubr.bf16.mxu0 0
        %2791 = vmatmul.mubr.bf16.gmra.mrb[0].mxu0 %v2715
        %v2792 = vpop.f32.mrb[0].mxu0
        %v2793 = vadd.f32 0.0, %v2792
        %v2794 = vpop.f32.mrb[0].mxu0
        %v2795 = vpop.f32.mrb[0].mxu0
        %v2796 = vpop.f32.mrb[0].mxu0
        %2797 = vdwg.mxu0
        %v2798 = vpack.c.bf16 %v2752, %v2752
        %v2799 = vpack.c.bf16 %v2754, %v2754
        %v2800 = vpack.c.bf16 %v2793, %v2793
        %s2801 = scalar_lea.vmem [#allocation10], 544
        %v2802 = vld [vmem:[%s2801] sm:$0xff]
        %v2803 = vld [vmem:[%s2801 + $0x8] sm:$0xff]
        %v2804 = vld [vmem:[%s2801 + $0x10] sm:$0xff]
        %v2805 = vld [vmem:[%s2801 + $0x18] sm:$0xff]
        %v2806 = vld [vmem:[%s2801 + $0x20] sm:$0xff]
        %v2807 = vld [vmem:[%s2801 + $0x28] sm:$0xff]
        %v2808 = vld [vmem:[%s2801 + $0x30] sm:$0xff]
        %v2809 = vld [vmem:[%s2801 + $0x38] sm:$0xff]
        %v2810 = vld [vmem:[%s2801 + $0x40] sm:$0xff]
        %v2811 = vld [vmem:[%s2801 + $0x48] sm:$0xff]
        %v2812 = vld [vmem:[%s2801 + $0x50] sm:$0xff]
        %v2813 = vld [vmem:[%s2801 + $0x58] sm:$0xff]
        %v2814 = vld [vmem:[%s2801 + $0x60] sm:$0xff]
        %v2815 = vld [vmem:[%s2801 + $0x68] sm:$0xff]
        %v2816 = vld [vmem:[%s2801 + $0x70] sm:$0xff]
        %v2817 = vld [vmem:[%s2801 + $0x78] sm:$0xff]
        %v2818 = vld [vmem:[%s2801 + $0x80] sm:$0xff]
        %v2819 = vld [vmem:[%s2801 + $0x88] sm:$0xff]
        %v2820 = vld [vmem:[%s2801 + $0x90] sm:$0xff]
        %v2821 = vld [vmem:[%s2801 + $0x98] sm:$0xff]
        %v2822 = vld [vmem:[%s2801 + $0xa0] sm:$0xff]
        %v2823 = vld [vmem:[%s2801 + $0xa8] sm:$0xff]
        %v2824 = vld [vmem:[%s2801 + $0xb0] sm:$0xff]
        %v2825 = vld [vmem:[%s2801 + $0xb8] sm:$0xff]
        %v2826 = vld [vmem:[%s2801 + $0xc0] sm:$0xff]
        %v2827 = vld [vmem:[%s2801 + $0xc8] sm:$0xff]
        %v2828 = vld [vmem:[%s2801 + $0xd0] sm:$0xff]
        %v2829 = vld [vmem:[%s2801 + $0xd8] sm:$0xff]
        %v2830 = vld [vmem:[%s2801 + $0xe0] sm:$0xff]
        %v2831 = vld [vmem:[%s2801 + $0xe8] sm:$0xff]
        %v2832 = vld [vmem:[%s2801 + $0xf0] sm:$0xff]
        %v2833 = vld [vmem:[%s2801 + $0xf8] sm:$0xff]
        %v2834 = vld [vmem:[%s2801 + $0x100] sm:$0xff]
        %v2835 = vld [vmem:[%s2801 + $0x108] sm:$0xff]
        %v2870 = vunpack.c.l.b16 %v2802
        %v2871 = vunpack.c.h.b16 %v2802
        %v2872 = vunpack.c.l.b16 %v2803
        %v2873 = vunpack.c.h.b16 %v2803
        %v2874 = vunpack.c.l.b16 %v2804
        %v2875 = vunpack.c.h.b16 %v2804
        %v2876 = vunpack.c.l.b16 %v2805
        %v2877 = vunpack.c.h.b16 %v2805
        %v2878 = vunpack.c.l.b16 %v2806
        %v2879 = vunpack.c.h.b16 %v2806
        %v2880 = vunpack.c.l.b16 %v2807
        %v2881 = vunpack.c.h.b16 %v2807
        %v2882 = vunpack.c.l.b16 %v2808
        %v2883 = vunpack.c.h.b16 %v2808
        %v2884 = vunpack.c.l.b16 %v2809
        %v2885 = vunpack.c.h.b16 %v2809
        %v2886 = vunpack.c.l.b16 %v2810
        %v2887 = vunpack.c.h.b16 %v2810
        %v2888 = vunpack.c.l.b16 %v2811
        %v2889 = vunpack.c.h.b16 %v2811
        %v2890 = vunpack.c.l.b16 %v2812
        %v2891 = vunpack.c.h.b16 %v2812
        %v2892 = vunpack.c.l.b16 %v2813
        %v2893 = vunpack.c.h.b16 %v2813
        %v2894 = vunpack.c.l.b16 %v2814
        %v2895 = vunpack.c.h.b16 %v2814
        %v2896 = vunpack.c.l.b16 %v2815
        %v2897 = vunpack.c.h.b16 %v2815
        %v2898 = vunpack.c.l.b16 %v2816
        %v2899 = vunpack.c.h.b16 %v2816
        %v2900 = vunpack.c.l.b16 %v2817
        %v2901 = vunpack.c.h.b16 %v2817
        %v2902 = vunpack.c.l.b16 %v2818
        %v2903 = vunpack.c.h.b16 %v2818
        %v2904 = vunpack.c.l.b16 %v2819
        %v2905 = vunpack.c.h.b16 %v2819
        %v2906 = vunpack.c.l.b16 %v2820
        %v2907 = vunpack.c.h.b16 %v2820
        %v2908 = vunpack.c.l.b16 %v2821
        %v2909 = vunpack.c.h.b16 %v2821
        %v2910 = vunpack.c.l.b16 %v2822
        %v2911 = vunpack.c.h.b16 %v2822
        %v2912 = vunpack.c.l.b16 %v2823
        %v2913 = vunpack.c.h.b16 %v2823
        %v2914 = vunpack.c.l.b16 %v2824
        %v2915 = vunpack.c.h.b16 %v2824
        %v2916 = vunpack.c.l.b16 %v2825
        %v2917 = vunpack.c.h.b16 %v2825
        %v2918 = vunpack.c.l.b16 %v2826
        %v2919 = vunpack.c.h.b16 %v2826
        %v2920 = vunpack.c.l.b16 %v2827
        %v2921 = vunpack.c.h.b16 %v2827
        %v2922 = vunpack.c.l.b16 %v2828
        %v2923 = vunpack.c.h.b16 %v2828
        %v2924 = vunpack.c.l.b16 %v2829
        %v2925 = vunpack.c.h.b16 %v2829
        %v2926 = vunpack.c.l.b16 %v2830
        %v2927 = vunpack.c.h.b16 %v2830
        %v2928 = vunpack.c.l.b16 %v2831
        %v2929 = vunpack.c.h.b16 %v2831
        %v2930 = vunpack.c.l.b16 %v2832
        %v2931 = vunpack.c.h.b16 %v2832
        %v2932 = vunpack.c.l.b16 %v2833
        %v2933 = vunpack.c.h.b16 %v2833
        %v2934 = vunpack.c.l.b16 %v2834
        %v2935 = vunpack.c.h.b16 %v2834
        %v2936 = vunpack.c.l.b16 %v2835
        %v2937 = vunpack.c.h.b16 %v2835
        %v2938 = vpack.c.b16 %v2872, %v2870
        %v2939 = vpack.c.b16 %v2873, %v2871
        %v2940 = vpack.c.b16 %v2876, %v2874
        %v2941 = vpack.c.b16 %v2877, %v2875
        %v2942 = vpack.c.b16 %v2880, %v2878
        %v2943 = vpack.c.b16 %v2881, %v2879
        %v2944 = vpack.c.b16 %v2884, %v2882
        %v2945 = vpack.c.b16 %v2885, %v2883
        %v2946 = vpack.c.b16 %v2888, %v2886
        %v2947 = vpack.c.b16 %v2889, %v2887
        %v2948 = vpack.c.b16 %v2892, %v2890
        %v2949 = vpack.c.b16 %v2893, %v2891
        %v2950 = vpack.c.b16 %v2896, %v2894
        %v2951 = vpack.c.b16 %v2897, %v2895
        %v2952 = vpack.c.b16 %v2900, %v2898
        %v2953 = vpack.c.b16 %v2901, %v2899
        %v2954 = vpack.c.b16 %v2904, %v2902
        %v2955 = vpack.c.b16 %v2905, %v2903
        %v2956 = vpack.c.b16 %v2908, %v2906
        %v2957 = vpack.c.b16 %v2909, %v2907
        %v2958 = vpack.c.b16 %v2912, %v2910
        %v2959 = vpack.c.b16 %v2913, %v2911
        %v2960 = vpack.c.b16 %v2916, %v2914
        %v2961 = vpack.c.b16 %v2917, %v2915
        %v2962 = vpack.c.b16 %v2920, %v2918
        %v2963 = vpack.c.b16 %v2921, %v2919
        %v2964 = vpack.c.b16 %v2924, %v2922
        %v2965 = vpack.c.b16 %v2925, %v2923
        %v2966 = vpack.c.b16 %v2928, %v2926
        %v2967 = vpack.c.b16 %v2929, %v2927
        %v2968 = vpack.c.b16 %v2932, %v2930
        %v2969 = vpack.c.b16 %v2933, %v2931
        %v2970 = vpack.c.b16 %v2936, %v2934
        %v2971 = vpack.c.b16 %v2937, %v2935
        %v3007 = vsel %vm2371, %v2800, 0
        %3009 = vmatprep.subr.bf16.mxu0 %v2939
        %3010 = vmatpush1.bf16.msra.mxu0 %v2938
        %3011 = vmatprep.subr.bf16.mxu0 %v2941
        %3012 = vmatpush1.bf16.msra.mxu0 %v2940
        %3013 = vmatprep.subr.bf16.mxu0 %v2943
        %3014 = vmatpush1.bf16.msra.mxu0 %v2942
        %3015 = vmatprep.subr.bf16.mxu0 %v2945
        %3016 = vmatpush1.bf16.msra.mxu0 %v2944
        %3017 = vmatprep.subr.bf16.mxu0 %v2947
        %3018 = vmatpush1.bf16.msra.mxu0 %v2946
        %3019 = vmatprep.subr.bf16.mxu0 %v2949
        %3020 = vmatpush1.bf16.msra.mxu0 %v2948
        %3021 = vmatprep.subr.bf16.mxu0 %v2951
        %3022 = vmatpush1.bf16.msra.mxu0 %v2950
        %3023 = vmatprep.subr.bf16.mxu0 %v2953
        %3024 = vmatpush1.bf16.msra.mxu0 %v2952
        %3025 = vmatprep.subr.bf16.mxu0 %v2955
        %3026 = vmatpush1.bf16.msra.mxu0 %v2954
        %3027 = vmatprep.subr.bf16.mxu0 %v2957
        %3028 = vmatpush1.bf16.msra.mxu0 %v2956
        %3029 = vmatprep.subr.bf16.mxu0 %v2959
        %3030 = vmatpush1.bf16.msra.mxu0 %v2958
        %3031 = vmatprep.subr.bf16.mxu0 %v2961
        %3032 = vmatpush1.bf16.msra.mxu0 %v2960
        %3033 = vmatprep.subr.bf16.mxu0 %v2963
        %3034 = vmatpush1.bf16.msra.mxu0 %v2962
        %3035 = vmatprep.subr.bf16.mxu0 %v2965
        %3036 = vmatpush1.bf16.msra.mxu0 %v2964
        %3037 = vmatprep.subr.bf16.mxu0 %v2967
        %3038 = vmatpush1.bf16.msra.mxu0 %v2966
        %3039 = vmatprep.subr.bf16.mxu0 %v2969
        %3040 = vmatpush1.bf16.msra.mxu0 %v2968
        %3041 = vmatprep.mubr.bf16.mxu0 %v2799
        %3042 = vmatmul.mubr.bf16.gmra.mrb[0].mxu0 %v2798
        %v3043 = vpop.f32.mrb[0].mxu0
        %v3044 = vadd.f32 0.0, %v3043
        %v3045 = vpop.f32.mrb[0].mxu0
        %v3046 = vadd.f32 0.0, %v3045
        %v3047 = vpop.f32.mrb[0].mxu0
        %v3048 = vpop.f32.mrb[0].mxu0
        %3049 = vdwg.mxu0
        %3050 = vmatprep.subr.bf16.mxu0 %v2971
        %3051 = vmatpush1.bf16.msra.mxu0 %v2970
        %3052 = vmatprep.subr.bf16.mxu0 0
        %3053 = vmatpush1.bf16.msra.mxu0 0
        %3054 = vmatprep.subr.bf16.mxu0 0
        %3055 = vmatpush1.bf16.msra.mxu0 0
        %3056 = vmatprep.subr.bf16.mxu0 0
        %3057 = vmatpush1.bf16.msra.mxu0 0
        %3058 = vmatprep.subr.bf16.mxu0 0
        %3059 = vmatpush1.bf16.msra.mxu0 0
        %3060 = vmatprep.subr.bf16.mxu0 0
        %3061 = vmatpush1.bf16.msra.mxu0 0
        %3062 = vmatprep.subr.bf16.mxu0 0
        %3063 = vmatpush1.bf16.msra.mxu0 0
        %3064 = vmatprep.subr.bf16.mxu0 0
        %3065 = vmatpush1.bf16.msra.mxu0 0
        %3066 = vmatprep.subr.bf16.mxu0 0
        %3067 = vmatpush1.bf16.msra.mxu0 0
        %3068 = vmatprep.subr.bf16.mxu0 0
        %3069 = vmatpush1.bf16.msra.mxu0 0
        %3070 = vmatprep.subr.bf16.mxu0 0
        %3071 = vmatpush1.bf16.msra.mxu0 0
        %3072 = vmatprep.subr.bf16.mxu0 0
        %3073 = vmatpush1.bf16.msra.mxu0 0
        %3074 = vmatprep.subr.bf16.mxu0 0
        %3075 = vmatpush1.bf16.msra.mxu0 0
        %3076 = vmatprep.subr.bf16.mxu0 0
        %3077 = vmatpush1.bf16.msra.mxu0 0
        %3078 = vmatprep.subr.bf16.mxu0 0
        %3079 = vmatpush1.bf16.msra.mxu0 0
        %3080 = vmatprep.subr.bf16.mxu0 0
        %3081 = vmatpush1.bf16.msra.mxu0 0
        %3082 = vmatprep.mubr.bf16.mxu0 0
        %3083 = vmatmul.mubr.bf16.gmra.mrb[0].mxu0 %v3007
        %v3084 = vpop.f32.mrb[0].mxu0
        %v3085 = vadd.f32 %v3044, %v3084
        %v3086 = vpop.f32.mrb[0].mxu0
        %v3087 = vadd.f32 %v3046, %v3086
        %v3088 = vpop.f32.mrb[0].mxu0
        %v3089 = vpop.f32.mrb[0].mxu0
        %3090 = vdwg.mxu0
        %v3091 = vadd.f32 %v2706, %v3085
        %v3092 = vadd.f32 %v2708, %v3087
        %v3093 = vld [vmem:[%s6] sm:$0x3]
        %v3095 = vlaneseq
        %v3096 = vshrl.u32 %v3095, 7
        %v3097 = vsub.s32 0, %v3096
        %v3098 = vrot.slane %v3093, %v3097
        %v3099 = vlaneseq
        %v3100 = vshrl.u32 %v3099, 7
        %v3101 = vsub.s32 1, %v3100
        %v3102 = vrot.slane %v3093, %v3101
        %v3105 = vadd.f32 %v3091, %v3098
        %v3106 = vadd.f32 %v3092, %v3102
        %v3107 = vmax.f32 %v3105, 0.0
        %v3108 = vmax.f32 %v3106, 0.0
        %v3109 = vpack.c.bf16 %v3107, %v3107
        %v3110 = vpack.c.bf16 %v3108, %v3108
        %v3111 = vld [vmem:[#allocation11] sm:$0xf]
        %v3112 = vld [vmem:[#allocation11 + $0x4] sm:$0xf]
        %v3113 = vld [vmem:[#allocation11 + $0x8] sm:$0xf]
        %v3114 = vld [vmem:[#allocation11 + $0xc] sm:$0xf]
        %v3115 = vld [vmem:[#allocation11 + $0x10] sm:$0xf]
        %v3116 = vld [vmem:[#allocation11 + $0x14] sm:$0xf]
        %v3117 = vld [vmem:[#allocation11 + $0x18] sm:$0xf]
        %v3118 = vld [vmem:[#allocation11 + $0x1c] sm:$0xf]
        %v3119 = vld [vmem:[#allocation11 + $0x20] sm:$0xf]
        %v3120 = vld [vmem:[#allocation11 + $0x24] sm:$0xf]
        %v3121 = vld [vmem:[#allocation11 + $0x28] sm:$0xf]
        %v3122 = vld [vmem:[#allocation11 + $0x2c] sm:$0xf]
        %v3123 = vld [vmem:[#allocation11 + $0x30] sm:$0xf]
        %v3124 = vld [vmem:[#allocation11 + $0x34] sm:$0xf]
        %v3125 = vld [vmem:[#allocation11 + $0x38] sm:$0xf]
        %v3126 = vld [vmem:[#allocation11 + $0x3c] sm:$0xf]
        %v3127 = vld [vmem:[#allocation11 + $0x40] sm:$0xf]
        %v3128 = vld [vmem:[#allocation11 + $0x44] sm:$0xf]
        %v3129 = vld [vmem:[#allocation11 + $0x48] sm:$0xf]
        %v3130 = vld [vmem:[#allocation11 + $0x4c] sm:$0xf]
        %v3131 = vld [vmem:[#allocation11 + $0x50] sm:$0xf]
        %v3132 = vld [vmem:[#allocation11 + $0x54] sm:$0xf]
        %v3133 = vld [vmem:[#allocation11 + $0x58] sm:$0xf]
        %v3134 = vld [vmem:[#allocation11 + $0x5c] sm:$0xf]
        %v3135 = vld [vmem:[#allocation11 + $0x60] sm:$0xf]
        %v3136 = vld [vmem:[#allocation11 + $0x64] sm:$0xf]
        %v3137 = vld [vmem:[#allocation11 + $0x68] sm:$0xf]
        %v3138 = vld [vmem:[#allocation11 + $0x6c] sm:$0xf]
        %v3139 = vld [vmem:[#allocation11 + $0x70] sm:$0xf]
        %v3140 = vld [vmem:[#allocation11 + $0x74] sm:$0xf]
        %v3141 = vld [vmem:[#allocation11 + $0x78] sm:$0xf]
        %v3142 = vld [vmem:[#allocation11 + $0x7c] sm:$0xf]
        %s3143 = scalar_lea.vmem [#allocation11], 128
        %v3144 = vld [vmem:[%s3143] sm:$0xf]
        %v3145 = vld [vmem:[%s3143 + $0x4] sm:$0xf]
        %v3146 = vld [vmem:[%s3143 + $0x8] sm:$0xf]
        %v3147 = vld [vmem:[%s3143 + $0xc] sm:$0xf]
        %v3148 = vld [vmem:[%s3143 + $0x10] sm:$0xf]
        %v3149 = vld [vmem:[%s3143 + $0x14] sm:$0xf]
        %v3150 = vld [vmem:[%s3143 + $0x18] sm:$0xf]
        %v3151 = vld [vmem:[%s3143 + $0x1c] sm:$0xf]
        %v3152 = vld [vmem:[%s3143 + $0x20] sm:$0xf]
        %v3153 = vld [vmem:[%s3143 + $0x24] sm:$0xf]
        %v3154 = vld [vmem:[%s3143 + $0x28] sm:$0xf]
        %v3155 = vld [vmem:[%s3143 + $0x2c] sm:$0xf]
        %v3156 = vld [vmem:[%s3143 + $0x30] sm:$0xf]
        %v3157 = vld [vmem:[%s3143 + $0x34] sm:$0xf]
        %v3158 = vld [vmem:[%s3143 + $0x38] sm:$0xf]
        %v3159 = vld [vmem:[%s3143 + $0x3c] sm:$0xf]
        %v3160 = vld [vmem:[%s3143 + $0x40] sm:$0xf]
        %v3161 = vld [vmem:[%s3143 + $0x44] sm:$0xf]
        %v3162 = vld [vmem:[%s3143 + $0x48] sm:$0xf]
        %v3163 = vld [vmem:[%s3143 + $0x4c] sm:$0xf]
        %v3164 = vld [vmem:[%s3143 + $0x50] sm:$0xf]
        %v3165 = vld [vmem:[%s3143 + $0x54] sm:$0xf]
        %v3166 = vld [vmem:[%s3143 + $0x58] sm:$0xf]
        %v3167 = vld [vmem:[%s3143 + $0x5c] sm:$0xf]
        %v3168 = vld [vmem:[%s3143 + $0x60] sm:$0xf]
        %v3169 = vld [vmem:[%s3143 + $0x64] sm:$0xf]
        %v3170 = vld [vmem:[%s3143 + $0x68] sm:$0xf]
        %v3171 = vld [vmem:[%s3143 + $0x6c] sm:$0xf]
        %v3172 = vld [vmem:[%s3143 + $0x70] sm:$0xf]
        %v3173 = vld [vmem:[%s3143 + $0x74] sm:$0xf]
        %v3174 = vld [vmem:[%s3143 + $0x78] sm:$0xf]
        %v3175 = vld [vmem:[%s3143 + $0x7c] sm:$0xf]
        %v3177 = vshrl.u32 %v3109, 16
        %v3180 = vshrl.u32 %v3110, 16
        %v3216 = vunpack.c.l.b16 %v3144
        %v3217 = vunpack.c.l.b16 %v3145
        %v3218 = vunpack.c.l.b16 %v3146
        %v3219 = vunpack.c.l.b16 %v3147
        %v3220 = vunpack.c.l.b16 %v3148
        %v3221 = vunpack.c.l.b16 %v3149
        %v3222 = vunpack.c.l.b16 %v3150
        %v3223 = vunpack.c.l.b16 %v3151
        %v3224 = vunpack.c.l.b16 %v3152
        %v3225 = vunpack.c.l.b16 %v3153
        %v3226 = vunpack.c.l.b16 %v3154
        %v3227 = vunpack.c.l.b16 %v3155
        %v3228 = vunpack.c.l.b16 %v3156
        %v3229 = vunpack.c.l.b16 %v3157
        %v3230 = vunpack.c.l.b16 %v3158
        %v3231 = vunpack.c.l.b16 %v3159
        %v3232 = vunpack.c.l.b16 %v3160
        %v3233 = vunpack.c.l.b16 %v3161
        %v3234 = vunpack.c.l.b16 %v3162
        %v3235 = vunpack.c.l.b16 %v3163
        %v3236 = vunpack.c.l.b16 %v3164
        %v3237 = vunpack.c.l.b16 %v3165
        %v3238 = vunpack.c.l.b16 %v3166
        %v3239 = vunpack.c.l.b16 %v3167
        %v3240 = vunpack.c.l.b16 %v3168
        %v3241 = vunpack.c.l.b16 %v3169
        %v3242 = vunpack.c.l.b16 %v3170
        %v3243 = vunpack.c.l.b16 %v3171
        %v3244 = vunpack.c.l.b16 %v3172
        %v3245 = vunpack.c.l.b16 %v3173
        %v3246 = vunpack.c.l.b16 %v3174
        %v3247 = vunpack.c.l.b16 %v3175
        %v3248 = vpack.c.b16 %v3217, %v3216
        %v3249 = vpack.c.b16 %v3219, %v3218
        %v3250 = vpack.c.b16 %v3221, %v3220
        %v3251 = vpack.c.b16 %v3223, %v3222
        %v3252 = vpack.c.b16 %v3225, %v3224
        %v3253 = vpack.c.b16 %v3227, %v3226
        %v3254 = vpack.c.b16 %v3229, %v3228
        %v3255 = vpack.c.b16 %v3231, %v3230
        %v3256 = vpack.c.b16 %v3233, %v3232
        %v3257 = vpack.c.b16 %v3235, %v3234
        %v3258 = vpack.c.b16 %v3237, %v3236
        %v3259 = vpack.c.b16 %v3239, %v3238
        %v3260 = vpack.c.b16 %v3241, %v3240
        %v3261 = vpack.c.b16 %v3243, %v3242
        %v3262 = vpack.c.b16 %v3245, %v3244
        %v3263 = vpack.c.b16 %v3247, %v3246
        %3280 = vmatprep.subr.bf16.mxu0 0
        %3281 = vmatpush1.bf16.msra.mxu0 %v3248
        %3282 = vmatprep.subr.bf16.mxu0 0
        %3283 = vmatpush1.bf16.msra.mxu0 %v3249
        %3284 = vmatprep.subr.bf16.mxu0 0
        %3285 = vmatpush1.bf16.msra.mxu0 %v3250
        %3286 = vmatprep.subr.bf16.mxu0 0
        %3287 = vmatpush1.bf16.msra.mxu0 %v3251
        %3288 = vmatprep.subr.bf16.mxu0 0
        %3289 = vmatpush1.bf16.msra.mxu0 %v3252
        %3290 = vmatprep.subr.bf16.mxu0 0
        %3291 = vmatpush1.bf16.msra.mxu0 %v3253
        %3292 = vmatprep.subr.bf16.mxu0 0
        %3293 = vmatpush1.bf16.msra.mxu0 %v3254
        %3294 = vmatprep.subr.bf16.mxu0 0
        %3295 = vmatpush1.bf16.msra.mxu0 %v3255
        %3296 = vmatprep.subr.bf16.mxu0 0
        %3297 = vmatpush1.bf16.msra.mxu0 %v3256
        %3298 = vmatprep.subr.bf16.mxu0 0
        %3299 = vmatpush1.bf16.msra.mxu0 %v3257
        %3300 = vmatprep.subr.bf16.mxu0 0
        %3301 = vmatpush1.bf16.msra.mxu0 %v3258
        %3302 = vmatprep.subr.bf16.mxu0 0
        %3303 = vmatpush1.bf16.msra.mxu0 %v3259
        %3304 = vmatprep.subr.bf16.mxu0 0
        %3305 = vmatpush1.bf16.msra.mxu0 %v3260
        %3306 = vmatprep.subr.bf16.mxu0 0
        %3307 = vmatpush1.bf16.msra.mxu0 %v3261
        %3308 = vmatprep.subr.bf16.mxu0 0
        %3309 = vmatpush1.bf16.msra.mxu0 %v3262
        %3310 = vmatprep.subr.bf16.mxu0 0
        %3311 = vmatpush1.bf16.msra.mxu0 %v3263
        %3312 = vmatprep.mubr.bf16.mxu0 %v3180
        %3313 = vmatmul.mubr.bf16.gmra.mrb[0].mxu0 %v3177
        %v3314 = vpop.f32.mrb[0].mxu0
        %v3315 = vadd.f32 0.0, %v3314
        %v3316 = vpop.f32.mrb[0].mxu0
        %v3317 = vpop.f32.mrb[0].mxu0
        %v3318 = vpop.f32.mrb[0].mxu0
        %3319 = vdwg.mxu0
        %v3352 = vunpack.c.l.b16 %v3111
        %v3353 = vunpack.c.l.b16 %v3112
        %v3354 = vunpack.c.l.b16 %v3113
        %v3355 = vunpack.c.l.b16 %v3114
        %v3356 = vunpack.c.l.b16 %v3115
        %v3357 = vunpack.c.l.b16 %v3116
        %v3358 = vunpack.c.l.b16 %v3117
        %v3359 = vunpack.c.l.b16 %v3118
        %v3360 = vunpack.c.l.b16 %v3119
        %v3361 = vunpack.c.l.b16 %v3120
        %v3362 = vunpack.c.l.b16 %v3121
        %v3363 = vunpack.c.l.b16 %v3122
        %v3364 = vunpack.c.l.b16 %v3123
        %v3365 = vunpack.c.l.b16 %v3124
        %v3366 = vunpack.c.l.b16 %v3125
        %v3367 = vunpack.c.l.b16 %v3126
        %v3368 = vunpack.c.l.b16 %v3127
        %v3369 = vunpack.c.l.b16 %v3128
        %v3370 = vunpack.c.l.b16 %v3129
        %v3371 = vunpack.c.l.b16 %v3130
        %v3372 = vunpack.c.l.b16 %v3131
        %v3373 = vunpack.c.l.b16 %v3132
        %v3374 = vunpack.c.l.b16 %v3133
        %v3375 = vunpack.c.l.b16 %v3134
        %v3376 = vunpack.c.l.b16 %v3135
        %v3377 = vunpack.c.l.b16 %v3136
        %v3378 = vunpack.c.l.b16 %v3137
        %v3379 = vunpack.c.l.b16 %v3138
        %v3380 = vunpack.c.l.b16 %v3139
        %v3381 = vunpack.c.l.b16 %v3140
        %v3382 = vunpack.c.l.b16 %v3141
        %v3383 = vunpack.c.l.b16 %v3142
        %v3384 = vpack.c.b16 %v3353, %v3352
        %v3385 = vpack.c.b16 %v3355, %v3354
        %v3386 = vpack.c.b16 %v3357, %v3356
        %v3387 = vpack.c.b16 %v3359, %v3358
        %v3388 = vpack.c.b16 %v3361, %v3360
        %v3389 = vpack.c.b16 %v3363, %v3362
        %v3390 = vpack.c.b16 %v3365, %v3364
        %v3391 = vpack.c.b16 %v3367, %v3366
        %v3392 = vpack.c.b16 %v3369, %v3368
        %v3393 = vpack.c.b16 %v3371, %v3370
        %v3394 = vpack.c.b16 %v3373, %v3372
        %v3395 = vpack.c.b16 %v3375, %v3374
        %v3396 = vpack.c.b16 %v3377, %v3376
        %v3397 = vpack.c.b16 %v3379, %v3378
        %v3398 = vpack.c.b16 %v3381, %v3380
        %v3399 = vpack.c.b16 %v3383, %v3382
        %3416 = vmatprep.subr.bf16.mxu0 0
        %3417 = vmatpush1.bf16.msra.mxu0 %v3384
        %3418 = vmatprep.subr.bf16.mxu0 0
        %3419 = vmatpush1.bf16.msra.mxu0 %v3385
        %3420 = vmatprep.subr.bf16.mxu0 0
        %3421 = vmatpush1.bf16.msra.mxu0 %v3386
        %3422 = vmatprep.subr.bf16.mxu0 0
        %3423 = vmatpush1.bf16.msra.mxu0 %v3387
        %3424 = vmatprep.subr.bf16.mxu0 0
        %3425 = vmatpush1.bf16.msra.mxu0 %v3388
        %3426 = vmatprep.subr.bf16.mxu0 0
        %3427 = vmatpush1.bf16.msra.mxu0 %v3389
        %3428 = vmatprep.subr.bf16.mxu0 0
        %3429 = vmatpush1.bf16.msra.mxu0 %v3390
        %3430 = vmatprep.subr.bf16.mxu0 0
        %3431 = vmatpush1.bf16.msra.mxu0 %v3391
        %3432 = vmatprep.subr.bf16.mxu0 0
        %3433 = vmatpush1.bf16.msra.mxu0 %v3392
        %3434 = vmatprep.subr.bf16.mxu0 0
        %3435 = vmatpush1.bf16.msra.mxu0 %v3393
        %3436 = vmatprep.subr.bf16.mxu0 0
        %3437 = vmatpush1.bf16.msra.mxu0 %v3394
        %3438 = vmatprep.subr.bf16.mxu0 0
        %3439 = vmatpush1.bf16.msra.mxu0 %v3395
        %3440 = vmatprep.subr.bf16.mxu0 0
        %3441 = vmatpush1.bf16.msra.mxu0 %v3396
        %3442 = vmatprep.subr.bf16.mxu0 0
        %3443 = vmatpush1.bf16.msra.mxu0 %v3397
        %3444 = vmatprep.subr.bf16.mxu0 0
        %3445 = vmatpush1.bf16.msra.mxu0 %v3398
        %3446 = vmatprep.subr.bf16.mxu0 0
        %3447 = vmatpush1.bf16.msra.mxu0 %v3399
        %3448 = vmatprep.mubr.bf16.mxu0 %v3110
        %3449 = vmatmul.mubr.bf16.gmra.mrb[0].mxu0 %v3109
        %v3450 = vpop.f32.mrb[0].mxu0
        %v3451 = vadd.f32 %v3315, %v3450
        %v3452 = vpop.f32.mrb[0].mxu0
        %v3453 = vpop.f32.mrb[0].mxu0
        %v3454 = vpop.f32.mrb[0].mxu0
        %3455 = vdwg.mxu0
        %s3456 = scalar_lea.vmem [#allocation11], 256
        %v3457 = vld [vmem:[%s3456] sm:$0xf]
        %v3458 = vld [vmem:[%s3456 + $0x4] sm:$0xf]
        %v3459 = vld [vmem:[%s3456 + $0x8] sm:$0xf]
        %v3460 = vld [vmem:[%s3456 + $0xc] sm:$0xf]
        %v3461 = vld [vmem:[%s3456 + $0x10] sm:$0xf]
        %v3462 = vld [vmem:[%s3456 + $0x14] sm:$0xf]
        %v3463 = vld [vmem:[%s3456 + $0x18] sm:$0xf]
        %v3464 = vld [vmem:[%s3456 + $0x1c] sm:$0xf]
        %v3465 = vld [vmem:[%s3456 + $0x20] sm:$0xf]
        %v3466 = vld [vmem:[%s3456 + $0x24] sm:$0xf]
        %v3467 = vld [vmem:[%s3456 + $0x28] sm:$0xf]
        %v3468 = vld [vmem:[%s3456 + $0x2c] sm:$0xf]
        %v3469 = vld [vmem:[%s3456 + $0x30] sm:$0xf]
        %v3470 = vld [vmem:[%s3456 + $0x34] sm:$0xf]
        %v3471 = vld [vmem:[%s3456 + $0x38] sm:$0xf]
        %v3472 = vld [vmem:[%s3456 + $0x3c] sm:$0xf]
        %v3473 = vld [vmem:[%s3456 + $0x40] sm:$0xf]
        %v3474 = vld [vmem:[%s3456 + $0x44] sm:$0xf]
        %v3475 = vld [vmem:[%s3456 + $0x48] sm:$0xf]
        %v3476 = vld [vmem:[%s3456 + $0x4c] sm:$0xf]
        %v3477 = vld [vmem:[%s3456 + $0x50] sm:$0xf]
        %v3478 = vld [vmem:[%s3456 + $0x54] sm:$0xf]
        %v3479 = vld [vmem:[%s3456 + $0x58] sm:$0xf]
        %v3480 = vld [vmem:[%s3456 + $0x5c] sm:$0xf]
        %v3481 = vld [vmem:[%s3456 + $0x60] sm:$0xf]
        %v3482 = vld [vmem:[%s3456 + $0x64] sm:$0xf]
        %v3483 = vld [vmem:[%s3456 + $0x68] sm:$0xf]
        %v3484 = vld [vmem:[%s3456 + $0x6c] sm:$0xf]
        %v3485 = vld [vmem:[%s3456 + $0x70] sm:$0xf]
        %v3486 = vld [vmem:[%s3456 + $0x74] sm:$0xf]
        %v3487 = vld [vmem:[%s3456 + $0x78] sm:$0xf]
        %v3488 = vld [vmem:[%s3456 + $0x7c] sm:$0xf]
        %v3491 = vrot.slane %v3109, 1
        %v3492 = vrot.slane %v3110, 1
        %v3527 = vunpack.c.l.b16 %v3457
        %v3528 = vunpack.c.l.b16 %v3458
        %v3529 = vunpack.c.l.b16 %v3459
        %v3530 = vunpack.c.l.b16 %v3460
        %v3531 = vunpack.c.l.b16 %v3461
        %v3532 = vunpack.c.l.b16 %v3462
        %v3533 = vunpack.c.l.b16 %v3463
        %v3534 = vunpack.c.l.b16 %v3464
        %v3535 = vunpack.c.l.b16 %v3465
        %v3536 = vunpack.c.l.b16 %v3466
        %v3537 = vunpack.c.l.b16 %v3467
        %v3538 = vunpack.c.l.b16 %v3468
        %v3539 = vunpack.c.l.b16 %v3469
        %v3540 = vunpack.c.l.b16 %v3470
        %v3541 = vunpack.c.l.b16 %v3471
        %v3542 = vunpack.c.l.b16 %v3472
        %v3543 = vunpack.c.l.b16 %v3473
        %v3544 = vunpack.c.l.b16 %v3474
        %v3545 = vunpack.c.l.b16 %v3475
        %v3546 = vunpack.c.l.b16 %v3476
        %v3547 = vunpack.c.l.b16 %v3477
        %v3548 = vunpack.c.l.b16 %v3478
        %v3549 = vunpack.c.l.b16 %v3479
        %v3550 = vunpack.c.l.b16 %v3480
        %v3551 = vunpack.c.l.b16 %v3481
        %v3552 = vunpack.c.l.b16 %v3482
        %v3553 = vunpack.c.l.b16 %v3483
        %v3554 = vunpack.c.l.b16 %v3484
        %v3555 = vunpack.c.l.b16 %v3485
        %v3556 = vunpack.c.l.b16 %v3486
        %v3557 = vunpack.c.l.b16 %v3487
        %v3558 = vunpack.c.l.b16 %v3488
        %v3559 = vpack.c.b16 %v3528, %v3527
        %v3560 = vpack.c.b16 %v3530, %v3529
        %v3561 = vpack.c.b16 %v3532, %v3531
        %v3562 = vpack.c.b16 %v3534, %v3533
        %v3563 = vpack.c.b16 %v3536, %v3535
        %v3564 = vpack.c.b16 %v3538, %v3537
        %v3565 = vpack.c.b16 %v3540, %v3539
        %v3566 = vpack.c.b16 %v3542, %v3541
        %v3567 = vpack.c.b16 %v3544, %v3543
        %v3568 = vpack.c.b16 %v3546, %v3545
        %v3569 = vpack.c.b16 %v3548, %v3547
        %v3570 = vpack.c.b16 %v3550, %v3549
        %v3571 = vpack.c.b16 %v3552, %v3551
        %v3572 = vpack.c.b16 %v3554, %v3553
        %v3573 = vpack.c.b16 %v3556, %v3555
        %v3574 = vpack.c.b16 %v3558, %v3557
        %3591 = vmatprep.subr.bf16.mxu0 0
        %3592 = vmatpush1.bf16.msra.mxu0 %v3559
        %3593 = vmatprep.subr.bf16.mxu0 0
        %3594 = vmatpush1.bf16.msra.mxu0 %v3560
        %3595 = vmatprep.subr.bf16.mxu0 0
        %3596 = vmatpush1.bf16.msra.mxu0 %v3561
        %3597 = vmatprep.subr.bf16.mxu0 0
        %3598 = vmatpush1.bf16.msra.mxu0 %v3562
        %3599 = vmatprep.subr.bf16.mxu0 0
        %3600 = vmatpush1.bf16.msra.mxu0 %v3563
        %3601 = vmatprep.subr.bf16.mxu0 0
        %3602 = vmatpush1.bf16.msra.mxu0 %v3564
        %3603 = vmatprep.subr.bf16.mxu0 0
        %3604 = vmatpush1.bf16.msra.mxu0 %v3565
        %3605 = vmatprep.subr.bf16.mxu0 0
        %3606 = vmatpush1.bf16.msra.mxu0 %v3566
        %3607 = vmatprep.subr.bf16.mxu0 0
        %3608 = vmatpush1.bf16.msra.mxu0 %v3567
        %3609 = vmatprep.subr.bf16.mxu0 0
        %3610 = vmatpush1.bf16.msra.mxu0 %v3568
        %3611 = vmatprep.subr.bf16.mxu0 0
        %3612 = vmatpush1.bf16.msra.mxu0 %v3569
        %3613 = vmatprep.subr.bf16.mxu0 0
        %3614 = vmatpush1.bf16.msra.mxu0 %v3570
        %3615 = vmatprep.subr.bf16.mxu0 0
        %3616 = vmatpush1.bf16.msra.mxu0 %v3571
        %3617 = vmatprep.subr.bf16.mxu0 0
        %3618 = vmatpush1.bf16.msra.mxu0 %v3572
        %3619 = vmatprep.subr.bf16.mxu0 0
        %3620 = vmatpush1.bf16.msra.mxu0 %v3573
        %3621 = vmatprep.subr.bf16.mxu0 0
        %3622 = vmatpush1.bf16.msra.mxu0 %v3574
        %3623 = vmatprep.mubr.bf16.mxu0 %v3492
        %3624 = vmatmul.mubr.bf16.gmra.mrb[0].mxu0 %v3491
        %v3625 = vpop.f32.mrb[0].mxu0
        %v3626 = vadd.f32 0.0, %v3625
        %v3627 = vpop.f32.mrb[0].mxu0
        %v3628 = vpop.f32.mrb[0].mxu0
        %v3629 = vpop.f32.mrb[0].mxu0
        %3630 = vdwg.mxu0
        %v3631 = vadd.f32 %v3451, %v3626
        %s3632 = scalar_lea.vmem [#allocation11], 384
        %v3633 = vld [vmem:[%s3632] sm:$0xf]
        %v3634 = vld [vmem:[%s3632 + $0x4] sm:$0xf]
        %v3635 = vld [vmem:[%s3632 + $0x8] sm:$0xf]
        %v3636 = vld [vmem:[%s3632 + $0xc] sm:$0xf]
        %v3637 = vld [vmem:[%s3632 + $0x10] sm:$0xf]
        %v3638 = vld [vmem:[%s3632 + $0x14] sm:$0xf]
        %v3639 = vld [vmem:[%s3632 + $0x18] sm:$0xf]
        %v3640 = vld [vmem:[%s3632 + $0x1c] sm:$0xf]
        %v3641 = vld [vmem:[%s3632 + $0x20] sm:$0xf]
        %v3642 = vld [vmem:[%s3632 + $0x24] sm:$0xf]
        %v3643 = vld [vmem:[%s3632 + $0x28] sm:$0xf]
        %v3644 = vld [vmem:[%s3632 + $0x2c] sm:$0xf]
        %v3645 = vld [vmem:[%s3632 + $0x30] sm:$0xf]
        %v3646 = vld [vmem:[%s3632 + $0x34] sm:$0xf]
        %v3647 = vld [vmem:[%s3632 + $0x38] sm:$0xf]
        %v3648 = vld [vmem:[%s3632 + $0x3c] sm:$0xf]
        %v3649 = vld [vmem:[%s3632 + $0x40] sm:$0xf]
        %v3650 = vld [vmem:[%s3632 + $0x44] sm:$0xf]
        %v3651 = vld [vmem:[%s3632 + $0x48] sm:$0xf]
        %v3652 = vld [vmem:[%s3632 + $0x4c] sm:$0xf]
        %v3653 = vld [vmem:[%s3632 + $0x50] sm:$0xf]
        %v3654 = vld [vmem:[%s3632 + $0x54] sm:$0xf]
        %v3655 = vld [vmem:[%s3632 + $0x58] sm:$0xf]
        %v3656 = vld [vmem:[%s3632 + $0x5c] sm:$0xf]
        %v3657 = vld [vmem:[%s3632 + $0x60] sm:$0xf]
        %v3658 = vld [vmem:[%s3632 + $0x64] sm:$0xf]
        %v3659 = vld [vmem:[%s3632 + $0x68] sm:$0xf]
        %v3660 = vld [vmem:[%s3632 + $0x6c] sm:$0xf]
        %v3661 = vld [vmem:[%s3632 + $0x70] sm:$0xf]
        %v3662 = vld [vmem:[%s3632 + $0x74] sm:$0xf]
        %v3663 = vld [vmem:[%s3632 + $0x78] sm:$0xf]
        %v3664 = vld [vmem:[%s3632 + $0x7c] sm:$0xf]
        %v3665 = vrot.slane %v3177, 1
        %v3666 = vrot.slane %v3180, 1
        %v3701 = vunpack.c.l.b16 %v3633
        %v3702 = vunpack.c.l.b16 %v3634
        %v3703 = vunpack.c.l.b16 %v3635
        %v3704 = vunpack.c.l.b16 %v3636
        %v3705 = vunpack.c.l.b16 %v3637
        %v3706 = vunpack.c.l.b16 %v3638
        %v3707 = vunpack.c.l.b16 %v3639
        %v3708 = vunpack.c.l.b16 %v3640
        %v3709 = vunpack.c.l.b16 %v3641
        %v3710 = vunpack.c.l.b16 %v3642
        %v3711 = vunpack.c.l.b16 %v3643
        %v3712 = vunpack.c.l.b16 %v3644
        %v3713 = vunpack.c.l.b16 %v3645
        %v3714 = vunpack.c.l.b16 %v3646
        %v3715 = vunpack.c.l.b16 %v3647
        %v3716 = vunpack.c.l.b16 %v3648
        %v3717 = vunpack.c.l.b16 %v3649
        %v3718 = vunpack.c.l.b16 %v3650
        %v3719 = vunpack.c.l.b16 %v3651
        %v3720 = vunpack.c.l.b16 %v3652
        %v3721 = vunpack.c.l.b16 %v3653
        %v3722 = vunpack.c.l.b16 %v3654
        %v3723 = vunpack.c.l.b16 %v3655
        %v3724 = vunpack.c.l.b16 %v3656
        %v3725 = vunpack.c.l.b16 %v3657
        %v3726 = vunpack.c.l.b16 %v3658
        %v3727 = vunpack.c.l.b16 %v3659
        %v3728 = vunpack.c.l.b16 %v3660
        %v3729 = vunpack.c.l.b16 %v3661
        %v3730 = vunpack.c.l.b16 %v3662
        %v3731 = vunpack.c.l.b16 %v3663
        %v3732 = vunpack.c.l.b16 %v3664
        %v3733 = vpack.c.b16 %v3702, %v3701
        %v3734 = vpack.c.b16 %v3704, %v3703
        %v3735 = vpack.c.b16 %v3706, %v3705
        %v3736 = vpack.c.b16 %v3708, %v3707
        %v3737 = vpack.c.b16 %v3710, %v3709
        %v3738 = vpack.c.b16 %v3712, %v3711
        %v3739 = vpack.c.b16 %v3714, %v3713
        %v3740 = vpack.c.b16 %v3716, %v3715
        %v3741 = vpack.c.b16 %v3718, %v3717
        %v3742 = vpack.c.b16 %v3720, %v3719
        %v3743 = vpack.c.b16 %v3722, %v3721
        %v3744 = vpack.c.b16 %v3724, %v3723
        %v3745 = vpack.c.b16 %v3726, %v3725
        %v3746 = vpack.c.b16 %v3728, %v3727
        %v3747 = vpack.c.b16 %v3730, %v3729
        %v3748 = vpack.c.b16 %v3732, %v3731
        %3765 = vmatprep.subr.bf16.mxu0 0
        %3766 = vmatpush1.bf16.msra.mxu0 %v3733
        %3767 = vmatprep.subr.bf16.mxu0 0
        %3768 = vmatpush1.bf16.msra.mxu0 %v3734
        %3769 = vmatprep.subr.bf16.mxu0 0
        %3770 = vmatpush1.bf16.msra.mxu0 %v3735
        %3771 = vmatprep.subr.bf16.mxu0 0
        %3772 = vmatpush1.bf16.msra.mxu0 %v3736
        %3773 = vmatprep.subr.bf16.mxu0 0
        %3774 = vmatpush1.bf16.msra.mxu0 %v3737
        %3775 = vmatprep.subr.bf16.mxu0 0
        %3776 = vmatpush1.bf16.msra.mxu0 %v3738
        %3777 = vmatprep.subr.bf16.mxu0 0
        %3778 = vmatpush1.bf16.msra.mxu0 %v3739
        %3779 = vmatprep.subr.bf16.mxu0 0
        %3780 = vmatpush1.bf16.msra.mxu0 %v3740
        %3781 = vmatprep.subr.bf16.mxu0 0
        %3782 = vmatpush1.bf16.msra.mxu0 %v3741
        %3783 = vmatprep.subr.bf16.mxu0 0
        %3784 = vmatpush1.bf16.msra.mxu0 %v3742
        %3785 = vmatprep.subr.bf16.mxu0 0
        %3786 = vmatpush1.bf16.msra.mxu0 %v3743
        %3787 = vmatprep.subr.bf16.mxu0 0
        %3788 = vmatpush1.bf16.msra.mxu0 %v3744
        %3789 = vmatprep.subr.bf16.mxu0 0
        %3790 = vmatpush1.bf16.msra.mxu0 %v3745
        %3791 = vmatprep.subr.bf16.mxu0 0
        %3792 = vmatpush1.bf16.msra.mxu0 %v3746
        %3793 = vmatprep.subr.bf16.mxu0 0
        %3794 = vmatpush1.bf16.msra.mxu0 %v3747
        %3795 = vmatprep.subr.bf16.mxu0 0
        %3796 = vmatpush1.bf16.msra.mxu0 %v3748
        %3797 = vmatprep.mubr.bf16.mxu0 %v3666
        %3798 = vmatmul.mubr.bf16.gmra.mrb[0].mxu0 %v3665
        %v3799 = vpop.f32.mrb[0].mxu0
        %v3800 = vadd.f32 0.0, %v3799
        %v3801 = vpop.f32.mrb[0].mxu0
        %v3802 = vpop.f32.mrb[0].mxu0
        %v3803 = vpop.f32.mrb[0].mxu0
        %3804 = vdwg.mxu0
        %v3805 = vadd.f32 %v3631, %v3800
        %s3806 = scalar_lea.vmem [#allocation11], 512
        %v3807 = vld [vmem:[%s3806] sm:$0xf]
        %v3808 = vld [vmem:[%s3806 + $0x4] sm:$0xf]
        %v3809 = vld [vmem:[%s3806 + $0x8] sm:$0xf]
        %v3810 = vld [vmem:[%s3806 + $0xc] sm:$0xf]
        %v3811 = vld [vmem:[%s3806 + $0x10] sm:$0xf]
        %v3812 = vld [vmem:[%s3806 + $0x14] sm:$0xf]
        %v3813 = vld [vmem:[%s3806 + $0x18] sm:$0xf]
        %v3814 = vld [vmem:[%s3806 + $0x1c] sm:$0xf]
        %v3815 = vld [vmem:[%s3806 + $0x20] sm:$0xf]
        %v3816 = vld [vmem:[%s3806 + $0x24] sm:$0xf]
        %v3817 = vld [vmem:[%s3806 + $0x28] sm:$0xf]
        %v3818 = vld [vmem:[%s3806 + $0x2c] sm:$0xf]
        %v3819 = vld [vmem:[%s3806 + $0x30] sm:$0xf]
        %v3820 = vld [vmem:[%s3806 + $0x34] sm:$0xf]
        %v3821 = vld [vmem:[%s3806 + $0x38] sm:$0xf]
        %v3822 = vld [vmem:[%s3806 + $0x3c] sm:$0xf]
        %v3823 = vld [vmem:[%s3806 + $0x40] sm:$0xf]
        %v3824 = vld [vmem:[%s3806 + $0x44] sm:$0xf]
        %v3825 = vld [vmem:[%s3806 + $0x48] sm:$0xf]
        %v3826 = vld [vmem:[%s3806 + $0x4c] sm:$0xf]
        %v3827 = vld [vmem:[%s3806 + $0x50] sm:$0xf]
        %v3828 = vld [vmem:[%s3806 + $0x54] sm:$0xf]
        %v3829 = vld [vmem:[%s3806 + $0x58] sm:$0xf]
        %v3830 = vld [vmem:[%s3806 + $0x5c] sm:$0xf]
        %v3831 = vld [vmem:[%s3806 + $0x60] sm:$0xf]
        %v3832 = vld [vmem:[%s3806 + $0x64] sm:$0xf]
        %v3833 = vld [vmem:[%s3806 + $0x68] sm:$0xf]
        %v3834 = vld [vmem:[%s3806 + $0x6c] sm:$0xf]
        %v3835 = vld [vmem:[%s3806 + $0x70] sm:$0xf]
        %v3836 = vld [vmem:[%s3806 + $0x74] sm:$0xf]
        %v3837 = vld [vmem:[%s3806 + $0x78] sm:$0xf]
        %v3838 = vld [vmem:[%s3806 + $0x7c] sm:$0xf]
        %v3839 = vrot.slane %v3109, 2
        %v3840 = vrot.slane %v3110, 2
        %v3875 = vunpack.c.l.b16 %v3807
        %v3876 = vunpack.c.l.b16 %v3808
        %v3877 = vunpack.c.l.b16 %v3809
        %v3878 = vunpack.c.l.b16 %v3810
        %v3879 = vunpack.c.l.b16 %v3811
        %v3880 = vunpack.c.l.b16 %v3812
        %v3881 = vunpack.c.l.b16 %v3813
        %v3882 = vunpack.c.l.b16 %v3814
        %v3883 = vunpack.c.l.b16 %v3815
        %v3884 = vunpack.c.l.b16 %v3816
        %v3885 = vunpack.c.l.b16 %v3817
        %v3886 = vunpack.c.l.b16 %v3818
        %v3887 = vunpack.c.l.b16 %v3819
        %v3888 = vunpack.c.l.b16 %v3820
        %v3889 = vunpack.c.l.b16 %v3821
        %v3890 = vunpack.c.l.b16 %v3822
        %v3891 = vunpack.c.l.b16 %v3823
        %v3892 = vunpack.c.l.b16 %v3824
        %v3893 = vunpack.c.l.b16 %v3825
        %v3894 = vunpack.c.l.b16 %v3826
        %v3895 = vunpack.c.l.b16 %v3827
        %v3896 = vunpack.c.l.b16 %v3828
        %v3897 = vunpack.c.l.b16 %v3829
        %v3898 = vunpack.c.l.b16 %v3830
        %v3899 = vunpack.c.l.b16 %v3831
        %v3900 = vunpack.c.l.b16 %v3832
        %v3901 = vunpack.c.l.b16 %v3833
        %v3902 = vunpack.c.l.b16 %v3834
        %v3903 = vunpack.c.l.b16 %v3835
        %v3904 = vunpack.c.l.b16 %v3836
        %v3905 = vunpack.c.l.b16 %v3837
        %v3906 = vunpack.c.l.b16 %v3838
        %v3907 = vpack.c.b16 %v3876, %v3875
        %v3908 = vpack.c.b16 %v3878, %v3877
        %v3909 = vpack.c.b16 %v3880, %v3879
        %v3910 = vpack.c.b16 %v3882, %v3881
        %v3911 = vpack.c.b16 %v3884, %v3883
        %v3912 = vpack.c.b16 %v3886, %v3885
        %v3913 = vpack.c.b16 %v3888, %v3887
        %v3914 = vpack.c.b16 %v3890, %v3889
        %v3915 = vpack.c.b16 %v3892, %v3891
        %v3916 = vpack.c.b16 %v3894, %v3893
        %v3917 = vpack.c.b16 %v3896, %v3895
        %v3918 = vpack.c.b16 %v3898, %v3897
        %v3919 = vpack.c.b16 %v3900, %v3899
        %v3920 = vpack.c.b16 %v3902, %v3901
        %v3921 = vpack.c.b16 %v3904, %v3903
        %v3922 = vpack.c.b16 %v3906, %v3905
        %3939 = vmatprep.subr.bf16.mxu0 0
        %3940 = vmatpush1.bf16.msra.mxu0 %v3907
        %3941 = vmatprep.subr.bf16.mxu0 0
        %3942 = vmatpush1.bf16.msra.mxu0 %v3908
        %3943 = vmatprep.subr.bf16.mxu0 0
        %3944 = vmatpush1.bf16.msra.mxu0 %v3909
        %3945 = vmatprep.subr.bf16.mxu0 0
        %3946 = vmatpush1.bf16.msra.mxu0 %v3910
        %3947 = vmatprep.subr.bf16.mxu0 0
        %3948 = vmatpush1.bf16.msra.mxu0 %v3911
        %3949 = vmatprep.subr.bf16.mxu0 0
        %3950 = vmatpush1.bf16.msra.mxu0 %v3912
        %3951 = vmatprep.subr.bf16.mxu0 0
        %3952 = vmatpush1.bf16.msra.mxu0 %v3913
        %3953 = vmatprep.subr.bf16.mxu0 0
        %3954 = vmatpush1.bf16.msra.mxu0 %v3914
        %3955 = vmatprep.subr.bf16.mxu0 0
        %3956 = vmatpush1.bf16.msra.mxu0 %v3915
        %3957 = vmatprep.subr.bf16.mxu0 0
        %3958 = vmatpush1.bf16.msra.mxu0 %v3916
        %3959 = vmatprep.subr.bf16.mxu0 0
        %3960 = vmatpush1.bf16.msra.mxu0 %v3917
        %3961 = vmatprep.subr.bf16.mxu0 0
        %3962 = vmatpush1.bf16.msra.mxu0 %v3918
        %3963 = vmatprep.subr.bf16.mxu0 0
        %3964 = vmatpush1.bf16.msra.mxu0 %v3919
        %3965 = vmatprep.subr.bf16.mxu0 0
        %3966 = vmatpush1.bf16.msra.mxu0 %v3920
        %3967 = vmatprep.subr.bf16.mxu0 0
        %3968 = vmatpush1.bf16.msra.mxu0 %v3921
        %3969 = vmatprep.subr.bf16.mxu0 0
        %3970 = vmatpush1.bf16.msra.mxu0 %v3922
        %3971 = vmatprep.mubr.bf16.mxu0 %v3840
        %3972 = vmatmul.mubr.bf16.gmra.mrb[0].mxu0 %v3839
        %v3973 = vpop.f32.mrb[0].mxu0
        %v3974 = vadd.f32 0.0, %v3973
        %v3975 = vpop.f32.mrb[0].mxu0
        %v3976 = vpop.f32.mrb[0].mxu0
        %v3977 = vpop.f32.mrb[0].mxu0
        %3978 = vdwg.mxu0
        %v3979 = vadd.f32 %v3805, %v3974
        %s3980 = scalar_lea.vmem [#allocation11], 640
        %v3981 = vld [vmem:[%s3980] sm:$0xf]
        %v3982 = vld [vmem:[%s3980 + $0x4] sm:$0xf]
        %v3983 = vld [vmem:[%s3980 + $0x8] sm:$0xf]
        %v3984 = vld [vmem:[%s3980 + $0xc] sm:$0xf]
        %v3985 = vld [vmem:[%s3980 + $0x10] sm:$0xf]
        %v3986 = vld [vmem:[%s3980 + $0x14] sm:$0xf]
        %v3987 = vld [vmem:[%s3980 + $0x18] sm:$0xf]
        %v3988 = vld [vmem:[%s3980 + $0x1c] sm:$0xf]
        %v3989 = vld [vmem:[%s3980 + $0x20] sm:$0xf]
        %v3990 = vld [vmem:[%s3980 + $0x24] sm:$0xf]
        %v3991 = vld [vmem:[%s3980 + $0x28] sm:$0xf]
        %v3992 = vld [vmem:[%s3980 + $0x2c] sm:$0xf]
        %v3993 = vld [vmem:[%s3980 + $0x30] sm:$0xf]
        %v3994 = vld [vmem:[%s3980 + $0x34] sm:$0xf]
        %v3995 = vld [vmem:[%s3980 + $0x38] sm:$0xf]
        %v3996 = vld [vmem:[%s3980 + $0x3c] sm:$0xf]
        %v3997 = vld [vmem:[%s3980 + $0x40] sm:$0xf]
        %v3998 = vld [vmem:[%s3980 + $0x44] sm:$0xf]
        %v3999 = vld [vmem:[%s3980 + $0x48] sm:$0xf]
        %v4000 = vld [vmem:[%s3980 + $0x4c] sm:$0xf]
        %v4001 = vld [vmem:[%s3980 + $0x50] sm:$0xf]
        %v4002 = vld [vmem:[%s3980 + $0x54] sm:$0xf]
        %v4003 = vld [vmem:[%s3980 + $0x58] sm:$0xf]
        %v4004 = vld [vmem:[%s3980 + $0x5c] sm:$0xf]
        %v4005 = vld [vmem:[%s3980 + $0x60] sm:$0xf]
        %v4006 = vld [vmem:[%s3980 + $0x64] sm:$0xf]
        %v4007 = vld [vmem:[%s3980 + $0x68] sm:$0xf]
        %v4008 = vld [vmem:[%s3980 + $0x6c] sm:$0xf]
        %v4009 = vld [vmem:[%s3980 + $0x70] sm:$0xf]
        %v4010 = vld [vmem:[%s3980 + $0x74] sm:$0xf]
        %v4011 = vld [vmem:[%s3980 + $0x78] sm:$0xf]
        %v4012 = vld [vmem:[%s3980 + $0x7c] sm:$0xf]
        %v4013 = vrot.slane %v3177, 2
        %v4014 = vrot.slane %v3180, 2
        %v4049 = vunpack.c.l.b16 %v3981
        %v4050 = vunpack.c.l.b16 %v3982
        %v4051 = vunpack.c.l.b16 %v3983
        %v4052 = vunpack.c.l.b16 %v3984
        %v4053 = vunpack.c.l.b16 %v3985
        %v4054 = vunpack.c.l.b16 %v3986
        %v4055 = vunpack.c.l.b16 %v3987
        %v4056 = vunpack.c.l.b16 %v3988
        %v4057 = vunpack.c.l.b16 %v3989
        %v4058 = vunpack.c.l.b16 %v3990
        %v4059 = vunpack.c.l.b16 %v3991
        %v4060 = vunpack.c.l.b16 %v3992
        %v4061 = vunpack.c.l.b16 %v3993
        %v4062 = vunpack.c.l.b16 %v3994
        %v4063 = vunpack.c.l.b16 %v3995
        %v4064 = vunpack.c.l.b16 %v3996
        %v4065 = vunpack.c.l.b16 %v3997
        %v4066 = vunpack.c.l.b16 %v3998
        %v4067 = vunpack.c.l.b16 %v3999
        %v4068 = vunpack.c.l.b16 %v4000
        %v4069 = vunpack.c.l.b16 %v4001
        %v4070 = vunpack.c.l.b16 %v4002
        %v4071 = vunpack.c.l.b16 %v4003
        %v4072 = vunpack.c.l.b16 %v4004
        %v4073 = vunpack.c.l.b16 %v4005
        %v4074 = vunpack.c.l.b16 %v4006
        %v4075 = vunpack.c.l.b16 %v4007
        %v4076 = vunpack.c.l.b16 %v4008
        %v4077 = vunpack.c.l.b16 %v4009
        %v4078 = vunpack.c.l.b16 %v4010
        %v4079 = vunpack.c.l.b16 %v4011
        %v4080 = vunpack.c.l.b16 %v4012
        %v4081 = vpack.c.b16 %v4050, %v4049
        %v4082 = vpack.c.b16 %v4052, %v4051
        %v4083 = vpack.c.b16 %v4054, %v4053
        %v4084 = vpack.c.b16 %v4056, %v4055
        %v4085 = vpack.c.b16 %v4058, %v4057
        %v4086 = vpack.c.b16 %v4060, %v4059
        %v4087 = vpack.c.b16 %v4062, %v4061
        %v4088 = vpack.c.b16 %v4064, %v4063
        %v4089 = vpack.c.b16 %v4066, %v4065
        %v4090 = vpack.c.b16 %v4068, %v4067
        %v4091 = vpack.c.b16 %v4070, %v4069
        %v4092 = vpack.c.b16 %v4072, %v4071
        %v4093 = vpack.c.b16 %v4074, %v4073
        %v4094 = vpack.c.b16 %v4076, %v4075
        %v4095 = vpack.c.b16 %v4078, %v4077
        %v4096 = vpack.c.b16 %v4080, %v4079
        %4113 = vmatprep.subr.bf16.mxu0 0
        %4114 = vmatpush1.bf16.msra.mxu0 %v4081
        %4115 = vmatprep.subr.bf16.mxu0 0
        %4116 = vmatpush1.bf16.msra.mxu0 %v4082
        %4117 = vmatprep.subr.bf16.mxu0 0
        %4118 = vmatpush1.bf16.msra.mxu0 %v4083
        %4119 = vmatprep.subr.bf16.mxu0 0
        %4120 = vmatpush1.bf16.msra.mxu0 %v4084
        %4121 = vmatprep.subr.bf16.mxu0 0
        %4122 = vmatpush1.bf16.msra.mxu0 %v4085
        %4123 = vmatprep.subr.bf16.mxu0 0
        %4124 = vmatpush1.bf16.msra.mxu0 %v4086
        %4125 = vmatprep.subr.bf16.mxu0 0
        %4126 = vmatpush1.bf16.msra.mxu0 %v4087
        %4127 = vmatprep.subr.bf16.mxu0 0
        %4128 = vmatpush1.bf16.msra.mxu0 %v4088
        %4129 = vmatprep.subr.bf16.mxu0 0
        %4130 = vmatpush1.bf16.msra.mxu0 %v4089
        %4131 = vmatprep.subr.bf16.mxu0 0
        %4132 = vmatpush1.bf16.msra.mxu0 %v4090
        %4133 = vmatprep.subr.bf16.mxu0 0
        %4134 = vmatpush1.bf16.msra.mxu0 %v4091
        %4135 = vmatprep.subr.bf16.mxu0 0
        %4136 = vmatpush1.bf16.msra.mxu0 %v4092
        %4137 = vmatprep.subr.bf16.mxu0 0
        %4138 = vmatpush1.bf16.msra.mxu0 %v4093
        %4139 = vmatprep.subr.bf16.mxu0 0
        %4140 = vmatpush1.bf16.msra.mxu0 %v4094
        %4141 = vmatprep.subr.bf16.mxu0 0
        %4142 = vmatpush1.bf16.msra.mxu0 %v4095
        %4143 = vmatprep.subr.bf16.mxu0 0
        %4144 = vmatpush1.bf16.msra.mxu0 %v4096
        %4145 = vmatprep.mubr.bf16.mxu0 %v4014
        %4146 = vmatmul.mubr.bf16.gmra.mrb[0].mxu0 %v4013
        %v4147 = vpop.f32.mrb[0].mxu0
        %v4148 = vadd.f32 0.0, %v4147
        %v4149 = vpop.f32.mrb[0].mxu0
        %v4150 = vpop.f32.mrb[0].mxu0
        %v4151 = vpop.f32.mrb[0].mxu0
        %4152 = vdwg.mxu0
        %v4153 = vadd.f32 %v3979, %v4148
        %s4154 = scalar_lea.vmem [#allocation11], 768
        %v4155 = vld [vmem:[%s4154] sm:$0xf]
        %v4156 = vld [vmem:[%s4154 + $0x4] sm:$0xf]
        %v4157 = vld [vmem:[%s4154 + $0x8] sm:$0xf]
        %v4158 = vld [vmem:[%s4154 + $0xc] sm:$0xf]
        %v4159 = vld [vmem:[%s4154 + $0x10] sm:$0xf]
        %v4160 = vld [vmem:[%s4154 + $0x14] sm:$0xf]
        %v4161 = vld [vmem:[%s4154 + $0x18] sm:$0xf]
        %v4162 = vld [vmem:[%s4154 + $0x1c] sm:$0xf]
        %v4163 = vld [vmem:[%s4154 + $0x20] sm:$0xf]
        %v4164 = vld [vmem:[%s4154 + $0x24] sm:$0xf]
        %v4165 = vld [vmem:[%s4154 + $0x28] sm:$0xf]
        %v4166 = vld [vmem:[%s4154 + $0x2c] sm:$0xf]
        %v4167 = vld [vmem:[%s4154 + $0x30] sm:$0xf]
        %v4168 = vld [vmem:[%s4154 + $0x34] sm:$0xf]
        %v4169 = vld [vmem:[%s4154 + $0x38] sm:$0xf]
        %v4170 = vld [vmem:[%s4154 + $0x3c] sm:$0xf]
        %v4171 = vld [vmem:[%s4154 + $0x40] sm:$0xf]
        %v4172 = vld [vmem:[%s4154 + $0x44] sm:$0xf]
        %v4173 = vld [vmem:[%s4154 + $0x48] sm:$0xf]
        %v4174 = vld [vmem:[%s4154 + $0x4c] sm:$0xf]
        %v4175 = vld [vmem:[%s4154 + $0x50] sm:$0xf]
        %v4176 = vld [vmem:[%s4154 + $0x54] sm:$0xf]
        %v4177 = vld [vmem:[%s4154 + $0x58] sm:$0xf]
        %v4178 = vld [vmem:[%s4154 + $0x5c] sm:$0xf]
        %v4179 = vld [vmem:[%s4154 + $0x60] sm:$0xf]
        %v4180 = vld [vmem:[%s4154 + $0x64] sm:$0xf]
        %v4181 = vld [vmem:[%s4154 + $0x68] sm:$0xf]
        %v4182 = vld [vmem:[%s4154 + $0x6c] sm:$0xf]
        %v4183 = vld [vmem:[%s4154 + $0x70] sm:$0xf]
        %v4184 = vld [vmem:[%s4154 + $0x74] sm:$0xf]
        %v4185 = vld [vmem:[%s4154 + $0x78] sm:$0xf]
        %v4186 = vld [vmem:[%s4154 + $0x7c] sm:$0xf]
        %v4187 = vrot.slane %v3109, 3
        %v4188 = vrot.slane %v3110, 3
        %v4223 = vunpack.c.l.b16 %v4155
        %v4224 = vunpack.c.l.b16 %v4156
        %v4225 = vunpack.c.l.b16 %v4157
        %v4226 = vunpack.c.l.b16 %v4158
        %v4227 = vunpack.c.l.b16 %v4159
        %v4228 = vunpack.c.l.b16 %v4160
        %v4229 = vunpack.c.l.b16 %v4161
        %v4230 = vunpack.c.l.b16 %v4162
        %v4231 = vunpack.c.l.b16 %v4163
        %v4232 = vunpack.c.l.b16 %v4164
        %v4233 = vunpack.c.l.b16 %v4165
        %v4234 = vunpack.c.l.b16 %v4166
        %v4235 = vunpack.c.l.b16 %v4167
        %v4236 = vunpack.c.l.b16 %v4168
        %v4237 = vunpack.c.l.b16 %v4169
        %v4238 = vunpack.c.l.b16 %v4170
        %v4239 = vunpack.c.l.b16 %v4171
        %v4240 = vunpack.c.l.b16 %v4172
        %v4241 = vunpack.c.l.b16 %v4173
        %v4242 = vunpack.c.l.b16 %v4174
        %v4243 = vunpack.c.l.b16 %v4175
        %v4244 = vunpack.c.l.b16 %v4176
        %v4245 = vunpack.c.l.b16 %v4177
        %v4246 = vunpack.c.l.b16 %v4178
        %v4247 = vunpack.c.l.b16 %v4179
        %v4248 = vunpack.c.l.b16 %v4180
        %v4249 = vunpack.c.l.b16 %v4181
        %v4250 = vunpack.c.l.b16 %v4182
        %v4251 = vunpack.c.l.b16 %v4183
        %v4252 = vunpack.c.l.b16 %v4184
        %v4253 = vunpack.c.l.b16 %v4185
        %v4254 = vunpack.c.l.b16 %v4186
        %v4255 = vpack.c.b16 %v4224, %v4223
        %v4256 = vpack.c.b16 %v4226, %v4225
        %v4257 = vpack.c.b16 %v4228, %v4227
        %v4258 = vpack.c.b16 %v4230, %v4229
        %v4259 = vpack.c.b16 %v4232, %v4231
        %v4260 = vpack.c.b16 %v4234, %v4233
        %v4261 = vpack.c.b16 %v4236, %v4235
        %v4262 = vpack.c.b16 %v4238, %v4237
        %v4263 = vpack.c.b16 %v4240, %v4239
        %v4264 = vpack.c.b16 %v4242, %v4241
        %v4265 = vpack.c.b16 %v4244, %v4243
        %v4266 = vpack.c.b16 %v4246, %v4245
        %v4267 = vpack.c.b16 %v4248, %v4247
        %v4268 = vpack.c.b16 %v4250, %v4249
        %v4269 = vpack.c.b16 %v4252, %v4251
        %v4270 = vpack.c.b16 %v4254, %v4253
        %4287 = vmatprep.subr.bf16.mxu0 0
        %4288 = vmatpush1.bf16.msra.mxu0 %v4255
        %4289 = vmatprep.subr.bf16.mxu0 0
        %4290 = vmatpush1.bf16.msra.mxu0 %v4256
        %4291 = vmatprep.subr.bf16.mxu0 0
        %4292 = vmatpush1.bf16.msra.mxu0 %v4257
        %4293 = vmatprep.subr.bf16.mxu0 0
        %4294 = vmatpush1.bf16.msra.mxu0 %v4258
        %4295 = vmatprep.subr.bf16.mxu0 0
        %4296 = vmatpush1.bf16.msra.mxu0 %v4259
        %4297 = vmatprep.subr.bf16.mxu0 0
        %4298 = vmatpush1.bf16.msra.mxu0 %v4260
        %4299 = vmatprep.subr.bf16.mxu0 0
        %4300 = vmatpush1.bf16.msra.mxu0 %v4261
        %4301 = vmatprep.subr.bf16.mxu0 0
        %4302 = vmatpush1.bf16.msra.mxu0 %v4262
        %4303 = vmatprep.subr.bf16.mxu0 0
        %4304 = vmatpush1.bf16.msra.mxu0 %v4263
        %4305 = vmatprep.subr.bf16.mxu0 0
        %4306 = vmatpush1.bf16.msra.mxu0 %v4264
        %4307 = vmatprep.subr.bf16.mxu0 0
        %4308 = vmatpush1.bf16.msra.mxu0 %v4265
        %4309 = vmatprep.subr.bf16.mxu0 0
        %4310 = vmatpush1.bf16.msra.mxu0 %v4266
        %4311 = vmatprep.subr.bf16.mxu0 0
        %4312 = vmatpush1.bf16.msra.mxu0 %v4267
        %4313 = vmatprep.subr.bf16.mxu0 0
        %4314 = vmatpush1.bf16.msra.mxu0 %v4268
        %4315 = vmatprep.subr.bf16.mxu0 0
        %4316 = vmatpush1.bf16.msra.mxu0 %v4269
        %4317 = vmatprep.subr.bf16.mxu0 0
        %4318 = vmatpush1.bf16.msra.mxu0 %v4270
        %4319 = vmatprep.mubr.bf16.mxu0 %v4188
        %4320 = vmatmul.mubr.bf16.gmra.mrb[0].mxu0 %v4187
        %v4321 = vpop.f32.mrb[0].mxu0
        %v4322 = vadd.f32 0.0, %v4321
        %v4323 = vpop.f32.mrb[0].mxu0
        %v4324 = vpop.f32.mrb[0].mxu0
        %v4325 = vpop.f32.mrb[0].mxu0
        %4326 = vdwg.mxu0
        %v4327 = vadd.f32 %v4153, %v4322
        %s4328 = scalar_lea.vmem [#allocation11], 896
        %v4329 = vld [vmem:[%s4328] sm:$0xf]
        %v4330 = vld [vmem:[%s4328 + $0x4] sm:$0xf]
        %v4331 = vld [vmem:[%s4328 + $0x8] sm:$0xf]
        %v4332 = vld [vmem:[%s4328 + $0xc] sm:$0xf]
        %v4333 = vld [vmem:[%s4328 + $0x10] sm:$0xf]
        %v4334 = vld [vmem:[%s4328 + $0x14] sm:$0xf]
        %v4335 = vld [vmem:[%s4328 + $0x18] sm:$0xf]
        %v4336 = vld [vmem:[%s4328 + $0x1c] sm:$0xf]
        %v4337 = vld [vmem:[%s4328 + $0x20] sm:$0xf]
        %v4338 = vld [vmem:[%s4328 + $0x24] sm:$0xf]
        %v4339 = vld [vmem:[%s4328 + $0x28] sm:$0xf]
        %v4340 = vld [vmem:[%s4328 + $0x2c] sm:$0xf]
        %v4341 = vld [vmem:[%s4328 + $0x30] sm:$0xf]
        %v4342 = vld [vmem:[%s4328 + $0x34] sm:$0xf]
        %v4343 = vld [vmem:[%s4328 + $0x38] sm:$0xf]
        %v4344 = vld [vmem:[%s4328 + $0x3c] sm:$0xf]
        %v4345 = vld [vmem:[%s4328 + $0x40] sm:$0xf]
        %v4346 = vld [vmem:[%s4328 + $0x44] sm:$0xf]
        %v4347 = vld [vmem:[%s4328 + $0x48] sm:$0xf]
        %v4348 = vld [vmem:[%s4328 + $0x4c] sm:$0xf]
        %v4349 = vld [vmem:[%s4328 + $0x50] sm:$0xf]
        %v4350 = vld [vmem:[%s4328 + $0x54] sm:$0xf]
        %v4351 = vld [vmem:[%s4328 + $0x58] sm:$0xf]
        %v4352 = vld [vmem:[%s4328 + $0x5c] sm:$0xf]
        %v4353 = vld [vmem:[%s4328 + $0x60] sm:$0xf]
        %v4354 = vld [vmem:[%s4328 + $0x64] sm:$0xf]
        %v4355 = vld [vmem:[%s4328 + $0x68] sm:$0xf]
        %v4356 = vld [vmem:[%s4328 + $0x6c] sm:$0xf]
        %v4357 = vld [vmem:[%s4328 + $0x70] sm:$0xf]
        %v4358 = vld [vmem:[%s4328 + $0x74] sm:$0xf]
        %v4359 = vld [vmem:[%s4328 + $0x78] sm:$0xf]
        %v4360 = vld [vmem:[%s4328 + $0x7c] sm:$0xf]
        %v4361 = vrot.slane %v3177, 3
        %v4362 = vrot.slane %v3180, 3
        %v4397 = vunpack.c.l.b16 %v4329
        %v4398 = vunpack.c.l.b16 %v4330
        %v4399 = vunpack.c.l.b16 %v4331
        %v4400 = vunpack.c.l.b16 %v4332
        %v4401 = vunpack.c.l.b16 %v4333
        %v4402 = vunpack.c.l.b16 %v4334
        %v4403 = vunpack.c.l.b16 %v4335
        %v4404 = vunpack.c.l.b16 %v4336
        %v4405 = vunpack.c.l.b16 %v4337
        %v4406 = vunpack.c.l.b16 %v4338
        %v4407 = vunpack.c.l.b16 %v4339
        %v4408 = vunpack.c.l.b16 %v4340
        %v4409 = vunpack.c.l.b16 %v4341
        %v4410 = vunpack.c.l.b16 %v4342
        %v4411 = vunpack.c.l.b16 %v4343
        %v4412 = vunpack.c.l.b16 %v4344
        %v4413 = vunpack.c.l.b16 %v4345
        %v4414 = vunpack.c.l.b16 %v4346
        %v4415 = vunpack.c.l.b16 %v4347
        %v4416 = vunpack.c.l.b16 %v4348
        %v4417 = vunpack.c.l.b16 %v4349
        %v4418 = vunpack.c.l.b16 %v4350
        %v4419 = vunpack.c.l.b16 %v4351
        %v4420 = vunpack.c.l.b16 %v4352
        %v4421 = vunpack.c.l.b16 %v4353
        %v4422 = vunpack.c.l.b16 %v4354
        %v4423 = vunpack.c.l.b16 %v4355
        %v4424 = vunpack.c.l.b16 %v4356
        %v4425 = vunpack.c.l.b16 %v4357
        %v4426 = vunpack.c.l.b16 %v4358
        %v4427 = vunpack.c.l.b16 %v4359
        %v4428 = vunpack.c.l.b16 %v4360
        %v4429 = vpack.c.b16 %v4398, %v4397
        %v4430 = vpack.c.b16 %v4400, %v4399
        %v4431 = vpack.c.b16 %v4402, %v4401
        %v4432 = vpack.c.b16 %v4404, %v4403
        %v4433 = vpack.c.b16 %v4406, %v4405
        %v4434 = vpack.c.b16 %v4408, %v4407
        %v4435 = vpack.c.b16 %v4410, %v4409
        %v4436 = vpack.c.b16 %v4412, %v4411
        %v4437 = vpack.c.b16 %v4414, %v4413
        %v4438 = vpack.c.b16 %v4416, %v4415
        %v4439 = vpack.c.b16 %v4418, %v4417
        %v4440 = vpack.c.b16 %v4420, %v4419
        %v4441 = vpack.c.b16 %v4422, %v4421
        %v4442 = vpack.c.b16 %v4424, %v4423
        %v4443 = vpack.c.b16 %v4426, %v4425
        %v4444 = vpack.c.b16 %v4428, %v4427
        %4461 = vmatprep.subr.bf16.mxu0 0
        %4462 = vmatpush1.bf16.msra.mxu0 %v4429
        %4463 = vmatprep.subr.bf16.mxu0 0
        %4464 = vmatpush1.bf16.msra.mxu0 %v4430
        %4465 = vmatprep.subr.bf16.mxu0 0
        %4466 = vmatpush1.bf16.msra.mxu0 %v4431
        %4467 = vmatprep.subr.bf16.mxu0 0
        %4468 = vmatpush1.bf16.msra.mxu0 %v4432
        %4469 = vmatprep.subr.bf16.mxu0 0
        %4470 = vmatpush1.bf16.msra.mxu0 %v4433
        %4471 = vmatprep.subr.bf16.mxu0 0
        %4472 = vmatpush1.bf16.msra.mxu0 %v4434
        %4473 = vmatprep.subr.bf16.mxu0 0
        %4474 = vmatpush1.bf16.msra.mxu0 %v4435
        %4475 = vmatprep.subr.bf16.mxu0 0
        %4476 = vmatpush1.bf16.msra.mxu0 %v4436
        %4477 = vmatprep.subr.bf16.mxu0 0
        %4478 = vmatpush1.bf16.msra.mxu0 %v4437
        %4479 = vmatprep.subr.bf16.mxu0 0
        %4480 = vmatpush1.bf16.msra.mxu0 %v4438
        %4481 = vmatprep.subr.bf16.mxu0 0
        %4482 = vmatpush1.bf16.msra.mxu0 %v4439
        %4483 = vmatprep.subr.bf16.mxu0 0
        %4484 = vmatpush1.bf16.msra.mxu0 %v4440
        %4485 = vmatprep.subr.bf16.mxu0 0
        %4486 = vmatpush1.bf16.msra.mxu0 %v4441
        %4487 = vmatprep.subr.bf16.mxu0 0
        %4488 = vmatpush1.bf16.msra.mxu0 %v4442
        %4489 = vmatprep.subr.bf16.mxu0 0
        %4490 = vmatpush1.bf16.msra.mxu0 %v4443
        %4491 = vmatprep.subr.bf16.mxu0 0
        %4492 = vmatpush1.bf16.msra.mxu0 %v4444
        %4493 = vmatprep.mubr.bf16.mxu0 %v4362
        %4494 = vmatmul.mubr.bf16.gmra.mrb[0].mxu0 %v4361
        %v4495 = vpop.f32.mrb[0].mxu0
        %v4496 = vadd.f32 0.0, %v4495
        %v4497 = vpop.f32.mrb[0].mxu0
        %v4498 = vpop.f32.mrb[0].mxu0
        %v4499 = vpop.f32.mrb[0].mxu0
        %4500 = vdwg.mxu0
        %v4501 = vadd.f32 %v4327, %v4496
        %v4502 = vld [vmem:[%s8] sm:$0x1]
        %v4503 = vadd.f32 %v4501, %v4502
        %v4504 = vmax.f32 %v4503, 0.0
        %v4505 = vpack.c.bf16 %v4504, %v4504
        %v4506 = vld [vmem:[#allocation13] sm:$0xf]
        %v4507 = vld [vmem:[#allocation13 + $0x4] sm:$0xf]
        %v4508 = vld [vmem:[#allocation13 + $0x8] sm:$0xf]
        %v4509 = vld [vmem:[#allocation13 + $0xc] sm:$0xf]
        %v4510 = vld [vmem:[#allocation13 + $0x10] sm:$0xf]
        %v4511 = vld [vmem:[#allocation13 + $0x14] sm:$0xf]
        %v4512 = vld [vmem:[#allocation13 + $0x18] sm:$0xf]
        %v4513 = vld [vmem:[#allocation13 + $0x1c] sm:$0xf]
        %v4514 = vld [vmem:[#allocation13 + $0x20] sm:$0xf]
        %v4515 = vld [vmem:[#allocation13 + $0x24] sm:$0xf]
        %v4516 = vld [vmem:[#allocation13 + $0x28] sm:$0xf]
        %v4517 = vld [vmem:[#allocation13 + $0x2c] sm:$0xf]
        %v4518 = vld [vmem:[#allocation13 + $0x30] sm:$0xf]
        %v4519 = vld [vmem:[#allocation13 + $0x34] sm:$0xf]
        %v4520 = vld [vmem:[#allocation13 + $0x38] sm:$0xf]
        %v4521 = vld [vmem:[#allocation13 + $0x3c] sm:$0xf]
        %v4522 = vld [vmem:[%s10] sm:$0x1]
        %v4539 = vunpack.c.l.b16 %v4506
        %v4540 = vunpack.c.l.b16 %v4507
        %v4541 = vunpack.c.l.b16 %v4508
        %v4542 = vunpack.c.l.b16 %v4509
        %v4543 = vunpack.c.l.b16 %v4510
        %v4544 = vunpack.c.l.b16 %v4511
        %v4545 = vunpack.c.l.b16 %v4512
        %v4546 = vunpack.c.l.b16 %v4513
        %v4547 = vunpack.c.l.b16 %v4514
        %v4548 = vunpack.c.l.b16 %v4515
        %v4549 = vunpack.c.l.b16 %v4516
        %v4550 = vunpack.c.l.b16 %v4517
        %v4551 = vunpack.c.l.b16 %v4518
        %v4552 = vunpack.c.l.b16 %v4519
        %v4553 = vunpack.c.l.b16 %v4520
        %v4554 = vunpack.c.l.b16 %v4521
        %v4555 = vpack.c.b16 %v4540, %v4539
        %v4556 = vpack.c.b16 %v4542, %v4541
        %v4557 = vpack.c.b16 %v4544, %v4543
        %v4558 = vpack.c.b16 %v4546, %v4545
        %v4559 = vpack.c.b16 %v4548, %v4547
        %v4560 = vpack.c.b16 %v4550, %v4549
        %v4561 = vpack.c.b16 %v4552, %v4551
        %v4562 = vpack.c.b16 %v4554, %v4553
        %4571 = vmatprep.subr.bf16.mxu0 0
        %4572 = vmatpush1.bf16.msra.mxu0 %v4555
        %4573 = vmatprep.subr.bf16.mxu0 0
        %4574 = vmatpush1.bf16.msra.mxu0 %v4556
        %4575 = vmatprep.subr.bf16.mxu0 0
        %4576 = vmatpush1.bf16.msra.mxu0 %v4557
        %4577 = vmatprep.subr.bf16.mxu0 0
        %4578 = vmatpush1.bf16.msra.mxu0 %v4558
        %4579 = vmatprep.subr.bf16.mxu0 0
        %4580 = vmatpush1.bf16.msra.mxu0 %v4559
        %4581 = vmatprep.subr.bf16.mxu0 0
        %4582 = vmatpush1.bf16.msra.mxu0 %v4560
        %4583 = vmatprep.subr.bf16.mxu0 0
        %4584 = vmatpush1.bf16.msra.mxu0 %v4561
        %4585 = vmatprep.subr.bf16.mxu0 0
        %4586 = vmatpush1.bf16.msra.mxu0 %v4562
        %4587 = vmatprep.subr.bf16.mxu0 0
        %4588 = vmatpush1.bf16.msra.mxu0 0
        %4589 = vmatprep.subr.bf16.mxu0 0
        %4590 = vmatpush1.bf16.msra.mxu0 0
        %4591 = vmatprep.subr.bf16.mxu0 0
        %4592 = vmatpush1.bf16.msra.mxu0 0
        %4593 = vmatprep.subr.bf16.mxu0 0
        %4594 = vmatpush1.bf16.msra.mxu0 0
        %4595 = vmatprep.subr.bf16.mxu0 0
        %4596 = vmatpush1.bf16.msra.mxu0 0
        %4597 = vmatprep.subr.bf16.mxu0 0
        %4598 = vmatpush1.bf16.msra.mxu0 0
        %4599 = vmatprep.subr.bf16.mxu0 0
        %4600 = vmatpush1.bf16.msra.mxu0 0
        %4601 = vmatprep.subr.bf16.mxu0 0
        %4602 = vmatpush1.bf16.msra.mxu0 0
        %4603 = vmatprep.mubr.bf16.mxu0 0
        %4604 = vmatmul.mubr.bf16.gmra.mrb[0].mxu0 %v4505
        %v4605 = vpop.f32.mrb[0].mxu0
        %v4606 = vadd.f32 %v4522, %v4605
        %v4607 = vpop.f32.mrb[0].mxu0
        %v4608 = vpop.f32.mrb[0].mxu0
        %v4609 = vpop.f32.mrb[0].mxu0
        %4610 = vdwg.mxu0
        %4611 = vst [vmem:[%s490] sm:$0x1] %v4606
        %s4612 = sand.u32 %s275, 1
        %s4613 = scalar_lea.sflag [#allocation4], %s4612
        %s4614 = sand.u32 %s275, 1
        %s4615 = scalar_lea.vmem [#allocation14], %s4614
        // Predicated region
        $region93: #{cnn_forward.1} parent=63 // pred_check
          %p4616 = pneg %p285
        $region94: #{cnn_forward.1} parent=63 // pred_check_branch
          %4618 = sbr.rel (%p4616) target = $region96
        $region95: #{cnn_forward.1} parent=63 // pred_region
          %s4620 = ssub.s32 16, 16
          %4621 = vsyncadd %s4613, %s4620
          %s4622 = smul.addr %s31, 16
          %s4623 = scalar_lea.hbm %s11, %s4622
          %s4625 = sshll.u32 %s4615, 4
          %s4626 = int_to_ptr.vmem [resolvable:$true] %s4625
          %4628 = dma.vmem_to_hbm [thread:$0]  %s4626, 16, %s4623, %s4613
        $region96: #{cnn_forward.1} parent=63 // pred_fallthru
          _
      $region64: #{cnn_forward.1} parent=5 // pred_fallthru
        _
      %p4629 = scmp.le.s32.totalorder 2, %s26
      // Predicated region
      $region97: #{cnn_forward.1} parent=5 // pred_check
        %p4630 = pneg %p4629
      $region98: #{cnn_forward.1} parent=5 // pred_check_branch
        %4632 = sbr.rel (%p4630) target = $region100
      $region99: #{cnn_forward.1} parent=5 // pred_region
        %s4633 = ssub.s32 %s26, 2
        // Predicated region
        $region101: #{cnn_forward.1} parent=99 // pred_check
          %p4634 = pneg %p291
        $region102: #{cnn_forward.1} parent=99 // pred_check_branch
          %4636 = sbr.rel (%p4634) target = $region104
        $region103: #{cnn_forward.1} parent=99 // pred_region
          %s4637 = sand.u32 %s276, 1
          %s4638 = scalar_lea.sflag [#allocation4], %s4637
          %s4639 = sand.u32 %s276, 1
          %s4640 = scalar_lea.vmem [#allocation14], %s4639
          %4641 = dma.done %s4638, 16
        $region104: #{cnn_forward.1} parent=99 // pred_fallthru
          _
      $region100: #{cnn_forward.1} parent=5 // pred_fallthru
        _
    $region6: #{cnn_forward.1} parent=1 // loop_footer
      %s30 = sadd.s32 1, %s26
    $region7: #{cnn_forward.1} parent=1 // loop_footer_branch
      %25 = sbr.rel target = $region3
    $region8: #{cnn_forward.1} parent=1 // loop_exit
      _
    %4642 = vsyncpa [#allocation3], 1
    %s4643 = scalar_lea.sflag [#allocation3], 1
    %4644 = vsyncpa %s4643, 1
    %4645 = vsyncpa [#allocation6], 1
    %4646 = vsyncpa [#allocation9], 1
    %4647 = vsyncpa [#allocation12], 1
    %4648 = vsyncpa [#allocation4], 1
    %s4649 = scalar_lea.sflag [#allocation4], 1
    %4650 = vsyncpa %s4649, 1

</llo_original>
